<compile_context>
chip_gen: v7x
topology: tpu7x:2x2x1
jax: 0.10.0
libtpu: 0.0.40
codegen_flags: <defaults>
</compile_context>

<pallas_src>
import math

import jax
import jax.numpy as jnp
from jax.experimental import pallas as pl
from jax.experimental.pallas import tpu as pltpu

HIDDEN = 32
INPUT = 50
OUTPUT = 2
NUM_LAYERS = 1
BATCH = 2
SEQ = 688            # must be > 678 because forward reads x[:, 678, 0]

_STEPS_PER_ITER = 16  # timesteps unrolled per fori_loop iteration


def lstm_fused_kernel(idx_ref, x_ref, wih_ref, whh_ref, b_ref,
                      wfc_ref, bfc_ref, out_ref, gx_ref):
    B = idx_ref.shape[0]
    TB = x_ref.shape[0]          # T * B (time-major, batch-interleaved rows)
    T = TB // B
    H = HIDDEN

    # ---- (1) hoisted input projection ---------------------------------------
    # One (T*B, I) @ (I, 4H) MXU matmul; result (row t*B + b == timestep t,
    # batch b) kept lane-dense (last dim 4H = 128) in VMEM.
    gx_ref[...] = (
        jnp.dot(x_ref[...], wih_ref[...], preferred_element_type=jnp.float32)
        + b_ref[...])

    # ---- (2) serial LSTM recurrence, both rows fused into one (B,H) chain ---
    whh = whh_ref[...]           # (H, 4H) bf16, hoisted (stays in vregs)
    idx_v = idx_ref[...]         # (B, 1) int32, hoisted

    n_outer = T // _STEPS_PER_ITER

    def outer_step(tt, carry):
        h, c, hsel = carry
        t_base = pl.multiple_of(tt * _STEPS_PER_ITER, _STEPS_PER_ITER)
        for j in range(_STEPS_PER_ITER):
            t = t_base + j
            off = pl.multiple_of(t * B, B)
            gx_t = gx_ref[pl.ds(off, B), :]                     # (B, 4H) load
            gates = gx_t + jnp.dot(h.astype(jnp.bfloat16), whh,
                                   preferred_element_type=jnp.float32)
            # gate columns are pre-permuted in the wrapper to (i, f, o, g)
            sig = jax.nn.sigmoid(gates[:, :3 * H])              # i|f|o
            g_g = jnp.tanh(gates[:, 3 * H:])                    # g
            i_g = sig[:, 0 * H:1 * H]
            f_g = sig[:, 1 * H:2 * H]
            o_g = sig[:, 2 * H:3 * H]
            c = f_g * c + i_g * g_g
            h = o_g * jnp.tanh(c)
            # branch-free capture of h_t at the requested timestep per row
            hsel = jnp.where(idx_v == t, h, hsel)
        return h, c, hsel

    zeros = jnp.zeros((B, H), jnp.float32)
    _, _, hsel = jax.lax.fori_loop(0, n_outer, outer_step,
                                   (zeros, zeros, zeros))

    # ---- (3) fc + softmax on the gathered hidden state -----------------------
    logits = (jnp.dot(hsel, wfc_ref[...],
                      preferred_element_type=jnp.float32) + bfc_ref[...])
    m = jnp.max(logits, axis=1, keepdims=True)
    e = jnp.exp(logits - m)
    out_ref[...] = (e / jnp.sum(e, axis=1, keepdims=True)).astype(out_ref.dtype)


@jax.jit
def lstm_forward(x, params):
    B, T, I = x.shape
    assert T % _STEPS_PER_ITER == 0
    assert T > 678

    # PyTorch: index = x[:, 678, 0]; int() truncates toward zero, tensor
    # indexing wraps negatives.  NOTE: PyTorch raises for indices outside
    # [-T, T); here we wrap negatives (matches torch for [-T, -1]) and clamp
    # as an explicit out-of-range guard.
    idx = jnp.trunc(x[:, 678, 0]).astype(jnp.int32)
    idx = jnp.where(idx < 0, idx + T, idx)
    idx = jnp.clip(idx, 0, T - 1).reshape(B, 1)

    H = HIDDEN
    # reorder PyTorch gate blocks (i, f, g, o) -> (i, f, o, g) so the kernel
    # applies one sigmoid over lanes [0:3H] and one tanh over [3H:4H].
    perm = jnp.concatenate([jnp.arange(0, 2 * H),
                            jnp.arange(3 * H, 4 * H),
                            jnp.arange(2 * H, 3 * H)])
    w_ih_t = params["w_ih"][perm].T                              # (I, 4H)
    w_hh_t = params["w_hh"][perm].T.astype(jnp.bfloat16)         # (H, 4H) bf16
    b_gates = (params["b_ih"] + params["b_hh"])[perm][None, :]   # (1, 4H)
    w_fc_t = params["w_fc"].T                                    # (H, OUT)
    b_fc = params["b_fc"][None, :]                               # (1, OUT)

    # time-major, batch-interleaved layout: row t*B + b  <->  (t, b)
    x_tb = jnp.transpose(x, (1, 0, 2)).reshape(T * B, I)

    vmem = pl.BlockSpec(memory_space=pltpu.MemorySpace.VMEM)

    return pl.pallas_call(
        lstm_fused_kernel,
        out_shape=jax.ShapeDtypeStruct((B, OUTPUT), jnp.float32),
        in_specs=[vmem] * 7,
        out_specs=vmem,
        scratch_shapes=[
            pltpu.VMEM((T * B, 4 * HIDDEN), jnp.float32),  # hoisted input gates
        ],
    )(idx, x_tb, w_ih_t, w_hh_t, b_gates, w_fc_t, b_fc)


def lstm_reference(x, params):
    """Pure-JAX reference of the PyTorch forward (for a correctness check)."""
    B, T, _ = x.shape
    w_ih, w_hh = params["w_ih"], params["w_hh"]
    b = params["b_ih"] + params["b_hh"]

    def cell(carry, x_t):
        h, c = carry
        gates = x_t @ w_ih.T + h @ w_hh.T + b
        i, f, g, o = jnp.split(gates, 4, axis=-1)
        i, f, o = jax.nn.sigmoid(i), jax.nn.sigmoid(f), jax.nn.sigmoid(o)
        g = jnp.tanh(g)
        c = f * c + i * g
        h = o * jnp.tanh(c)
        return (h, c), h

    h0 = jnp.zeros((B, HIDDEN), jnp.float32)
    c0 = jnp.zeros((B, HIDDEN), jnp.float32)
    _, hs = jax.lax.scan(cell, (h0, c0), jnp.transpose(x, (1, 0, 2)))
    hs = jnp.transpose(hs, (1, 0, 2))                            # (B, T, H)

    idx = jnp.trunc(x[:, 678, 0]).astype(jnp.int32)
    idx = jnp.where(idx < 0, idx + T, idx)
    idx = jnp.clip(idx, 0, T - 1)
    sel = hs[jnp.arange(B), idx]
    logits = sel @ params["w_fc"].T + params["b_fc"]
    return jax.nn.softmax(logits, axis=1)


def init_params(key):
    ks = jax.random.split(key, 6)
    bound_lstm = 1.0 / math.sqrt(HIDDEN)     # PyTorch nn.LSTM default init
    bound_fc = 1.0 / math.sqrt(HIDDEN)       # PyTorch nn.Linear default init
    return {
        "w_ih": jax.random.uniform(ks[0], (4 * HIDDEN, INPUT), jnp.float32,
                                   -bound_lstm, bound_lstm),
        "w_hh": jax.random.uniform(ks[1], (4 * HIDDEN, HIDDEN), jnp.float32,
                                   -bound_lstm, bound_lstm),
        "b_ih": jax.random.uniform(ks[2], (4 * HIDDEN,), jnp.float32,
                                   -bound_lstm, bound_lstm),
        "b_hh": jax.random.uniform(ks[3], (4 * HIDDEN,), jnp.float32,
                                   -bound_lstm, bound_lstm),
        "w_fc": jax.random.uniform(ks[4], (OUTPUT, HIDDEN), jnp.float32,
                                   -bound_fc, bound_fc),
        "b_fc": jax.random.uniform(ks[5], (OUTPUT,), jnp.float32,
                                   -bound_fc, bound_fc),
    }


if __name__ == "__main__":
    key = jax.random.PRNGKey(0)
    k_param, k_x = jax.random.split(key)
    params = init_params(k_param)
    x = jax.random.normal(k_x, (BATCH, SEQ, INPUT), dtype=jnp.float32)

    probs = lstm_forward(x, params)
    probs = jax.block_until_ready(probs)

    assert probs.shape == (BATCH, OUTPUT)
    assert bool(jnp.all(jnp.isfinite(probs)))
    # rows of softmax must sum to 1
    assert bool(jnp.all(jnp.abs(jnp.sum(probs, axis=1) - 1.0) < 1e-5))

    # correctness vs. pure-JAX f32 reference of the PyTorch forward.
    # Tolerance loosened to 2e-2 because the recurrent matmul runs single-pass
    # bf16 on the MXU (LSTM dynamics are contracting, observed error << this).
    ref = jax.block_until_ready(lstm_reference(x, params))
    assert bool(jnp.all(jnp.abs(probs - ref) < 2e-2)), (probs, ref)

    print("KERNEL_OK")
</pallas_src>

<mosaic_0001>
module attributes {stable_mosaic.version = 11 : i64} {
  func.func @lstm_fused_kernel(%arg0: memref<2x1xi32, #tpu.memory_space<vmem>>, %arg1: memref<1376x50xf32, #tpu.memory_space<vmem>>, %arg2: memref<50x128xf32, #tpu.memory_space<vmem>>, %arg3: memref<32x128xbf16, #tpu.memory_space<vmem>>, %arg4: memref<1x128xf32, #tpu.memory_space<vmem>>, %arg5: memref<32x2xf32, #tpu.memory_space<vmem>>, %arg6: memref<1x2xf32, #tpu.memory_space<vmem>>, %arg7: memref<2x2xf32, #tpu.memory_space<vmem>>, %arg8: memref<1376x128xf32, #tpu.memory_space<vmem>>) attributes {dimension_semantics = [], scalar_prefetch = 0 : i64, scratch_operands = 1 : i64, tpu.core_type = #tpu.core_type<tc>} {
    %c0 = arith.constant 0 : index
    %c0_0 = arith.constant 0 : index
    %0 = vector.load %arg1[%c0, %c0_0] : memref<1376x50xf32, #tpu.memory_space<vmem>>, vector<1376x50xf32>
    %c0_1 = arith.constant 0 : index
    %c0_2 = arith.constant 0 : index
    %1 = vector.load %arg2[%c0_1, %c0_2] : memref<50x128xf32, #tpu.memory_space<vmem>>, vector<50x128xf32>
    %cst = arith.constant dense<0.000000e+00> : vector<1376x128xf32>
    %2 = tpu.matmul %0, %1, %cst {dimension_numbers = #tpu.dot_dimension_numbers<[1], [0], [0], [1], [0, 0, 1, 1], [], []>} : vector<1376x50xf32>, vector<50x128xf32>, vector<1376x128xf32> -> vector<1376x128xf32>
    %c0_3 = arith.constant 0 : index
    %c0_4 = arith.constant 0 : index
    %3 = vector.load %arg4[%c0_3, %c0_4] : memref<1x128xf32, #tpu.memory_space<vmem>>, vector<1x128xf32>
    %4 = vector.broadcast %3 : vector<1x128xf32> to vector<1376x128xf32>
    %5 = arith.addf %2, %4 : vector<1376x128xf32>
    %c0_5 = arith.constant 0 : index
    %c0_6 = arith.constant 0 : index
    %6 = vector.load %arg8[%c0_5, %c0_6] : memref<1376x128xf32, #tpu.memory_space<vmem>>, vector<1376x128xf32>
    tpu.vector_store %arg8[%c0_5, %c0_6], %5 {strides = array<i32>} : memref<1376x128xf32, #tpu.memory_space<vmem>>, vector<1376x128xf32>,
    %c0_7 = arith.constant 0 : index
    %c0_8 = arith.constant 0 : index
    %7 = vector.load %arg3[%c0_7, %c0_8] : memref<32x128xbf16, #tpu.memory_space<vmem>>, vector<32x128xbf16>
    %c0_9 = arith.constant 0 : index
    %c0_10 = arith.constant 0 : index
    %8 = vector.load %arg0[%c0_9, %c0_10] : memref<2x1xi32, #tpu.memory_space<vmem>>, vector<2x1xi32>
    %cst_11 = arith.constant 0.000000e+00 : f32
    %9 = vector.broadcast %cst_11 : f32 to vector<2x32xf32>
    %c0_i32 = arith.constant 0 : i32
    %c43_i32 = arith.constant 43 : i32
    %10 = arith.addi %c0_i32, %c43_i32 : i32
    %c1_i32 = arith.constant 1 : i32
    %11:3 = scf.for %arg9 = %c0_i32 to %10 step %c1_i32 iter_args(%arg10 = %9, %arg11 = %9, %arg12 = %9) -> (vector<2x32xf32>, vector<2x32xf32>, vector<2x32xf32>)  : i32 {
      %c16_i32 = arith.constant 16 : i32
      %27 = arith.muli %arg9, %c16_i32 : i32
      %28 = tpu.assume_multiple %27, 16 : i32
      %c0_i32_22 = arith.constant 0 : i32
      %29 = arith.addi %28, %c0_i32_22 : i32
      %c2_i32 = arith.constant 2 : i32
      %30 = arith.muli %29, %c2_i32 : i32
      %31 = tpu.assume_multiple %30, 2 : i32
      %32 = arith.index_cast %31 : i32 to index
      %c0_23 = arith.constant 0 : index
      %33 = vector.load %arg8[%32, %c0_23] : memref<1376x128xf32, #tpu.memory_space<vmem>>, vector<2x128xf32>
      %34 = arith.truncf %arg10 : vector<2x32xf32> to vector<2x32xbf16>
      %cst_24 = arith.constant dense<0.000000e+00> : vector<2x128xf32>
      %35 = tpu.matmul %34, %7, %cst_24 {dimension_numbers = #tpu.dot_dimension_numbers<[1], [0], [0], [1], [0, 0, 1, 1], [], []>} : vector<2x32xbf16>, vector<32x128xbf16>, vector<2x128xf32> -> vector<2x128xf32>
      %36 = arith.addf %33, %35 : vector<2x128xf32>
      %37 = vector.extract_strided_slice %36 {offsets = [0, 0], sizes = [2, 96], strides = [1, 1]} : vector<2x128xf32> to vector<2x96xf32>
      %38 = arith.negf %37 : vector<2x96xf32>
      %39 = math.exp %38 : vector<2x96xf32>
      %cst_25 = arith.constant 1.000000e+00 : f32
      %40 = vector.broadcast %cst_25 : f32 to vector<2x96xf32>
      %41 = arith.addf %40, %39 : vector<2x96xf32>
      %42 = arith.divf %40, %41 : vector<2x96xf32>
      %43 = vector.extract_strided_slice %36 {offsets = [0, 96], sizes = [2, 32], strides = [1, 1]} : vector<2x128xf32> to vector<2x32xf32>
      %44 = math.tanh %43 : vector<2x32xf32>
      %45 = vector.extract_strided_slice %42 {offsets = [0, 0], sizes = [2, 32], strides = [1, 1]} : vector<2x96xf32> to vector<2x32xf32>
      %46 = vector.extract_strided_slice %42 {offsets = [0, 32], sizes = [2, 32], strides = [1, 1]} : vector<2x96xf32> to vector<2x32xf32>
      %47 = vector.extract_strided_slice %42 {offsets = [0, 64], sizes = [2, 32], strides = [1, 1]} : vector<2x96xf32> to vector<2x32xf32>
      %48 = arith.mulf %46, %arg11 : vector<2x32xf32>
      %49 = arith.mulf %45, %44 : vector<2x32xf32>
      %50 = arith.addf %48, %49 : vector<2x32xf32>
      %51 = math.tanh %50 : vector<2x32xf32>
      %52 = arith.mulf %47, %51 : vector<2x32xf32>
      %53 = vector.broadcast %29 : i32 to vector<2x1xi32>
      %54 = arith.cmpi eq, %8, %53 : vector<2x1xi32>
      %55 = vector.shape_cast %54 : vector<2x1xi1> to vector<2x1xi1>
      %56 = vector.broadcast %55 : vector<2x1xi1> to vector<2x32xi1>
      %57 = arith.select %56, %52, %arg12 : vector<2x32xi1>, vector<2x32xf32>
      %c1_i32_26 = arith.constant 1 : i32
      %58 = arith.addi %28, %c1_i32_26 : i32
      %c2_i32_27 = arith.constant 2 : i32
      %59 = arith.muli %58, %c2_i32_27 : i32
      %60 = tpu.assume_multiple %59, 2 : i32
      %61 = arith.index_cast %60 : i32 to index
      %c0_28 = arith.constant 0 : index
      %62 = vector.load %arg8[%61, %c0_28] : memref<1376x128xf32, #tpu.memory_space<vmem>>, vector<2x128xf32>
      %63 = arith.truncf %52 : vector<2x32xf32> to vector<2x32xbf16>
      %cst_29 = arith.constant dense<0.000000e+00> : vector<2x128xf32>
      %64 = tpu.matmul %63, %7, %cst_29 {dimension_numbers = #tpu.dot_dimension_numbers<[1], [0], [0], [1], [0, 0, 1, 1], [], []>} : vector<2x32xbf16>, vector<32x128xbf16>, vector<2x128xf32> -> vector<2x128xf32>
      %65 = arith.addf %62, %64 : vector<2x128xf32>
      %66 = vector.extract_strided_slice %65 {offsets = [0, 0], sizes = [2, 96], strides = [1, 1]} : vector<2x128xf32> to vector<2x96xf32>
      %67 = arith.negf %66 : vector<2x96xf32>
      %68 = math.exp %67 : vector<2x96xf32>
      %cst_30 = arith.constant 1.000000e+00 : f32
      %69 = vector.broadcast %cst_30 : f32 to vector<2x96xf32>
      %70 = arith.addf %69, %68 : vector<2x96xf32>
      %71 = arith.divf %69, %70 : vector<2x96xf32>
      %72 = vector.extract_strided_slice %65 {offsets = [0, 96], sizes = [2, 32], strides = [1, 1]} : vector<2x128xf32> to vector<2x32xf32>
      %73 = math.tanh %72 : vector<2x32xf32>
      %74 = vector.extract_strided_slice %71 {offsets = [0, 0], sizes = [2, 32], strides = [1, 1]} : vector<2x96xf32> to vector<2x32xf32>
      %75 = vector.extract_strided_slice %71 {offsets = [0, 32], sizes = [2, 32], strides = [1, 1]} : vector<2x96xf32> to vector<2x32xf32>
      %76 = vector.extract_strided_slice %71 {offsets = [0, 64], sizes = [2, 32], strides = [1, 1]} : vector<2x96xf32> to vector<2x32xf32>
      %77 = arith.mulf %75, %50 : vector<2x32xf32>
      %78 = arith.mulf %74, %73 : vector<2x32xf32>
      %79 = arith.addf %77, %78 : vector<2x32xf32>
      %80 = math.tanh %79 : vector<2x32xf32>
      %81 = arith.mulf %76, %80 : vector<2x32xf32>
      %82 = vector.broadcast %58 : i32 to vector<2x1xi32>
      %83 = arith.cmpi eq, %8, %82 : vector<2x1xi32>
      %84 = vector.shape_cast %83 : vector<2x1xi1> to vector<2x1xi1>
      %85 = vector.broadcast %84 : vector<2x1xi1> to vector<2x32xi1>
      %86 = arith.select %85, %81, %57 : vector<2x32xi1>, vector<2x32xf32>
      %c2_i32_31 = arith.constant 2 : i32
      %87 = arith.addi %28, %c2_i32_31 : i32
      %c2_i32_32 = arith.constant 2 : i32
      %88 = arith.muli %87, %c2_i32_32 : i32
      %89 = tpu.assume_multiple %88, 2 : i32
      %90 = arith.index_cast %89 : i32 to index
      %c0_33 = arith.constant 0 : index
      %91 = vector.load %arg8[%90, %c0_33] : memref<1376x128xf32, #tpu.memory_space<vmem>>, vector<2x128xf32>
      %92 = arith.truncf %81 : vector<2x32xf32> to vector<2x32xbf16>
      %cst_34 = arith.constant dense<0.000000e+00> : vector<2x128xf32>
      %93 = tpu.matmul %92, %7, %cst_34 {dimension_numbers = #tpu.dot_dimension_numbers<[1], [0], [0], [1], [0, 0, 1, 1], [], []>} : vector<2x32xbf16>, vector<32x128xbf16>, vector<2x128xf32> -> vector<2x128xf32>
      %94 = arith.addf %91, %93 : vector<2x128xf32>
      %95 = vector.extract_strided_slice %94 {offsets = [0, 0], sizes = [2, 96], strides = [1, 1]} : vector<2x128xf32> to vector<2x96xf32>
      %96 = arith.negf %95 : vector<2x96xf32>
      %97 = math.exp %96 : vector<2x96xf32>
      %cst_35 = arith.constant 1.000000e+00 : f32
      %98 = vector.broadcast %cst_35 : f32 to vector<2x96xf32>
      %99 = arith.addf %98, %97 : vector<2x96xf32>
      %100 = arith.divf %98, %99 : vector<2x96xf32>
      %101 = vector.extract_strided_slice %94 {offsets = [0, 96], sizes = [2, 32], strides = [1, 1]} : vector<2x128xf32> to vector<2x32xf32>
      %102 = math.tanh %101 : vector<2x32xf32>
      %103 = vector.extract_strided_slice %100 {offsets = [0, 0], sizes = [2, 32], strides = [1, 1]} : vector<2x96xf32> to vector<2x32xf32>
      %104 = vector.extract_strided_slice %100 {offsets = [0, 32], sizes = [2, 32], strides = [1, 1]} : vector<2x96xf32> to vector<2x32xf32>
      %105 = vector.extract_strided_slice %100 {offsets = [0, 64], sizes = [2, 32], strides = [1, 1]} : vector<2x96xf32> to vector<2x32xf32>
      %106 = arith.mulf %104, %79 : vector<2x32xf32>
      %107 = arith.mulf %103, %102 : vector<2x32xf32>
      %108 = arith.addf %106, %107 : vector<2x32xf32>
      %109 = math.tanh %108 : vector<2x32xf32>
      %110 = arith.mulf %105, %109 : vector<2x32xf32>
      %111 = vector.broadcast %87 : i32 to vector<2x1xi32>
      %112 = arith.cmpi eq, %8, %111 : vector<2x1xi32>
      %113 = vector.shape_cast %112 : vector<2x1xi1> to vector<2x1xi1>
      %114 = vector.broadcast %113 : vector<2x1xi1> to vector<2x32xi1>
      %115 = arith.select %114, %110, %86 : vector<2x32xi1>, vector<2x32xf32>
      %c3_i32 = arith.constant 3 : i32
      %116 = arith.addi %28, %c3_i32 : i32
      %c2_i32_36 = arith.constant 2 : i32
      %117 = arith.muli %116, %c2_i32_36 : i32
      %118 = tpu.assume_multiple %117, 2 : i32
      %119 = arith.index_cast %118 : i32 to index
      %c0_37 = arith.constant 0 : index
      %120 = vector.load %arg8[%119, %c0_37] : memref<1376x128xf32, #tpu.memory_space<vmem>>, vector<2x128xf32>
      %121 = arith.truncf %110 : vector<2x32xf32> to vector<2x32xbf16>
      %cst_38 = arith.constant dense<0.000000e+00> : vector<2x128xf32>
      %122 = tpu.matmul %121, %7, %cst_38 {dimension_numbers = #tpu.dot_dimension_numbers<[1], [0], [0], [1], [0, 0, 1, 1], [], []>} : vector<2x32xbf16>, vector<32x128xbf16>, vector<2x128xf32> -> vector<2x128xf32>
      %123 = arith.addf %120, %122 : vector<2x128xf32>
      %124 = vector.extract_strided_slice %123 {offsets = [0, 0], sizes = [2, 96], strides = [1, 1]} : vector<2x128xf32> to vector<2x96xf32>
      %125 = arith.negf %124 : vector<2x96xf32>
      %126 = math.exp %125 : vector<2x96xf32>
      %cst_39 = arith.constant 1.000000e+00 : f32
      %127 = vector.broadcast %cst_39 : f32 to vector<2x96xf32>
      %128 = arith.addf %127, %126 : vector<2x96xf32>
      %129 = arith.divf %127, %128 : vector<2x96xf32>
      %130 = vector.extract_strided_slice %123 {offsets = [0, 96], sizes = [2, 32], strides = [1, 1]} : vector<2x128xf32> to vector<2x32xf32>
      %131 = math.tanh %130 : vector<2x32xf32>
      %132 = vector.extract_strided_slice %129 {offsets = [0, 0], sizes = [2, 32], strides = [1, 1]} : vector<2x96xf32> to vector<2x32xf32>
      %133 = vector.extract_strided_slice %129 {offsets = [0, 32], sizes = [2, 32], strides = [1, 1]} : vector<2x96xf32> to vector<2x32xf32>
      %134 = vector.extract_strided_slice %129 {offsets = [0, 64], sizes = [2, 32], strides = [1, 1]} : vector<2x96xf32> to vector<2x32xf32>
      %135 = arith.mulf %133, %108 : vector<2x32xf32>
      %136 = arith.mulf %132, %131 : vector<2x32xf32>
      %137 = arith.addf %135, %136 : vector<2x32xf32>
      %138 = math.tanh %137 : vector<2x32xf32>
      %139 = arith.mulf %134, %138 : vector<2x32xf32>
      %140 = vector.broadcast %116 : i32 to vector<2x1xi32>
      %141 = arith.cmpi eq, %8, %140 : vector<2x1xi32>
      %142 = vector.shape_cast %141 : vector<2x1xi1> to vector<2x1xi1>
      %143 = vector.broadcast %142 : vector<2x1xi1> to vector<2x32xi1>
      %144 = arith.select %143, %139, %115 : vector<2x32xi1>, vector<2x32xf32>
      %c4_i32 = arith.constant 4 : i32
      %145 = arith.addi %28, %c4_i32 : i32
      %c2_i32_40 = arith.constant 2 : i32
      %146 = arith.muli %145, %c2_i32_40 : i32
      %147 = tpu.assume_multiple %146, 2 : i32
      %148 = arith.index_cast %147 : i32 to index
      %c0_41 = arith.constant 0 : index
      %149 = vector.load %arg8[%148, %c0_41] : memref<1376x128xf32, #tpu.memory_space<vmem>>, vector<2x128xf32>
      %150 = arith.truncf %139 : vector<2x32xf32> to vector<2x32xbf16>
      %cst_42 = arith.constant dense<0.000000e+00> : vector<2x128xf32>
      %151 = tpu.matmul %150, %7, %cst_42 {dimension_numbers = #tpu.dot_dimension_numbers<[1], [0], [0], [1], [0, 0, 1, 1], [], []>} : vector<2x32xbf16>, vector<32x128xbf16>, vector<2x128xf32> -> vector<2x128xf32>
      %152 = arith.addf %149, %151 : vector<2x128xf32>
      %153 = vector.extract_strided_slice %152 {offsets = [0, 0], sizes = [2, 96], strides = [1, 1]} : vector<2x128xf32> to vector<2x96xf32>
      %154 = arith.negf %153 : vector<2x96xf32>
      %155 = math.exp %154 : vector<2x96xf32>
      %cst_43 = arith.constant 1.000000e+00 : f32
      %156 = vector.broadcast %cst_43 : f32 to vector<2x96xf32>
      %157 = arith.addf %156, %155 : vector<2x96xf32>
      %158 = arith.divf %156, %157 : vector<2x96xf32>
      %159 = vector.extract_strided_slice %152 {offsets = [0, 96], sizes = [2, 32], strides = [1, 1]} : vector<2x128xf32> to vector<2x32xf32>
      %160 = math.tanh %159 : vector<2x32xf32>
      %161 = vector.extract_strided_slice %158 {offsets = [0, 0], sizes = [2, 32], strides = [1, 1]} : vector<2x96xf32> to vector<2x32xf32>
      %162 = vector.extract_strided_slice %158 {offsets = [0, 32], sizes = [2, 32], strides = [1, 1]} : vector<2x96xf32> to vector<2x32xf32>
      %163 = vector.extract_strided_slice %158 {offsets = [0, 64], sizes = [2, 32], strides = [1, 1]} : vector<2x96xf32> to vector<2x32xf32>
      %164 = arith.mulf %162, %137 : vector<2x32xf32>
      %165 = arith.mulf %161, %160 : vector<2x32xf32>
      %166 = arith.addf %164, %165 : vector<2x32xf32>
      %167 = math.tanh %166 : vector<2x32xf32>
      %168 = arith.mulf %163, %167 : vector<2x32xf32>
      %169 = vector.broadcast %145 : i32 to vector<2x1xi32>
      %170 = arith.cmpi eq, %8, %169 : vector<2x1xi32>
      %171 = vector.shape_cast %170 : vector<2x1xi1> to vector<2x1xi1>
      %172 = vector.broadcast %171 : vector<2x1xi1> to vector<2x32xi1>
      %173 = arith.select %172, %168, %144 : vector<2x32xi1>, vector<2x32xf32>
      %c5_i32 = arith.constant 5 : i32
      %174 = arith.addi %28, %c5_i32 : i32
      %c2_i32_44 = arith.constant 2 : i32
      %175 = arith.muli %174, %c2_i32_44 : i32
      %176 = tpu.assume_multiple %175, 2 : i32
      %177 = arith.index_cast %176 : i32 to index
      %c0_45 = arith.constant 0 : index
      %178 = vector.load %arg8[%177, %c0_45] : memref<1376x128xf32, #tpu.memory_space<vmem>>, vector<2x128xf32>
      %179 = arith.truncf %168 : vector<2x32xf32> to vector<2x32xbf16>
      %cst_46 = arith.constant dense<0.000000e+00> : vector<2x128xf32>
      %180 = tpu.matmul %179, %7, %cst_46 {dimension_numbers = #tpu.dot_dimension_numbers<[1], [0], [0], [1], [0, 0, 1, 1], [], []>} : vector<2x32xbf16>, vector<32x128xbf16>, vector<2x128xf32> -> vector<2x128xf32>
      %181 = arith.addf %178, %180 : vector<2x128xf32>
      %182 = vector.extract_strided_slice %181 {offsets = [0, 0], sizes = [2, 96], strides = [1, 1]} : vector<2x128xf32> to vector<2x96xf32>
      %183 = arith.negf %182 : vector<2x96xf32>
      %184 = math.exp %183 : vector<2x96xf32>
      %cst_47 = arith.constant 1.000000e+00 : f32
      %185 = vector.broadcast %cst_47 : f32 to vector<2x96xf32>
      %186 = arith.addf %185, %184 : vector<2x96xf32>
      %187 = arith.divf %185, %186 : vector<2x96xf32>
      %188 = vector.extract_strided_slice %181 {offsets = [0, 96], sizes = [2, 32], strides = [1, 1]} : vector<2x128xf32> to vector<2x32xf32>
      %189 = math.tanh %188 : vector<2x32xf32>
      %190 = vector.extract_strided_slice %187 {offsets = [0, 0], sizes = [2, 32], strides = [1, 1]} : vector<2x96xf32> to vector<2x32xf32>
      %191 = vector.extract_strided_slice %187 {offsets = [0, 32], sizes = [2, 32], strides = [1, 1]} : vector<2x96xf32> to vector<2x32xf32>
      %192 = vector.extract_strided_slice %187 {offsets = [0, 64], sizes = [2, 32], strides = [1, 1]} : vector<2x96xf32> to vector<2x32xf32>
      %193 = arith.mulf %191, %166 : vector<2x32xf32>
      %194 = arith.mulf %190, %189 : vector<2x32xf32>
      %195 = arith.addf %193, %194 : vector<2x32xf32>
      %196 = math.tanh %195 : vector<2x32xf32>
      %197 = arith.mulf %192, %196 : vector<2x32xf32>
      %198 = vector.broadcast %174 : i32 to vector<2x1xi32>
      %199 = arith.cmpi eq, %8, %198 : vector<2x1xi32>
      %200 = vector.shape_cast %199 : vector<2x1xi1> to vector<2x1xi1>
      %201 = vector.broadcast %200 : vector<2x1xi1> to vector<2x32xi1>
      %202 = arith.select %201, %197, %173 : vector<2x32xi1>, vector<2x32xf32>
      %c6_i32 = arith.constant 6 : i32
      %203 = arith.addi %28, %c6_i32 : i32
      %c2_i32_48 = arith.constant 2 : i32
      %204 = arith.muli %203, %c2_i32_48 : i32
      %205 = tpu.assume_multiple %204, 2 : i32
      %206 = arith.index_cast %205 : i32 to index
      %c0_49 = arith.constant 0 : index
      %207 = vector.load %arg8[%206, %c0_49] : memref<1376x128xf32, #tpu.memory_space<vmem>>, vector<2x128xf32>
      %208 = arith.truncf %197 : vector<2x32xf32> to vector<2x32xbf16>
      %cst_50 = arith.constant dense<0.000000e+00> : vector<2x128xf32>
      %209 = tpu.matmul %208, %7, %cst_50 {dimension_numbers = #tpu.dot_dimension_numbers<[1], [0], [0], [1], [0, 0, 1, 1], [], []>} : vector<2x32xbf16>, vector<32x128xbf16>, vector<2x128xf32> -> vector<2x128xf32>
      %210 = arith.addf %207, %209 : vector<2x128xf32>
      %211 = vector.extract_strided_slice %210 {offsets = [0, 0], sizes = [2, 96], strides = [1, 1]} : vector<2x128xf32> to vector<2x96xf32>
      %212 = arith.negf %211 : vector<2x96xf32>
      %213 = math.exp %212 : vector<2x96xf32>
      %cst_51 = arith.constant 1.000000e+00 : f32
      %214 = vector.broadcast %cst_51 : f32 to vector<2x96xf32>
      %215 = arith.addf %214, %213 : vector<2x96xf32>
      %216 = arith.divf %214, %215 : vector<2x96xf32>
      %217 = vector.extract_strided_slice %210 {offsets = [0, 96], sizes = [2, 32], strides = [1, 1]} : vector<2x128xf32> to vector<2x32xf32>
      %218 = math.tanh %217 : vector<2x32xf32>
      %219 = vector.extract_strided_slice %216 {offsets = [0, 0], sizes = [2, 32], strides = [1, 1]} : vector<2x96xf32> to vector<2x32xf32>
      %220 = vector.extract_strided_slice %216 {offsets = [0, 32], sizes = [2, 32], strides = [1, 1]} : vector<2x96xf32> to vector<2x32xf32>
      %221 = vector.extract_strided_slice %216 {offsets = [0, 64], sizes = [2, 32], strides = [1, 1]} : vector<2x96xf32> to vector<2x32xf32>
      %222 = arith.mulf %220, %195 : vector<2x32xf32>
      %223 = arith.mulf %219, %218 : vector<2x32xf32>
      %224 = arith.addf %222, %223 : vector<2x32xf32>
      %225 = math.tanh %224 : vector<2x32xf32>
      %226 = arith.mulf %221, %225 : vector<2x32xf32>
      %227 = vector.broadcast %203 : i32 to vector<2x1xi32>
      %228 = arith.cmpi eq, %8, %227 : vector<2x1xi32>
      %229 = vector.shape_cast %228 : vector<2x1xi1> to vector<2x1xi1>
      %230 = vector.broadcast %229 : vector<2x1xi1> to vector<2x32xi1>
      %231 = arith.select %230, %226, %202 : vector<2x32xi1>, vector<2x32xf32>
      %c7_i32 = arith.constant 7 : i32
      %232 = arith.addi %28, %c7_i32 : i32
      %c2_i32_52 = arith.constant 2 : i32
      %233 = arith.muli %232, %c2_i32_52 : i32
      %234 = tpu.assume_multiple %233, 2 : i32
      %235 = arith.index_cast %234 : i32 to index
      %c0_53 = arith.constant 0 : index
      %236 = vector.load %arg8[%235, %c0_53] : memref<1376x128xf32, #tpu.memory_space<vmem>>, vector<2x128xf32>
      %237 = arith.truncf %226 : vector<2x32xf32> to vector<2x32xbf16>
      %cst_54 = arith.constant dense<0.000000e+00> : vector<2x128xf32>
      %238 = tpu.matmul %237, %7, %cst_54 {dimension_numbers = #tpu.dot_dimension_numbers<[1], [0], [0], [1], [0, 0, 1, 1], [], []>} : vector<2x32xbf16>, vector<32x128xbf16>, vector<2x128xf32> -> vector<2x128xf32>
      %239 = arith.addf %236, %238 : vector<2x128xf32>
      %240 = vector.extract_strided_slice %239 {offsets = [0, 0], sizes = [2, 96], strides = [1, 1]} : vector<2x128xf32> to vector<2x96xf32>
      %241 = arith.negf %240 : vector<2x96xf32>
      %242 = math.exp %241 : vector<2x96xf32>
      %cst_55 = arith.constant 1.000000e+00 : f32
      %243 = vector.broadcast %cst_55 : f32 to vector<2x96xf32>
      %244 = arith.addf %243, %242 : vector<2x96xf32>
      %245 = arith.divf %243, %244 : vector<2x96xf32>
      %246 = vector.extract_strided_slice %239 {offsets = [0, 96], sizes = [2, 32], strides = [1, 1]} : vector<2x128xf32> to vector<2x32xf32>
      %247 = math.tanh %246 : vector<2x32xf32>
      %248 = vector.extract_strided_slice %245 {offsets = [0, 0], sizes = [2, 32], strides = [1, 1]} : vector<2x96xf32> to vector<2x32xf32>
      %249 = vector.extract_strided_slice %245 {offsets = [0, 32], sizes = [2, 32], strides = [1, 1]} : vector<2x96xf32> to vector<2x32xf32>
      %250 = vector.extract_strided_slice %245 {offsets = [0, 64], sizes = [2, 32], strides = [1, 1]} : vector<2x96xf32> to vector<2x32xf32>
      %251 = arith.mulf %249, %224 : vector<2x32xf32>
      %252 = arith.mulf %248, %247 : vector<2x32xf32>
      %253 = arith.addf %251, %252 : vector<2x32xf32>
      %254 = math.tanh %253 : vector<2x32xf32>
      %255 = arith.mulf %250, %254 : vector<2x32xf32>
      %256 = vector.broadcast %232 : i32 to vector<2x1xi32>
      %257 = arith.cmpi eq, %8, %256 : vector<2x1xi32>
      %258 = vector.shape_cast %257 : vector<2x1xi1> to vector<2x1xi1>
      %259 = vector.broadcast %258 : vector<2x1xi1> to vector<2x32xi1>
      %260 = arith.select %259, %255, %231 : vector<2x32xi1>, vector<2x32xf32>
      %c8_i32 = arith.constant 8 : i32
      %261 = arith.addi %28, %c8_i32 : i32
      %c2_i32_56 = arith.constant 2 : i32
      %262 = arith.muli %261, %c2_i32_56 : i32
      %263 = tpu.assume_multiple %262, 2 : i32
      %264 = arith.index_cast %263 : i32 to index
      %c0_57 = arith.constant 0 : index
      %265 = vector.load %arg8[%264, %c0_57] : memref<1376x128xf32, #tpu.memory_space<vmem>>, vector<2x128xf32>
      %266 = arith.truncf %255 : vector<2x32xf32> to vector<2x32xbf16>
      %cst_58 = arith.constant dense<0.000000e+00> : vector<2x128xf32>
      %267 = tpu.matmul %266, %7, %cst_58 {dimension_numbers = #tpu.dot_dimension_numbers<[1], [0], [0], [1], [0, 0, 1, 1], [], []>} : vector<2x32xbf16>, vector<32x128xbf16>, vector<2x128xf32> -> vector<2x128xf32>
      %268 = arith.addf %265, %267 : vector<2x128xf32>
      %269 = vector.extract_strided_slice %268 {offsets = [0, 0], sizes = [2, 96], strides = [1, 1]} : vector<2x128xf32> to vector<2x96xf32>
      %270 = arith.negf %269 : vector<2x96xf32>
      %271 = math.exp %270 : vector<2x96xf32>
      %cst_59 = arith.constant 1.000000e+00 : f32
      %272 = vector.broadcast %cst_59 : f32 to vector<2x96xf32>
      %273 = arith.addf %272, %271 : vector<2x96xf32>
      %274 = arith.divf %272, %273 : vector<2x96xf32>
      %275 = vector.extract_strided_slice %268 {offsets = [0, 96], sizes = [2, 32], strides = [1, 1]} : vector<2x128xf32> to vector<2x32xf32>
      %276 = math.tanh %275 : vector<2x32xf32>
      %277 = vector.extract_strided_slice %274 {offsets = [0, 0], sizes = [2, 32], strides = [1, 1]} : vector<2x96xf32> to vector<2x32xf32>
      %278 = vector.extract_strided_slice %274 {offsets = [0, 32], sizes = [2, 32], strides = [1, 1]} : vector<2x96xf32> to vector<2x32xf32>
      %279 = vector.extract_strided_slice %274 {offsets = [0, 64], sizes = [2, 32], strides = [1, 1]} : vector<2x96xf32> to vector<2x32xf32>
      %280 = arith.mulf %278, %253 : vector<2x32xf32>
      %281 = arith.mulf %277, %276 : vector<2x32xf32>
      %282 = arith.addf %280, %281 : vector<2x32xf32>
      %283 = math.tanh %282 : vector<2x32xf32>
      %284 = arith.mulf %279, %283 : vector<2x32xf32>
      %285 = vector.broadcast %261 : i32 to vector<2x1xi32>
      %286 = arith.cmpi eq, %8, %285 : vector<2x1xi32>
      %287 = vector.shape_cast %286 : vector<2x1xi1> to vector<2x1xi1>
      %288 = vector.broadcast %287 : vector<2x1xi1> to vector<2x32xi1>
      %289 = arith.select %288, %284, %260 : vector<2x32xi1>, vector<2x32xf32>
      %c9_i32 = arith.constant 9 : i32
      %290 = arith.addi %28, %c9_i32 : i32
      %c2_i32_60 = arith.constant 2 : i32
      %291 = arith.muli %290, %c2_i32_60 : i32
      %292 = tpu.assume_multiple %291, 2 : i32
      %293 = arith.index_cast %292 : i32 to index
      %c0_61 = arith.constant 0 : index
      %294 = vector.load %arg8[%293, %c0_61] : memref<1376x128xf32, #tpu.memory_space<vmem>>, vector<2x128xf32>
      %295 = arith.truncf %284 : vector<2x32xf32> to vector<2x32xbf16>
      %cst_62 = arith.constant dense<0.000000e+00> : vector<2x128xf32>
      %296 = tpu.matmul %295, %7, %cst_62 {dimension_numbers = #tpu.dot_dimension_numbers<[1], [0], [0], [1], [0, 0, 1, 1], [], []>} : vector<2x32xbf16>, vector<32x128xbf16>, vector<2x128xf32> -> vector<2x128xf32>
      %297 = arith.addf %294, %296 : vector<2x128xf32>
      %298 = vector.extract_strided_slice %297 {offsets = [0, 0], sizes = [2, 96], strides = [1, 1]} : vector<2x128xf32> to vector<2x96xf32>
      %299 = arith.negf %298 : vector<2x96xf32>
      %300 = math.exp %299 : vector<2x96xf32>
      %cst_63 = arith.constant 1.000000e+00 : f32
      %301 = vector.broadcast %cst_63 : f32 to vector<2x96xf32>
      %302 = arith.addf %301, %300 : vector<2x96xf32>
      %303 = arith.divf %301, %302 : vector<2x96xf32>
      %304 = vector.extract_strided_slice %297 {offsets = [0, 96], sizes = [2, 32], strides = [1, 1]} : vector<2x128xf32> to vector<2x32xf32>
      %305 = math.tanh %304 : vector<2x32xf32>
      %306 = vector.extract_strided_slice %303 {offsets = [0, 0], sizes = [2, 32], strides = [1, 1]} : vector<2x96xf32> to vector<2x32xf32>
      %307 = vector.extract_strided_slice %303 {offsets = [0, 32], sizes = [2, 32], strides = [1, 1]} : vector<2x96xf32> to vector<2x32xf32>
      %308 = vector.extract_strided_slice %303 {offsets = [0, 64], sizes = [2, 32], strides = [1, 1]} : vector<2x96xf32> to vector<2x32xf32>
      %309 = arith.mulf %307, %282 : vector<2x32xf32>
      %310 = arith.mulf %306, %305 : vector<2x32xf32>
      %311 = arith.addf %309, %310 : vector<2x32xf32>
      %312 = math.tanh %311 : vector<2x32xf32>
      %313 = arith.mulf %308, %312 : vector<2x32xf32>
      %314 = vector.broadcast %290 : i32 to vector<2x1xi32>
      %315 = arith.cmpi eq, %8, %314 : vector<2x1xi32>
      %316 = vector.shape_cast %315 : vector<2x1xi1> to vector<2x1xi1>
      %317 = vector.broadcast %316 : vector<2x1xi1> to vector<2x32xi1>
      %318 = arith.select %317, %313, %289 : vector<2x32xi1>, vector<2x32xf32>
      %c10_i32 = arith.constant 10 : i32
      %319 = arith.addi %28, %c10_i32 : i32
      %c2_i32_64 = arith.constant 2 : i32
      %320 = arith.muli %319, %c2_i32_64 : i32
      %321 = tpu.assume_multiple %320, 2 : i32
      %322 = arith.index_cast %321 : i32 to index
      %c0_65 = arith.constant 0 : index
      %323 = vector.load %arg8[%322, %c0_65] : memref<1376x128xf32, #tpu.memory_space<vmem>>, vector<2x128xf32>
      %324 = arith.truncf %313 : vector<2x32xf32> to vector<2x32xbf16>
      %cst_66 = arith.constant dense<0.000000e+00> : vector<2x128xf32>
      %325 = tpu.matmul %324, %7, %cst_66 {dimension_numbers = #tpu.dot_dimension_numbers<[1], [0], [0], [1], [0, 0, 1, 1], [], []>} : vector<2x32xbf16>, vector<32x128xbf16>, vector<2x128xf32> -> vector<2x128xf32>
      %326 = arith.addf %323, %325 : vector<2x128xf32>
      %327 = vector.extract_strided_slice %326 {offsets = [0, 0], sizes = [2, 96], strides = [1, 1]} : vector<2x128xf32> to vector<2x96xf32>
      %328 = arith.negf %327 : vector<2x96xf32>
      %329 = math.exp %328 : vector<2x96xf32>
      %cst_67 = arith.constant 1.000000e+00 : f32
      %330 = vector.broadcast %cst_67 : f32 to vector<2x96xf32>
      %331 = arith.addf %330, %329 : vector<2x96xf32>
      %332 = arith.divf %330, %331 : vector<2x96xf32>
      %333 = vector.extract_strided_slice %326 {offsets = [0, 96], sizes = [2, 32], strides = [1, 1]} : vector<2x128xf32> to vector<2x32xf32>
      %334 = math.tanh %333 : vector<2x32xf32>
      %335 = vector.extract_strided_slice %332 {offsets = [0, 0], sizes = [2, 32], strides = [1, 1]} : vector<2x96xf32> to vector<2x32xf32>
      %336 = vector.extract_strided_slice %332 {offsets = [0, 32], sizes = [2, 32], strides = [1, 1]} : vector<2x96xf32> to vector<2x32xf32>
      %337 = vector.extract_strided_slice %332 {offsets = [0, 64], sizes = [2, 32], strides = [1, 1]} : vector<2x96xf32> to vector<2x32xf32>
      %338 = arith.mulf %336, %311 : vector<2x32xf32>
      %339 = arith.mulf %335, %334 : vector<2x32xf32>
      %340 = arith.addf %338, %339 : vector<2x32xf32>
      %341 = math.tanh %340 : vector<2x32xf32>
      %342 = arith.mulf %337, %341 : vector<2x32xf32>
      %343 = vector.broadcast %319 : i32 to vector<2x1xi32>
      %344 = arith.cmpi eq, %8, %343 : vector<2x1xi32>
      %345 = vector.shape_cast %344 : vector<2x1xi1> to vector<2x1xi1>
      %346 = vector.broadcast %345 : vector<2x1xi1> to vector<2x32xi1>
      %347 = arith.select %346, %342, %318 : vector<2x32xi1>, vector<2x32xf32>
      %c11_i32 = arith.constant 11 : i32
      %348 = arith.addi %28, %c11_i32 : i32
      %c2_i32_68 = arith.constant 2 : i32
      %349 = arith.muli %348, %c2_i32_68 : i32
      %350 = tpu.assume_multiple %349, 2 : i32
      %351 = arith.index_cast %350 : i32 to index
      %c0_69 = arith.constant 0 : index
      %352 = vector.load %arg8[%351, %c0_69] : memref<1376x128xf32, #tpu.memory_space<vmem>>, vector<2x128xf32>
      %353 = arith.truncf %342 : vector<2x32xf32> to vector<2x32xbf16>
      %cst_70 = arith.constant dense<0.000000e+00> : vector<2x128xf32>
      %354 = tpu.matmul %353, %7, %cst_70 {dimension_numbers = #tpu.dot_dimension_numbers<[1], [0], [0], [1], [0, 0, 1, 1], [], []>} : vector<2x32xbf16>, vector<32x128xbf16>, vector<2x128xf32> -> vector<2x128xf32>
      %355 = arith.addf %352, %354 : vector<2x128xf32>
      %356 = vector.extract_strided_slice %355 {offsets = [0, 0], sizes = [2, 96], strides = [1, 1]} : vector<2x128xf32> to vector<2x96xf32>
      %357 = arith.negf %356 : vector<2x96xf32>
      %358 = math.exp %357 : vector<2x96xf32>
      %cst_71 = arith.constant 1.000000e+00 : f32
      %359 = vector.broadcast %cst_71 : f32 to vector<2x96xf32>
      %360 = arith.addf %359, %358 : vector<2x96xf32>
      %361 = arith.divf %359, %360 : vector<2x96xf32>
      %362 = vector.extract_strided_slice %355 {offsets = [0, 96], sizes = [2, 32], strides = [1, 1]} : vector<2x128xf32> to vector<2x32xf32>
      %363 = math.tanh %362 : vector<2x32xf32>
      %364 = vector.extract_strided_slice %361 {offsets = [0, 0], sizes = [2, 32], strides = [1, 1]} : vector<2x96xf32> to vector<2x32xf32>
      %365 = vector.extract_strided_slice %361 {offsets = [0, 32], sizes = [2, 32], strides = [1, 1]} : vector<2x96xf32> to vector<2x32xf32>
      %366 = vector.extract_strided_slice %361 {offsets = [0, 64], sizes = [2, 32], strides = [1, 1]} : vector<2x96xf32> to vector<2x32xf32>
      %367 = arith.mulf %365, %340 : vector<2x32xf32>
      %368 = arith.mulf %364, %363 : vector<2x32xf32>
      %369 = arith.addf %367, %368 : vector<2x32xf32>
      %370 = math.tanh %369 : vector<2x32xf32>
      %371 = arith.mulf %366, %370 : vector<2x32xf32>
      %372 = vector.broadcast %348 : i32 to vector<2x1xi32>
      %373 = arith.cmpi eq, %8, %372 : vector<2x1xi32>
      %374 = vector.shape_cast %373 : vector<2x1xi1> to vector<2x1xi1>
      %375 = vector.broadcast %374 : vector<2x1xi1> to vector<2x32xi1>
      %376 = arith.select %375, %371, %347 : vector<2x32xi1>, vector<2x32xf32>
      %c12_i32 = arith.constant 12 : i32
      %377 = arith.addi %28, %c12_i32 : i32
      %c2_i32_72 = arith.constant 2 : i32
      %378 = arith.muli %377, %c2_i32_72 : i32
      %379 = tpu.assume_multiple %378, 2 : i32
      %380 = arith.index_cast %379 : i32 to index
      %c0_73 = arith.constant 0 : index
      %381 = vector.load %arg8[%380, %c0_73] : memref<1376x128xf32, #tpu.memory_space<vmem>>, vector<2x128xf32>
      %382 = arith.truncf %371 : vector<2x32xf32> to vector<2x32xbf16>
      %cst_74 = arith.constant dense<0.000000e+00> : vector<2x128xf32>
      %383 = tpu.matmul %382, %7, %cst_74 {dimension_numbers = #tpu.dot_dimension_numbers<[1], [0], [0], [1], [0, 0, 1, 1], [], []>} : vector<2x32xbf16>, vector<32x128xbf16>, vector<2x128xf32> -> vector<2x128xf32>
      %384 = arith.addf %381, %383 : vector<2x128xf32>
      %385 = vector.extract_strided_slice %384 {offsets = [0, 0], sizes = [2, 96], strides = [1, 1]} : vector<2x128xf32> to vector<2x96xf32>
      %386 = arith.negf %385 : vector<2x96xf32>
      %387 = math.exp %386 : vector<2x96xf32>
      %cst_75 = arith.constant 1.000000e+00 : f32
      %388 = vector.broadcast %cst_75 : f32 to vector<2x96xf32>
      %389 = arith.addf %388, %387 : vector<2x96xf32>
      %390 = arith.divf %388, %389 : vector<2x96xf32>
      %391 = vector.extract_strided_slice %384 {offsets = [0, 96], sizes = [2, 32], strides = [1, 1]} : vector<2x128xf32> to vector<2x32xf32>
      %392 = math.tanh %391 : vector<2x32xf32>
      %393 = vector.extract_strided_slice %390 {offsets = [0, 0], sizes = [2, 32], strides = [1, 1]} : vector<2x96xf32> to vector<2x32xf32>
      %394 = vector.extract_strided_slice %390 {offsets = [0, 32], sizes = [2, 32], strides = [1, 1]} : vector<2x96xf32> to vector<2x32xf32>
      %395 = vector.extract_strided_slice %390 {offsets = [0, 64], sizes = [2, 32], strides = [1, 1]} : vector<2x96xf32> to vector<2x32xf32>
      %396 = arith.mulf %394, %369 : vector<2x32xf32>
      %397 = arith.mulf %393, %392 : vector<2x32xf32>
      %398 = arith.addf %396, %397 : vector<2x32xf32>
      %399 = math.tanh %398 : vector<2x32xf32>
      %400 = arith.mulf %395, %399 : vector<2x32xf32>
      %401 = vector.broadcast %377 : i32 to vector<2x1xi32>
      %402 = arith.cmpi eq, %8, %401 : vector<2x1xi32>
      %403 = vector.shape_cast %402 : vector<2x1xi1> to vector<2x1xi1>
      %404 = vector.broadcast %403 : vector<2x1xi1> to vector<2x32xi1>
      %405 = arith.select %404, %400, %376 : vector<2x32xi1>, vector<2x32xf32>
      %c13_i32 = arith.constant 13 : i32
      %406 = arith.addi %28, %c13_i32 : i32
      %c2_i32_76 = arith.constant 2 : i32
      %407 = arith.muli %406, %c2_i32_76 : i32
      %408 = tpu.assume_multiple %407, 2 : i32
      %409 = arith.index_cast %408 : i32 to index
      %c0_77 = arith.constant 0 : index
      %410 = vector.load %arg8[%409, %c0_77] : memref<1376x128xf32, #tpu.memory_space<vmem>>, vector<2x128xf32>
      %411 = arith.truncf %400 : vector<2x32xf32> to vector<2x32xbf16>
      %cst_78 = arith.constant dense<0.000000e+00> : vector<2x128xf32>
      %412 = tpu.matmul %411, %7, %cst_78 {dimension_numbers = #tpu.dot_dimension_numbers<[1], [0], [0], [1], [0, 0, 1, 1], [], []>} : vector<2x32xbf16>, vector<32x128xbf16>, vector<2x128xf32> -> vector<2x128xf32>
      %413 = arith.addf %410, %412 : vector<2x128xf32>
      %414 = vector.extract_strided_slice %413 {offsets = [0, 0], sizes = [2, 96], strides = [1, 1]} : vector<2x128xf32> to vector<2x96xf32>
      %415 = arith.negf %414 : vector<2x96xf32>
      %416 = math.exp %415 : vector<2x96xf32>
      %cst_79 = arith.constant 1.000000e+00 : f32
      %417 = vector.broadcast %cst_79 : f32 to vector<2x96xf32>
      %418 = arith.addf %417, %416 : vector<2x96xf32>
      %419 = arith.divf %417, %418 : vector<2x96xf32>
      %420 = vector.extract_strided_slice %413 {offsets = [0, 96], sizes = [2, 32], strides = [1, 1]} : vector<2x128xf32> to vector<2x32xf32>
      %421 = math.tanh %420 : vector<2x32xf32>
      %422 = vector.extract_strided_slice %419 {offsets = [0, 0], sizes = [2, 32], strides = [1, 1]} : vector<2x96xf32> to vector<2x32xf32>
      %423 = vector.extract_strided_slice %419 {offsets = [0, 32], sizes = [2, 32], strides = [1, 1]} : vector<2x96xf32> to vector<2x32xf32>
      %424 = vector.extract_strided_slice %419 {offsets = [0, 64], sizes = [2, 32], strides = [1, 1]} : vector<2x96xf32> to vector<2x32xf32>
      %425 = arith.mulf %423, %398 : vector<2x32xf32>
      %426 = arith.mulf %422, %421 : vector<2x32xf32>
      %427 = arith.addf %425, %426 : vector<2x32xf32>
      %428 = math.tanh %427 : vector<2x32xf32>
      %429 = arith.mulf %424, %428 : vector<2x32xf32>
      %430 = vector.broadcast %406 : i32 to vector<2x1xi32>
      %431 = arith.cmpi eq, %8, %430 : vector<2x1xi32>
      %432 = vector.shape_cast %431 : vector<2x1xi1> to vector<2x1xi1>
      %433 = vector.broadcast %432 : vector<2x1xi1> to vector<2x32xi1>
      %434 = arith.select %433, %429, %405 : vector<2x32xi1>, vector<2x32xf32>
      %c14_i32 = arith.constant 14 : i32
      %435 = arith.addi %28, %c14_i32 : i32
      %c2_i32_80 = arith.constant 2 : i32
      %436 = arith.muli %435, %c2_i32_80 : i32
      %437 = tpu.assume_multiple %436, 2 : i32
      %438 = arith.index_cast %437 : i32 to index
      %c0_81 = arith.constant 0 : index
      %439 = vector.load %arg8[%438, %c0_81] : memref<1376x128xf32, #tpu.memory_space<vmem>>, vector<2x128xf32>
      %440 = arith.truncf %429 : vector<2x32xf32> to vector<2x32xbf16>
      %cst_82 = arith.constant dense<0.000000e+00> : vector<2x128xf32>
      %441 = tpu.matmul %440, %7, %cst_82 {dimension_numbers = #tpu.dot_dimension_numbers<[1], [0], [0], [1], [0, 0, 1, 1], [], []>} : vector<2x32xbf16>, vector<32x128xbf16>, vector<2x128xf32> -> vector<2x128xf32>
      %442 = arith.addf %439, %441 : vector<2x128xf32>
      %443 = vector.extract_strided_slice %442 {offsets = [0, 0], sizes = [2, 96], strides = [1, 1]} : vector<2x128xf32> to vector<2x96xf32>
      %444 = arith.negf %443 : vector<2x96xf32>
      %445 = math.exp %444 : vector<2x96xf32>
      %cst_83 = arith.constant 1.000000e+00 : f32
      %446 = vector.broadcast %cst_83 : f32 to vector<2x96xf32>
      %447 = arith.addf %446, %445 : vector<2x96xf32>
      %448 = arith.divf %446, %447 : vector<2x96xf32>
      %449 = vector.extract_strided_slice %442 {offsets = [0, 96], sizes = [2, 32], strides = [1, 1]} : vector<2x128xf32> to vector<2x32xf32>
      %450 = math.tanh %449 : vector<2x32xf32>
      %451 = vector.extract_strided_slice %448 {offsets = [0, 0], sizes = [2, 32], strides = [1, 1]} : vector<2x96xf32> to vector<2x32xf32>
      %452 = vector.extract_strided_slice %448 {offsets = [0, 32], sizes = [2, 32], strides = [1, 1]} : vector<2x96xf32> to vector<2x32xf32>
      %453 = vector.extract_strided_slice %448 {offsets = [0, 64], sizes = [2, 32], strides = [1, 1]} : vector<2x96xf32> to vector<2x32xf32>
      %454 = arith.mulf %452, %427 : vector<2x32xf32>
      %455 = arith.mulf %451, %450 : vector<2x32xf32>
      %456 = arith.addf %454, %455 : vector<2x32xf32>
      %457 = math.tanh %456 : vector<2x32xf32>
      %458 = arith.mulf %453, %457 : vector<2x32xf32>
      %459 = vector.broadcast %435 : i32 to vector<2x1xi32>
      %460 = arith.cmpi eq, %8, %459 : vector<2x1xi32>
      %461 = vector.shape_cast %460 : vector<2x1xi1> to vector<2x1xi1>
      %462 = vector.broadcast %461 : vector<2x1xi1> to vector<2x32xi1>
      %463 = arith.select %462, %458, %434 : vector<2x32xi1>, vector<2x32xf32>
      %c15_i32 = arith.constant 15 : i32
      %464 = arith.addi %28, %c15_i32 : i32
      %c2_i32_84 = arith.constant 2 : i32
      %465 = arith.muli %464, %c2_i32_84 : i32
      %466 = tpu.assume_multiple %465, 2 : i32
      %467 = arith.index_cast %466 : i32 to index
      %c0_85 = arith.constant 0 : index
      %468 = vector.load %arg8[%467, %c0_85] : memref<1376x128xf32, #tpu.memory_space<vmem>>, vector<2x128xf32>
      %469 = arith.truncf %458 : vector<2x32xf32> to vector<2x32xbf16>
      %cst_86 = arith.constant dense<0.000000e+00> : vector<2x128xf32>
      %470 = tpu.matmul %469, %7, %cst_86 {dimension_numbers = #tpu.dot_dimension_numbers<[1], [0], [0], [1], [0, 0, 1, 1], [], []>} : vector<2x32xbf16>, vector<32x128xbf16>, vector<2x128xf32> -> vector<2x128xf32>
      %471 = arith.addf %468, %470 : vector<2x128xf32>
      %472 = vector.extract_strided_slice %471 {offsets = [0, 0], sizes = [2, 96], strides = [1, 1]} : vector<2x128xf32> to vector<2x96xf32>
      %473 = arith.negf %472 : vector<2x96xf32>
      %474 = math.exp %473 : vector<2x96xf32>
      %cst_87 = arith.constant 1.000000e+00 : f32
      %475 = vector.broadcast %cst_87 : f32 to vector<2x96xf32>
      %476 = arith.addf %475, %474 : vector<2x96xf32>
      %477 = arith.divf %475, %476 : vector<2x96xf32>
      %478 = vector.extract_strided_slice %471 {offsets = [0, 96], sizes = [2, 32], strides = [1, 1]} : vector<2x128xf32> to vector<2x32xf32>
      %479 = math.tanh %478 : vector<2x32xf32>
      %480 = vector.extract_strided_slice %477 {offsets = [0, 0], sizes = [2, 32], strides = [1, 1]} : vector<2x96xf32> to vector<2x32xf32>
      %481 = vector.extract_strided_slice %477 {offsets = [0, 32], sizes = [2, 32], strides = [1, 1]} : vector<2x96xf32> to vector<2x32xf32>
      %482 = vector.extract_strided_slice %477 {offsets = [0, 64], sizes = [2, 32], strides = [1, 1]} : vector<2x96xf32> to vector<2x32xf32>
      %483 = arith.mulf %481, %456 : vector<2x32xf32>
      %484 = arith.mulf %480, %479 : vector<2x32xf32>
      %485 = arith.addf %483, %484 : vector<2x32xf32>
      %486 = math.tanh %485 : vector<2x32xf32>
      %487 = arith.mulf %482, %486 : vector<2x32xf32>
      %488 = vector.broadcast %464 : i32 to vector<2x1xi32>
      %489 = arith.cmpi eq, %8, %488 : vector<2x1xi32>
      %490 = vector.shape_cast %489 : vector<2x1xi1> to vector<2x1xi1>
      %491 = vector.broadcast %490 : vector<2x1xi1> to vector<2x32xi1>
      %492 = arith.select %491, %487, %463 : vector<2x32xi1>, vector<2x32xf32>
      scf.yield %487, %485, %492 : vector<2x32xf32>, vector<2x32xf32>, vector<2x32xf32>
    }
    %c43_i32_12 = arith.constant 43 : i32
    %c0_13 = arith.constant 0 : index
    %c0_14 = arith.constant 0 : index
    %12 = vector.load %arg5[%c0_13, %c0_14] : memref<32x2xf32, #tpu.memory_space<vmem>>, vector<32x2xf32>
    %cst_15 = arith.constant dense<0.000000e+00> : vector<2x2xf32>
    %13 = tpu.matmul %11#2, %12, %cst_15 {dimension_numbers = #tpu.dot_dimension_numbers<[1], [0], [0], [1], [0, 0, 1, 1], [], []>} : vector<2x32xf32>, vector<32x2xf32>, vector<2x2xf32> -> vector<2x2xf32>
    %c0_16 = arith.constant 0 : index
    %c0_17 = arith.constant 0 : index
    %14 = vector.load %arg6[%c0_16, %c0_17] : memref<1x2xf32, #tpu.memory_space<vmem>>, vector<1x2xf32>
    %15 = vector.broadcast %14 : vector<1x2xf32> to vector<2x2xf32>
    %16 = arith.addf %13, %15 : vector<2x2xf32>
    %cst_18 = arith.constant dense<0xFF800000> : vector<2xf32>
    %17 = vector.multi_reduction <maximumf>, %16, %cst_18 [1] : vector<2x2xf32> to vector<2xf32>
    %18 = vector.shape_cast %17 : vector<2xf32> to vector<2x1xf32>
    %19 = vector.broadcast %18 : vector<2x1xf32> to vector<2x2xf32>
    %20 = arith.subf %16, %19 : vector<2x2xf32>
    %21 = math.exp %20 : vector<2x2xf32>
    %cst_19 = arith.constant dense<0.000000e+00> : vector<2xf32>
    %22 = vector.multi_reduction <add>, %21, %cst_19 [1] : vector<2x2xf32> to vector<2xf32>
    %23 = vector.shape_cast %22 : vector<2xf32> to vector<2x1xf32>
    %24 = vector.broadcast %23 : vector<2x1xf32> to vector<2x2xf32>
    %25 = arith.divf %21, %24 : vector<2x2xf32>
    %c0_20 = arith.constant 0 : index
    %c0_21 = arith.constant 0 : index
    %26 = vector.load %arg7[%c0_20, %c0_21] : memref<2x2xf32, #tpu.memory_space<vmem>>, vector<2x2xf32>
    tpu.vector_store %arg7[%c0_20, %c0_21], %25 {strides = array<i32>} : memref<2x2xf32, #tpu.memory_space<vmem>>, vector<2x2xf32>,
    return
  }
}

</mosaic_0001>

<llo_original>
// kernel: lstm_forward.1
$region0: #{lstm_forward.1}
  #allocation0 [shape = 'u32[]', space=smem, size = 0x4, offset = 0x4, fixed_abs, tag = 'smem constant byte address 0x4 - core index']
  #allocation1 [shape = 'u32[144,128]{1,0:T(1,128)}', space=vmem, size = 0x12000, scoped, tag = 'internal scratch']
  #allocation2 [shape = 'f32[1376,128]{1,0:T(8,128)}', space=vmem, size = 0xac000, scoped, tag = 'scratch operand']
  %s0 = inlined_call_operand.vmem [shape: s32[2,1], index: 0, kind: input, shape index: {}]
  %s1 = inlined_call_operand.vmem [shape: f32[1376,50], index: 1, kind: input, shape index: {}]
  %s2 = inlined_call_operand.vmem [shape: f32[50,128], index: 2, kind: input, shape index: {}]
  %s3 = inlined_call_operand.vmem [shape: bf16[32,128], index: 3, kind: input, shape index: {}]
  %s4 = inlined_call_operand.vmem [shape: f32[1,128], index: 4, kind: input, shape index: {}]
  %s5 = inlined_call_operand.vmem [shape: f32[32,2], index: 5, kind: input, shape index: {}]
  %s6 = inlined_call_operand.vmem [shape: f32[1,2], index: 6, kind: input, shape index: {}]
  %s7 = inlined_call_operand.hbm [shape: f32[2,2], index: 7, kind: output, shape index: {}]
  %s8 = sld [smem:[#allocation0]]
  $region45: #{lstm_forward.1} parent=0
    _
  %s10 = ssub.s32 1, %s8
  %s11 = scalar_select 0, %s10, %s8
  $region1: #{lstm_forward.1} parent=0
    #allocation3 [shape = 'u8[1024]{0}', space=vmem, size = 0x400, scoped, tag = 'output window, operand 0, single buffered']
    #allocation4 [shape = 's32[1]{0}', space=sflag, size = 0x4, scoped, tag = 'scoped memory for lstm_forward.1']
    %12 = vsyncpa [#allocation4], 0
    // Predicated region
    $region2: #{lstm_forward.1} parent=1 // pred_check
      _
    $region3: #{lstm_forward.1} parent=1 // pred_check_branch
      %14 = sbr.rel (0) target = $region5
    $region4: #{lstm_forward.1} parent=1 // pred_region
      _
    $region5: #{lstm_forward.1} parent=1 // pred_fallthru
      _
    // Predicated region
    $region6: #{lstm_forward.1} parent=1 // pred_check
      _
    $region7: #{lstm_forward.1} parent=1 // pred_check_branch
      %16 = sbr.rel (0) target = $region9
    $region8: #{lstm_forward.1} parent=1 // pred_region
      _
    $region9: #{lstm_forward.1} parent=1 // pred_fallthru
      _
    // Predicated region
    $region10: #{lstm_forward.1} parent=1 // pred_check
      _
    $region11: #{lstm_forward.1} parent=1 // pred_check_branch
      %18 = sbr.rel (0) target = $region13
    $region12: #{lstm_forward.1} parent=1 // pred_region
      _
    $region13: #{lstm_forward.1} parent=1 // pred_fallthru
      _
    // Predicated region
    $region14: #{lstm_forward.1} parent=1 // pred_check
      _
    $region15: #{lstm_forward.1} parent=1 // pred_check_branch
      %20 = sbr.rel (0) target = $region17
    $region16: #{lstm_forward.1} parent=1 // pred_region
      _
    $region17: #{lstm_forward.1} parent=1 // pred_fallthru
      _
    // Predicated region
    $region18: #{lstm_forward.1} parent=1 // pred_check
      _
    $region19: #{lstm_forward.1} parent=1 // pred_check_branch
      %22 = sbr.rel (0) target = $region21
    $region20: #{lstm_forward.1} parent=1 // pred_region
      _
    $region21: #{lstm_forward.1} parent=1 // pred_fallthru
      _
    // Predicated region
    $region22: #{lstm_forward.1} parent=1 // pred_check
      _
    $region23: #{lstm_forward.1} parent=1 // pred_check_branch
      %24 = sbr.rel (0) target = $region25
    $region24: #{lstm_forward.1} parent=1 // pred_region
      _
    $region25: #{lstm_forward.1} parent=1 // pred_fallthru
      _
    // Predicated region
    $region26: #{lstm_forward.1} parent=1 // pred_check
      _
    $region27: #{lstm_forward.1} parent=1 // pred_check_branch
      %26 = sbr.rel (0) target = $region29
    $region28: #{lstm_forward.1} parent=1 // pred_region
      _
    $region29: #{lstm_forward.1} parent=1 // pred_fallthru
      _
    %v28 = vld [vmem:[%s1] sm:$0xff]
    %v29 = vld [vmem:[%s1 + $0x8] sm:$0xff]
    %v30 = vld [vmem:[%s1 + $0x10] sm:$0xff]
    %v31 = vld [vmem:[%s1 + $0x18] sm:$0xff]
    %v32 = vld [vmem:[%s1 + $0x20] sm:$0xff]
    %v33 = vld [vmem:[%s1 + $0x28] sm:$0xff]
    %v34 = vld [vmem:[%s1 + $0x30] sm:$0xff]
    %v35 = vld [vmem:[%s1 + $0x38] sm:$0xff]
    %v36 = vld [vmem:[%s1 + $0x40] sm:$0xff]
    %v37 = vld [vmem:[%s1 + $0x48] sm:$0xff]
    %v38 = vld [vmem:[%s1 + $0x50] sm:$0xff]
    %v39 = vld [vmem:[%s1 + $0x58] sm:$0xff]
    %v40 = vld [vmem:[%s1 + $0x60] sm:$0xff]
    %v41 = vld [vmem:[%s1 + $0x68] sm:$0xff]
    %v42 = vld [vmem:[%s1 + $0x70] sm:$0xff]
    %v43 = vld [vmem:[%s1 + $0x78] sm:$0xff]
    %v44 = vld [vmem:[%s1 + $0x80] sm:$0xff]
    %v45 = vld [vmem:[%s1 + $0x88] sm:$0xff]
    %v46 = vld [vmem:[%s1 + $0x90] sm:$0xff]
    %v47 = vld [vmem:[%s1 + $0x98] sm:$0xff]
    %v48 = vld [vmem:[%s1 + $0xa0] sm:$0xff]
    %v49 = vld [vmem:[%s1 + $0xa8] sm:$0xff]
    %v50 = vld [vmem:[%s1 + $0xb0] sm:$0xff]
    %v51 = vld [vmem:[%s1 + $0xb8] sm:$0xff]
    %v52 = vld [vmem:[%s1 + $0xc0] sm:$0xff]
    %v53 = vld [vmem:[%s1 + $0xc8] sm:$0xff]
    %v54 = vld [vmem:[%s1 + $0xd0] sm:$0xff]
    %v55 = vld [vmem:[%s1 + $0xd8] sm:$0xff]
    %v56 = vld [vmem:[%s1 + $0xe0] sm:$0xff]
    %v57 = vld [vmem:[%s1 + $0xe8] sm:$0xff]
    %v58 = vld [vmem:[%s1 + $0xf0] sm:$0xff]
    %v59 = vld [vmem:[%s1 + $0xf8] sm:$0xff]
    %v60 = vld [vmem:[%s1 + $0x100] sm:$0xff]
    %v61 = vld [vmem:[%s1 + $0x108] sm:$0xff]
    %v62 = vld [vmem:[%s1 + $0x110] sm:$0xff]
    %v63 = vld [vmem:[%s1 + $0x118] sm:$0xff]
    %v64 = vld [vmem:[%s1 + $0x120] sm:$0xff]
    %v65 = vld [vmem:[%s1 + $0x128] sm:$0xff]
    %v66 = vld [vmem:[%s1 + $0x130] sm:$0xff]
    %v67 = vld [vmem:[%s1 + $0x138] sm:$0xff]
    %v68 = vld [vmem:[%s1 + $0x140] sm:$0xff]
    %v69 = vld [vmem:[%s1 + $0x148] sm:$0xff]
    %v70 = vld [vmem:[%s1 + $0x150] sm:$0xff]
    %v71 = vld [vmem:[%s1 + $0x158] sm:$0xff]
    %v72 = vld [vmem:[%s1 + $0x160] sm:$0xff]
    %v73 = vld [vmem:[%s1 + $0x168] sm:$0xff]
    %v74 = vld [vmem:[%s1 + $0x170] sm:$0xff]
    %v75 = vld [vmem:[%s1 + $0x178] sm:$0xff]
    %v76 = vld [vmem:[%s1 + $0x180] sm:$0xff]
    %v77 = vld [vmem:[%s1 + $0x188] sm:$0xff]
    %v78 = vld [vmem:[%s1 + $0x190] sm:$0xff]
    %v79 = vld [vmem:[%s1 + $0x198] sm:$0xff]
    %v80 = vld [vmem:[%s1 + $0x1a0] sm:$0xff]
    %v81 = vld [vmem:[%s1 + $0x1a8] sm:$0xff]
    %v82 = vld [vmem:[%s1 + $0x1b0] sm:$0xff]
    %v83 = vld [vmem:[%s1 + $0x1b8] sm:$0xff]
    %v84 = vld [vmem:[%s1 + $0x1c0] sm:$0xff]
    %v85 = vld [vmem:[%s1 + $0x1c8] sm:$0xff]
    %v86 = vld [vmem:[%s1 + $0x1d0] sm:$0xff]
    %v87 = vld [vmem:[%s1 + $0x1d8] sm:$0xff]
    %v88 = vld [vmem:[%s1 + $0x1e0] sm:$0xff]
    %v89 = vld [vmem:[%s1 + $0x1e8] sm:$0xff]
    %v90 = vld [vmem:[%s1 + $0x1f0] sm:$0xff]
    %v91 = vld [vmem:[%s1 + $0x1f8] sm:$0xff]
    %v92 = vld [vmem:[%s1 + $0x200] sm:$0xff]
    %v93 = vld [vmem:[%s1 + $0x208] sm:$0xff]
    %v94 = vld [vmem:[%s1 + $0x210] sm:$0xff]
    %v95 = vld [vmem:[%s1 + $0x218] sm:$0xff]
    %v96 = vld [vmem:[%s1 + $0x220] sm:$0xff]
    %v97 = vld [vmem:[%s1 + $0x228] sm:$0xff]
    %v98 = vld [vmem:[%s1 + $0x230] sm:$0xff]
    %v99 = vld [vmem:[%s1 + $0x238] sm:$0xff]
    %v100 = vld [vmem:[%s1 + $0x240] sm:$0xff]
    %v101 = vld [vmem:[%s1 + $0x248] sm:$0xff]
    %v102 = vld [vmem:[%s1 + $0x250] sm:$0xff]
    %v103 = vld [vmem:[%s1 + $0x258] sm:$0xff]
    %v104 = vld [vmem:[%s1 + $0x260] sm:$0xff]
    %v105 = vld [vmem:[%s1 + $0x268] sm:$0xff]
    %v106 = vld [vmem:[%s1 + $0x270] sm:$0xff]
    %v107 = vld [vmem:[%s1 + $0x278] sm:$0xff]
    %v108 = vld [vmem:[%s1 + $0x280] sm:$0xff]
    %v109 = vld [vmem:[%s1 + $0x288] sm:$0xff]
    %v110 = vld [vmem:[%s1 + $0x290] sm:$0xff]
    %v111 = vld [vmem:[%s1 + $0x298] sm:$0xff]
    %v112 = vld [vmem:[%s1 + $0x2a0] sm:$0xff]
    %v113 = vld [vmem:[%s1 + $0x2a8] sm:$0xff]
    %v114 = vld [vmem:[%s1 + $0x2b0] sm:$0xff]
    %v115 = vld [vmem:[%s1 + $0x2b8] sm:$0xff]
    %v116 = vld [vmem:[%s1 + $0x2c0] sm:$0xff]
    %v117 = vld [vmem:[%s1 + $0x2c8] sm:$0xff]
    %v118 = vld [vmem:[%s1 + $0x2d0] sm:$0xff]
    %v119 = vld [vmem:[%s1 + $0x2d8] sm:$0xff]
    %v120 = vld [vmem:[%s1 + $0x2e0] sm:$0xff]
    %v121 = vld [vmem:[%s1 + $0x2e8] sm:$0xff]
    %v122 = vld [vmem:[%s1 + $0x2f0] sm:$0xff]
    %v123 = vld [vmem:[%s1 + $0x2f8] sm:$0xff]
    %v124 = vld [vmem:[%s1 + $0x300] sm:$0xff]
    %v125 = vld [vmem:[%s1 + $0x308] sm:$0xff]
    %v126 = vld [vmem:[%s1 + $0x310] sm:$0xff]
    %v127 = vld [vmem:[%s1 + $0x318] sm:$0xff]
    %v128 = vld [vmem:[%s1 + $0x320] sm:$0xff]
    %v129 = vld [vmem:[%s1 + $0x328] sm:$0xff]
    %v130 = vld [vmem:[%s1 + $0x330] sm:$0xff]
    %v131 = vld [vmem:[%s1 + $0x338] sm:$0xff]
    %v132 = vld [vmem:[%s1 + $0x340] sm:$0xff]
    %v133 = vld [vmem:[%s1 + $0x348] sm:$0xff]
    %v134 = vld [vmem:[%s1 + $0x350] sm:$0xff]
    %v135 = vld [vmem:[%s1 + $0x358] sm:$0xff]
    %v136 = vld [vmem:[%s1 + $0x360] sm:$0xff]
    %v137 = vld [vmem:[%s1 + $0x368] sm:$0xff]
    %v138 = vld [vmem:[%s1 + $0x370] sm:$0xff]
    %v139 = vld [vmem:[%s1 + $0x378] sm:$0xff]
    %v140 = vld [vmem:[%s1 + $0x380] sm:$0xff]
    %v141 = vld [vmem:[%s1 + $0x388] sm:$0xff]
    %v142 = vld [vmem:[%s1 + $0x390] sm:$0xff]
    %v143 = vld [vmem:[%s1 + $0x398] sm:$0xff]
    %v144 = vld [vmem:[%s1 + $0x3a0] sm:$0xff]
    %v145 = vld [vmem:[%s1 + $0x3a8] sm:$0xff]
    %v146 = vld [vmem:[%s1 + $0x3b0] sm:$0xff]
    %v147 = vld [vmem:[%s1 + $0x3b8] sm:$0xff]
    %v148 = vld [vmem:[%s1 + $0x3c0] sm:$0xff]
    %v149 = vld [vmem:[%s1 + $0x3c8] sm:$0xff]
    %v150 = vld [vmem:[%s1 + $0x3d0] sm:$0xff]
    %v151 = vld [vmem:[%s1 + $0x3d8] sm:$0xff]
    %v152 = vld [vmem:[%s1 + $0x3e0] sm:$0xff]
    %v153 = vld [vmem:[%s1 + $0x3e8] sm:$0xff]
    %v154 = vld [vmem:[%s1 + $0x3f0] sm:$0xff]
    %v155 = vld [vmem:[%s1 + $0x3f8] sm:$0xff]
    %v156 = vld [vmem:[%s1 + $0x400] sm:$0xff]
    %v157 = vld [vmem:[%s1 + $0x408] sm:$0xff]
    %v158 = vld [vmem:[%s1 + $0x410] sm:$0xff]
    %v159 = vld [vmem:[%s1 + $0x418] sm:$0xff]
    %v160 = vld [vmem:[%s1 + $0x420] sm:$0xff]
    %v161 = vld [vmem:[%s1 + $0x428] sm:$0xff]
    %v162 = vld [vmem:[%s1 + $0x430] sm:$0xff]
    %v163 = vld [vmem:[%s1 + $0x438] sm:$0xff]
    %v164 = vld [vmem:[%s1 + $0x440] sm:$0xff]
    %v165 = vld [vmem:[%s1 + $0x448] sm:$0xff]
    %v166 = vld [vmem:[%s1 + $0x450] sm:$0xff]
    %v167 = vld [vmem:[%s1 + $0x458] sm:$0xff]
    %v168 = vld [vmem:[%s1 + $0x460] sm:$0xff]
    %v169 = vld [vmem:[%s1 + $0x468] sm:$0xff]
    %v170 = vld [vmem:[%s1 + $0x470] sm:$0xff]
    %v171 = vld [vmem:[%s1 + $0x478] sm:$0xff]
    %v172 = vld [vmem:[%s1 + $0x480] sm:$0xff]
    %v173 = vld [vmem:[%s1 + $0x488] sm:$0xff]
    %v174 = vld [vmem:[%s1 + $0x490] sm:$0xff]
    %v175 = vld [vmem:[%s1 + $0x498] sm:$0xff]
    %v176 = vld [vmem:[%s1 + $0x4a0] sm:$0xff]
    %v177 = vld [vmem:[%s1 + $0x4a8] sm:$0xff]
    %v178 = vld [vmem:[%s1 + $0x4b0] sm:$0xff]
    %v179 = vld [vmem:[%s1 + $0x4b8] sm:$0xff]
    %v180 = vld [vmem:[%s1 + $0x4c0] sm:$0xff]
    %v181 = vld [vmem:[%s1 + $0x4c8] sm:$0xff]
    %v182 = vld [vmem:[%s1 + $0x4d0] sm:$0xff]
    %v183 = vld [vmem:[%s1 + $0x4d8] sm:$0xff]
    %v184 = vld [vmem:[%s1 + $0x4e0] sm:$0xff]
    %v185 = vld [vmem:[%s1 + $0x4e8] sm:$0xff]
    %v186 = vld [vmem:[%s1 + $0x4f0] sm:$0xff]
    %v187 = vld [vmem:[%s1 + $0x4f8] sm:$0xff]
    %v188 = vld [vmem:[%s1 + $0x500] sm:$0xff]
    %v189 = vld [vmem:[%s1 + $0x508] sm:$0xff]
    %v190 = vld [vmem:[%s1 + $0x510] sm:$0xff]
    %v191 = vld [vmem:[%s1 + $0x518] sm:$0xff]
    %v192 = vld [vmem:[%s1 + $0x520] sm:$0xff]
    %v193 = vld [vmem:[%s1 + $0x528] sm:$0xff]
    %v194 = vld [vmem:[%s1 + $0x530] sm:$0xff]
    %v195 = vld [vmem:[%s1 + $0x538] sm:$0xff]
    %v196 = vld [vmem:[%s1 + $0x540] sm:$0xff]
    %v197 = vld [vmem:[%s1 + $0x548] sm:$0xff]
    %v198 = vld [vmem:[%s1 + $0x550] sm:$0xff]
    %v199 = vld [vmem:[%s1 + $0x558] sm:$0xff]
    %v200 = vld [vmem:[%s2] sm:$0xff]
    %v201 = vld [vmem:[%s2 + $0x8] sm:$0xff]
    %v202 = vld [vmem:[%s2 + $0x10] sm:$0xff]
    %v203 = vld [vmem:[%s2 + $0x18] sm:$0xff]
    %v204 = vld [vmem:[%s2 + $0x20] sm:$0xff]
    %v205 = vld [vmem:[%s2 + $0x28] sm:$0xff]
    %v206 = vld [vmem:[%s2 + $0x30] sm:$0x3]
    %v207 = vld [vmem:[%s4] sm:$0x1]
    %v209 = vlaneseq
    %v210 = vshrl.u32 %v209, 7
    %v211 = vsub.s32 0, %v210
    %v212 = vrot.slane %v207, %v211
    %vm214 = vcmask 408576
    %v216 = vsel %vm214, %v28, 0
    %v219 = vsel %vm214, %v29, 0
    %v222 = vsel %vm214, %v30, 0
    %v225 = vsel %vm214, %v31, 0
    %v228 = vsel %vm214, %v32, 0
    %v231 = vsel %vm214, %v33, 0
    %v234 = vsel %vm214, %v34, 0
    %v237 = vsel %vm214, %v35, 0
    %v240 = vsel %vm214, %v36, 0
    %v243 = vsel %vm214, %v37, 0
    %v246 = vsel %vm214, %v38, 0
    %v249 = vsel %vm214, %v39, 0
    %v252 = vsel %vm214, %v40, 0
    %v255 = vsel %vm214, %v41, 0
    %v258 = vsel %vm214, %v42, 0
    %v261 = vsel %vm214, %v43, 0
    %v264 = vsel %vm214, %v44, 0
    %v267 = vsel %vm214, %v45, 0
    %v270 = vsel %vm214, %v46, 0
    %v273 = vsel %vm214, %v47, 0
    %v276 = vsel %vm214, %v48, 0
    %v279 = vsel %vm214, %v49, 0
    %v282 = vsel %vm214, %v50, 0
    %v285 = vsel %vm214, %v51, 0
    %v288 = vsel %vm214, %v52, 0
    %v291 = vsel %vm214, %v53, 0
    %v294 = vsel %vm214, %v54, 0
    %v297 = vsel %vm214, %v55, 0
    %v300 = vsel %vm214, %v56, 0
    %v303 = vsel %vm214, %v57, 0
    %v306 = vsel %vm214, %v58, 0
    %v309 = vsel %vm214, %v59, 0
    %v312 = vsel %vm214, %v60, 0
    %v315 = vsel %vm214, %v61, 0
    %v318 = vsel %vm214, %v62, 0
    %v321 = vsel %vm214, %v63, 0
    %v324 = vsel %vm214, %v64, 0
    %v327 = vsel %vm214, %v65, 0
    %v330 = vsel %vm214, %v66, 0
    %v333 = vsel %vm214, %v67, 0
    %v336 = vsel %vm214, %v68, 0
    %v339 = vsel %vm214, %v69, 0
    %v342 = vsel %vm214, %v70, 0
    %v345 = vsel %vm214, %v71, 0
    %v348 = vsel %vm214, %v72, 0
    %v351 = vsel %vm214, %v73, 0
    %v354 = vsel %vm214, %v74, 0
    %v357 = vsel %vm214, %v75, 0
    %v360 = vsel %vm214, %v76, 0
    %v363 = vsel %vm214, %v77, 0
    %v366 = vsel %vm214, %v78, 0
    %v369 = vsel %vm214, %v79, 0
    %v372 = vsel %vm214, %v80, 0
    %v375 = vsel %vm214, %v81, 0
    %v378 = vsel %vm214, %v82, 0
    %v381 = vsel %vm214, %v83, 0
    %v384 = vsel %vm214, %v84, 0
    %v387 = vsel %vm214, %v85, 0
    %v390 = vsel %vm214, %v86, 0
    %v393 = vsel %vm214, %v87, 0
    %v396 = vsel %vm214, %v88, 0
    %v399 = vsel %vm214, %v89, 0
    %v402 = vsel %vm214, %v90, 0
    %v405 = vsel %vm214, %v91, 0
    %v408 = vsel %vm214, %v92, 0
    %v411 = vsel %vm214, %v93, 0
    %v414 = vsel %vm214, %v94, 0
    %v417 = vsel %vm214, %v95, 0
    %v420 = vsel %vm214, %v96, 0
    %v423 = vsel %vm214, %v97, 0
    %v426 = vsel %vm214, %v98, 0
    %v429 = vsel %vm214, %v99, 0
    %v432 = vsel %vm214, %v100, 0
    %v435 = vsel %vm214, %v101, 0
    %v438 = vsel %vm214, %v102, 0
    %v441 = vsel %vm214, %v103, 0
    %v444 = vsel %vm214, %v104, 0
    %v447 = vsel %vm214, %v105, 0
    %v450 = vsel %vm214, %v106, 0
    %v453 = vsel %vm214, %v107, 0
    %v456 = vsel %vm214, %v108, 0
    %v459 = vsel %vm214, %v109, 0
    %v462 = vsel %vm214, %v110, 0
    %v465 = vsel %vm214, %v111, 0
    %v468 = vsel %vm214, %v112, 0
    %v471 = vsel %vm214, %v113, 0
    %v474 = vsel %vm214, %v114, 0
    %v477 = vsel %vm214, %v115, 0
    %v480 = vsel %vm214, %v116, 0
    %v483 = vsel %vm214, %v117, 0
    %v486 = vsel %vm214, %v118, 0
    %v489 = vsel %vm214, %v119, 0
    %v492 = vsel %vm214, %v120, 0
    %v495 = vsel %vm214, %v121, 0
    %v498 = vsel %vm214, %v122, 0
    %v501 = vsel %vm214, %v123, 0
    %v504 = vsel %vm214, %v124, 0
    %v507 = vsel %vm214, %v125, 0
    %v510 = vsel %vm214, %v126, 0
    %v513 = vsel %vm214, %v127, 0
    %v516 = vsel %vm214, %v128, 0
    %v519 = vsel %vm214, %v129, 0
    %v522 = vsel %vm214, %v130, 0
    %v525 = vsel %vm214, %v131, 0
    %v528 = vsel %vm214, %v132, 0
    %v531 = vsel %vm214, %v133, 0
    %v534 = vsel %vm214, %v134, 0
    %v537 = vsel %vm214, %v135, 0
    %v540 = vsel %vm214, %v136, 0
    %v543 = vsel %vm214, %v137, 0
    %v546 = vsel %vm214, %v138, 0
    %v549 = vsel %vm214, %v139, 0
    %v552 = vsel %vm214, %v140, 0
    %v555 = vsel %vm214, %v141, 0
    %v558 = vsel %vm214, %v142, 0
    %v561 = vsel %vm214, %v143, 0
    %v564 = vsel %vm214, %v144, 0
    %v567 = vsel %vm214, %v145, 0
    %v570 = vsel %vm214, %v146, 0
    %v573 = vsel %vm214, %v147, 0
    %v576 = vsel %vm214, %v148, 0
    %v579 = vsel %vm214, %v149, 0
    %v582 = vsel %vm214, %v150, 0
    %v585 = vsel %vm214, %v151, 0
    %v588 = vsel %vm214, %v152, 0
    %v591 = vsel %vm214, %v153, 0
    %v594 = vsel %vm214, %v154, 0
    %v597 = vsel %vm214, %v155, 0
    %v600 = vsel %vm214, %v156, 0
    %v603 = vsel %vm214, %v157, 0
    %v606 = vsel %vm214, %v158, 0
    %v609 = vsel %vm214, %v159, 0
    %v612 = vsel %vm214, %v160, 0
    %v615 = vsel %vm214, %v161, 0
    %v618 = vsel %vm214, %v162, 0
    %v621 = vsel %vm214, %v163, 0
    %v624 = vsel %vm214, %v164, 0
    %v627 = vsel %vm214, %v165, 0
    %v630 = vsel %vm214, %v166, 0
    %v633 = vsel %vm214, %v167, 0
    %v636 = vsel %vm214, %v168, 0
    %v639 = vsel %vm214, %v169, 0
    %v642 = vsel %vm214, %v170, 0
    %v645 = vsel %vm214, %v171, 0
    %v648 = vsel %vm214, %v172, 0
    %v651 = vsel %vm214, %v173, 0
    %v654 = vsel %vm214, %v174, 0
    %v657 = vsel %vm214, %v175, 0
    %v660 = vsel %vm214, %v176, 0
    %v663 = vsel %vm214, %v177, 0
    %v666 = vsel %vm214, %v178, 0
    %v669 = vsel %vm214, %v179, 0
    %v672 = vsel %vm214, %v180, 0
    %v675 = vsel %vm214, %v181, 0
    %v678 = vsel %vm214, %v182, 0
    %v681 = vsel %vm214, %v183, 0
    %v684 = vsel %vm214, %v184, 0
    %v687 = vsel %vm214, %v185, 0
    %v690 = vsel %vm214, %v186, 0
    %v693 = vsel %vm214, %v187, 0
    %v696 = vsel %vm214, %v188, 0
    %v699 = vsel %vm214, %v189, 0
    %v702 = vsel %vm214, %v190, 0
    %v705 = vsel %vm214, %v191, 0
    %v708 = vsel %vm214, %v192, 0
    %v711 = vsel %vm214, %v193, 0
    %v714 = vsel %vm214, %v194, 0
    %v717 = vsel %vm214, %v195, 0
    %v720 = vsel %vm214, %v196, 0
    %v723 = vsel %vm214, %v197, 0
    %v726 = vsel %vm214, %v198, 0
    %v729 = vsel %vm214, %v199, 0
    %vm731 = vcmask 1041408
    %v733 = vsel %vm731, %v206, 0
    %735 = vmatprep.subr.mxu0 0.0
    %736 = vmatpush1.msra.mxu0 %v200
    %737 = vmatprep.subr.mxu0 0.0
    %738 = vmatpush1.msra.mxu0 %v201
    %739 = vmatprep.subr.mxu0 0.0
    %740 = vmatpush1.msra.mxu0 %v202
    %741 = vmatprep.subr.mxu0 0.0
    %742 = vmatpush1.msra.mxu0 %v203
    %743 = vmatprep.subr.mxu0 0.0
    %744 = vmatpush1.msra.mxu0 %v204
    %745 = vmatprep.subr.mxu0 0.0
    %746 = vmatpush1.msra.mxu0 %v205
    %747 = vmatprep.subr.mxu0 0.0
    %748 = vmatpush1.msra.mxu0 %v733
    %749 = vmatprep.subr.mxu0 0.0
    %750 = vmatpush1.msra.mxu0 0.0
    %751 = vmatprep.subr.mxu0 0.0
    %752 = vmatpush1.msra.mxu0 0.0
    %753 = vmatprep.subr.mxu0 0.0
    %754 = vmatpush1.msra.mxu0 0.0
    %755 = vmatprep.subr.mxu0 0.0
    %756 = vmatpush1.msra.mxu0 0.0
    %757 = vmatprep.subr.mxu0 0.0
    %758 = vmatpush1.msra.mxu0 0.0
    %759 = vmatprep.subr.mxu0 0.0
    %760 = vmatpush1.msra.mxu0 0.0
    %761 = vmatprep.subr.mxu0 0.0
    %762 = vmatpush1.msra.mxu0 0.0
    %763 = vmatprep.subr.mxu0 0.0
    %764 = vmatpush1.msra.mxu0 0.0
    %765 = vmatprep.subr.mxu0 0.0
    %766 = vmatpush1.msra.mxu0 0.0
    %767 = vmatprep.subr.mxu0 0.0
    %768 = vmatpush1.msra.mxu0 0.0
    %769 = vmatprep.subr.mxu0 0.0
    %770 = vmatpush1.msra.mxu0 0.0
    %771 = vmatprep.subr.mxu0 0.0
    %772 = vmatpush1.msra.mxu0 0.0
    %773 = vmatprep.subr.mxu0 0.0
    %774 = vmatpush1.msra.mxu0 0.0
    %775 = vmatprep.subr.mxu0 0.0
    %776 = vmatpush1.msra.mxu0 0.0
    %777 = vmatprep.subr.mxu0 0.0
    %778 = vmatpush1.msra.mxu0 0.0
    %779 = vmatprep.subr.mxu0 0.0
    %780 = vmatpush1.msra.mxu0 0.0
    %781 = vmatprep.subr.mxu0 0.0
    %782 = vmatpush1.msra.mxu0 0.0
    %783 = vmatprep.subr.mxu0 0.0
    %784 = vmatpush1.msra.mxu0 0.0
    %785 = vmatprep.subr.mxu0 0.0
    %786 = vmatpush1.msra.mxu0 0.0
    %787 = vmatprep.subr.mxu0 0.0
    %788 = vmatpush1.msra.mxu0 0.0
    %789 = vmatprep.subr.mxu0 0.0
    %790 = vmatpush1.msra.mxu0 0.0
    %791 = vmatprep.subr.mxu0 0.0
    %792 = vmatpush1.msra.mxu0 0.0
    %793 = vmatprep.subr.mxu0 0.0
    %794 = vmatpush1.msra.mxu0 0.0
    %795 = vmatprep.subr.mxu0 0.0
    %796 = vmatpush1.msra.mxu0 0.0
    %797 = vmatprep.subr.mxu0 0.0
    %798 = vmatpush1.msra.mxu0 0.0
    %799 = vmatprep.mubr.f32.mxu0 0.0
    %800 = vmatmul.mubr.f32.gmra.mrb[0].mxu0 %v216
    %v801 = vpop.f32.mrb[0].mxu0
    %v802 = vadd.f32 %v212, %v801
    %v803 = vpop.f32.mrb[0].mxu0
    %804 = vmatprep.mubr.f32.mxu0 0.0
    %805 = vmatmul.mubr.f32.gmra.mrb[0].mxu0 %v219
    %v806 = vpop.f32.mrb[0].mxu0
    %v807 = vadd.f32 %v212, %v806
    %v808 = vpop.f32.mrb[0].mxu0
    %809 = vmatprep.mubr.f32.mxu0 0.0
    %810 = vmatmul.mubr.f32.gmra.mrb[0].mxu0 %v222
    %v811 = vpop.f32.mrb[0].mxu0
    %v812 = vadd.f32 %v212, %v811
    %v813 = vpop.f32.mrb[0].mxu0
    %814 = vmatprep.mubr.f32.mxu0 0.0
    %815 = vmatmul.mubr.f32.gmra.mrb[0].mxu0 %v225
    %v816 = vpop.f32.mrb[0].mxu0
    %v817 = vadd.f32 %v212, %v816
    %v818 = vpop.f32.mrb[0].mxu0
    %819 = vmatprep.mubr.f32.mxu0 0.0
    %820 = vmatmul.mubr.f32.gmra.mrb[0].mxu0 %v228
    %v821 = vpop.f32.mrb[0].mxu0
    %v822 = vadd.f32 %v212, %v821
    %v823 = vpop.f32.mrb[0].mxu0
    %824 = vmatprep.mubr.f32.mxu0 0.0
    %825 = vmatmul.mubr.f32.gmra.mrb[0].mxu0 %v231
    %v826 = vpop.f32.mrb[0].mxu0
    %v827 = vadd.f32 %v212, %v826
    %v828 = vpop.f32.mrb[0].mxu0
    %829 = vmatprep.mubr.f32.mxu0 0.0
    %830 = vmatmul.mubr.f32.gmra.mrb[0].mxu0 %v234
    %v831 = vpop.f32.mrb[0].mxu0
    %v832 = vadd.f32 %v212, %v831
    %v833 = vpop.f32.mrb[0].mxu0
    %834 = vmatprep.mubr.f32.mxu0 0.0
    %835 = vmatmul.mubr.f32.gmra.mrb[0].mxu0 %v237
    %v836 = vpop.f32.mrb[0].mxu0
    %v837 = vadd.f32 %v212, %v836
    %v838 = vpop.f32.mrb[0].mxu0
    %839 = vmatprep.mubr.f32.mxu0 0.0
    %840 = vmatmul.mubr.f32.gmra.mrb[0].mxu0 %v240
    %v841 = vpop.f32.mrb[0].mxu0
    %v842 = vadd.f32 %v212, %v841
    %v843 = vpop.f32.mrb[0].mxu0
    %844 = vmatprep.mubr.f32.mxu0 0.0
    %845 = vmatmul.mubr.f32.gmra.mrb[0].mxu0 %v243
    %v846 = vpop.f32.mrb[0].mxu0
    %v847 = vadd.f32 %v212, %v846
    %v848 = vpop.f32.mrb[0].mxu0
    %849 = vmatprep.mubr.f32.mxu0 0.0
    %850 = vmatmul.mubr.f32.gmra.mrb[0].mxu0 %v246
    %v851 = vpop.f32.mrb[0].mxu0
    %v852 = vadd.f32 %v212, %v851
    %v853 = vpop.f32.mrb[0].mxu0
    %854 = vmatprep.mubr.f32.mxu0 0.0
    %855 = vmatmul.mubr.f32.gmra.mrb[0].mxu0 %v249
    %v856 = vpop.f32.mrb[0].mxu0
    %v857 = vadd.f32 %v212, %v856
    %v858 = vpop.f32.mrb[0].mxu0
    %859 = vmatprep.mubr.f32.mxu0 0.0
    %860 = vmatmul.mubr.f32.gmra.mrb[0].mxu0 %v252
    %v861 = vpop.f32.mrb[0].mxu0
    %v862 = vadd.f32 %v212, %v861
    %v863 = vpop.f32.mrb[0].mxu0
    %864 = vmatprep.mubr.f32.mxu0 0.0
    %865 = vmatmul.mubr.f32.gmra.mrb[0].mxu0 %v255
    %v866 = vpop.f32.mrb[0].mxu0
    %v867 = vadd.f32 %v212, %v866
    %v868 = vpop.f32.mrb[0].mxu0
    %869 = vmatprep.mubr.f32.mxu0 0.0
    %870 = vmatmul.mubr.f32.gmra.mrb[0].mxu0 %v258
    %v871 = vpop.f32.mrb[0].mxu0
    %v872 = vadd.f32 %v212, %v871
    %v873 = vpop.f32.mrb[0].mxu0
    %874 = vmatprep.mubr.f32.mxu0 0.0
    %875 = vmatmul.mubr.f32.gmra.mrb[0].mxu0 %v261
    %v876 = vpop.f32.mrb[0].mxu0
    %v877 = vadd.f32 %v212, %v876
    %v878 = vpop.f32.mrb[0].mxu0
    %879 = vmatprep.mubr.f32.mxu0 0.0
    %880 = vmatmul.mubr.f32.gmra.mrb[0].mxu0 %v264
    %v881 = vpop.f32.mrb[0].mxu0
    %v882 = vadd.f32 %v212, %v881
    %v883 = vpop.f32.mrb[0].mxu0
    %884 = vmatprep.mubr.f32.mxu0 0.0
    %885 = vmatmul.mubr.f32.gmra.mrb[0].mxu0 %v267
    %v886 = vpop.f32.mrb[0].mxu0
    %v887 = vadd.f32 %v212, %v886
    %v888 = vpop.f32.mrb[0].mxu0
    %889 = vmatprep.mubr.f32.mxu0 0.0
    %890 = vmatmul.mubr.f32.gmra.mrb[0].mxu0 %v270
    %v891 = vpop.f32.mrb[0].mxu0
    %v892 = vadd.f32 %v212, %v891
    %v893 = vpop.f32.mrb[0].mxu0
    %894 = vmatprep.mubr.f32.mxu0 0.0
    %895 = vmatmul.mubr.f32.gmra.mrb[0].mxu0 %v273
    %v896 = vpop.f32.mrb[0].mxu0
    %v897 = vadd.f32 %v212, %v896
    %v898 = vpop.f32.mrb[0].mxu0
    %899 = vmatprep.mubr.f32.mxu0 0.0
    %900 = vmatmul.mubr.f32.gmra.mrb[0].mxu0 %v276
    %v901 = vpop.f32.mrb[0].mxu0
    %v902 = vadd.f32 %v212, %v901
    %v903 = vpop.f32.mrb[0].mxu0
    %904 = vmatprep.mubr.f32.mxu0 0.0
    %905 = vmatmul.mubr.f32.gmra.mrb[0].mxu0 %v279
    %v906 = vpop.f32.mrb[0].mxu0
    %v907 = vadd.f32 %v212, %v906
    %v908 = vpop.f32.mrb[0].mxu0
    %909 = vmatprep.mubr.f32.mxu0 0.0
    %910 = vmatmul.mubr.f32.gmra.mrb[0].mxu0 %v282
    %v911 = vpop.f32.mrb[0].mxu0
    %v912 = vadd.f32 %v212, %v911
    %v913 = vpop.f32.mrb[0].mxu0
    %914 = vmatprep.mubr.f32.mxu0 0.0
    %915 = vmatmul.mubr.f32.gmra.mrb[0].mxu0 %v285
    %v916 = vpop.f32.mrb[0].mxu0
    %v917 = vadd.f32 %v212, %v916
    %v918 = vpop.f32.mrb[0].mxu0
    %919 = vmatprep.mubr.f32.mxu0 0.0
    %920 = vmatmul.mubr.f32.gmra.mrb[0].mxu0 %v288
    %v921 = vpop.f32.mrb[0].mxu0
    %v922 = vadd.f32 %v212, %v921
    %v923 = vpop.f32.mrb[0].mxu0
    %924 = vmatprep.mubr.f32.mxu0 0.0
    %925 = vmatmul.mubr.f32.gmra.mrb[0].mxu0 %v291
    %v926 = vpop.f32.mrb[0].mxu0
    %v927 = vadd.f32 %v212, %v926
    %v928 = vpop.f32.mrb[0].mxu0
    %929 = vmatprep.mubr.f32.mxu0 0.0
    %930 = vmatmul.mubr.f32.gmra.mrb[0].mxu0 %v294
    %v931 = vpop.f32.mrb[0].mxu0
    %v932 = vadd.f32 %v212, %v931
    %v933 = vpop.f32.mrb[0].mxu0
    %934 = vmatprep.mubr.f32.mxu0 0.0
    %935 = vmatmul.mubr.f32.gmra.mrb[0].mxu0 %v297
    %v936 = vpop.f32.mrb[0].mxu0
    %v937 = vadd.f32 %v212, %v936
    %v938 = vpop.f32.mrb[0].mxu0
    %939 = vmatprep.mubr.f32.mxu0 0.0
    %940 = vmatmul.mubr.f32.gmra.mrb[0].mxu0 %v300
    %v941 = vpop.f32.mrb[0].mxu0
    %v942 = vadd.f32 %v212, %v941
    %v943 = vpop.f32.mrb[0].mxu0
    %944 = vmatprep.mubr.f32.mxu0 0.0
    %945 = vmatmul.mubr.f32.gmra.mrb[0].mxu0 %v303
    %v946 = vpop.f32.mrb[0].mxu0
    %v947 = vadd.f32 %v212, %v946
    %v948 = vpop.f32.mrb[0].mxu0
    %949 = vmatprep.mubr.f32.mxu0 0.0
    %950 = vmatmul.mubr.f32.gmra.mrb[0].mxu0 %v306
    %v951 = vpop.f32.mrb[0].mxu0
    %v952 = vadd.f32 %v212, %v951
    %v953 = vpop.f32.mrb[0].mxu0
    %954 = vmatprep.mubr.f32.mxu0 0.0
    %955 = vmatmul.mubr.f32.gmra.mrb[0].mxu0 %v309
    %v956 = vpop.f32.mrb[0].mxu0
    %v957 = vadd.f32 %v212, %v956
    %v958 = vpop.f32.mrb[0].mxu0
    %959 = vmatprep.mubr.f32.mxu0 0.0
    %960 = vmatmul.mubr.f32.gmra.mrb[0].mxu0 %v312
    %v961 = vpop.f32.mrb[0].mxu0
    %v962 = vadd.f32 %v212, %v961
    %v963 = vpop.f32.mrb[0].mxu0
    %964 = vmatprep.mubr.f32.mxu0 0.0
    %965 = vmatmul.mubr.f32.gmra.mrb[0].mxu0 %v315
    %v966 = vpop.f32.mrb[0].mxu0
    %v967 = vadd.f32 %v212, %v966
    %v968 = vpop.f32.mrb[0].mxu0
    %969 = vmatprep.mubr.f32.mxu0 0.0
    %970 = vmatmul.mubr.f32.gmra.mrb[0].mxu0 %v318
    %v971 = vpop.f32.mrb[0].mxu0
    %v972 = vadd.f32 %v212, %v971
    %v973 = vpop.f32.mrb[0].mxu0
    %974 = vmatprep.mubr.f32.mxu0 0.0
    %975 = vmatmul.mubr.f32.gmra.mrb[0].mxu0 %v321
    %v976 = vpop.f32.mrb[0].mxu0
    %v977 = vadd.f32 %v212, %v976
    %v978 = vpop.f32.mrb[0].mxu0
    %979 = vmatprep.mubr.f32.mxu0 0.0
    %980 = vmatmul.mubr.f32.gmra.mrb[0].mxu0 %v324
    %v981 = vpop.f32.mrb[0].mxu0
    %v982 = vadd.f32 %v212, %v981
    %v983 = vpop.f32.mrb[0].mxu0
    %984 = vmatprep.mubr.f32.mxu0 0.0
    %985 = vmatmul.mubr.f32.gmra.mrb[0].mxu0 %v327
    %v986 = vpop.f32.mrb[0].mxu0
    %v987 = vadd.f32 %v212, %v986
    %v988 = vpop.f32.mrb[0].mxu0
    %989 = vmatprep.mubr.f32.mxu0 0.0
    %990 = vmatmul.mubr.f32.gmra.mrb[0].mxu0 %v330
    %v991 = vpop.f32.mrb[0].mxu0
    %v992 = vadd.f32 %v212, %v991
    %v993 = vpop.f32.mrb[0].mxu0
    %994 = vmatprep.mubr.f32.mxu0 0.0
    %995 = vmatmul.mubr.f32.gmra.mrb[0].mxu0 %v333
    %v996 = vpop.f32.mrb[0].mxu0
    %v997 = vadd.f32 %v212, %v996
    %v998 = vpop.f32.mrb[0].mxu0
    %999 = vmatprep.mubr.f32.mxu0 0.0
    %1000 = vmatmul.mubr.f32.gmra.mrb[0].mxu0 %v336
    %v1001 = vpop.f32.mrb[0].mxu0
    %v1002 = vadd.f32 %v212, %v1001
    %v1003 = vpop.f32.mrb[0].mxu0
    %1004 = vmatprep.mubr.f32.mxu0 0.0
    %1005 = vmatmul.mubr.f32.gmra.mrb[0].mxu0 %v339
    %v1006 = vpop.f32.mrb[0].mxu0
    %v1007 = vadd.f32 %v212, %v1006
    %v1008 = vpop.f32.mrb[0].mxu0
    %1009 = vmatprep.mubr.f32.mxu0 0.0
    %1010 = vmatmul.mubr.f32.gmra.mrb[0].mxu0 %v342
    %v1011 = vpop.f32.mrb[0].mxu0
    %v1012 = vadd.f32 %v212, %v1011
    %v1013 = vpop.f32.mrb[0].mxu0
    %1014 = vmatprep.mubr.f32.mxu0 0.0
    %1015 = vmatmul.mubr.f32.gmra.mrb[0].mxu0 %v345
    %v1016 = vpop.f32.mrb[0].mxu0
    %v1017 = vadd.f32 %v212, %v1016
    %v1018 = vpop.f32.mrb[0].mxu0
    %1019 = vmatprep.mubr.f32.mxu0 0.0
    %1020 = vmatmul.mubr.f32.gmra.mrb[0].mxu0 %v348
    %v1021 = vpop.f32.mrb[0].mxu0
    %v1022 = vadd.f32 %v212, %v1021
    %v1023 = vpop.f32.mrb[0].mxu0
    %1024 = vmatprep.mubr.f32.mxu0 0.0
    %1025 = vmatmul.mubr.f32.gmra.mrb[0].mxu0 %v351
    %v1026 = vpop.f32.mrb[0].mxu0
    %v1027 = vadd.f32 %v212, %v1026
    %v1028 = vpop.f32.mrb[0].mxu0
    %1029 = vmatprep.mubr.f32.mxu0 0.0
    %1030 = vmatmul.mubr.f32.gmra.mrb[0].mxu0 %v354
    %v1031 = vpop.f32.mrb[0].mxu0
    %v1032 = vadd.f32 %v212, %v1031
    %v1033 = vpop.f32.mrb[0].mxu0
    %1034 = vmatprep.mubr.f32.mxu0 0.0
    %1035 = vmatmul.mubr.f32.gmra.mrb[0].mxu0 %v357
    %v1036 = vpop.f32.mrb[0].mxu0
    %v1037 = vadd.f32 %v212, %v1036
    %v1038 = vpop.f32.mrb[0].mxu0
    %1039 = vmatprep.mubr.f32.mxu0 0.0
    %1040 = vmatmul.mubr.f32.gmra.mrb[0].mxu0 %v360
    %v1041 = vpop.f32.mrb[0].mxu0
    %v1042 = vadd.f32 %v212, %v1041
    %v1043 = vpop.f32.mrb[0].mxu0
    %1044 = vmatprep.mubr.f32.mxu0 0.0
    %1045 = vmatmul.mubr.f32.gmra.mrb[0].mxu0 %v363
    %v1046 = vpop.f32.mrb[0].mxu0
    %v1047 = vadd.f32 %v212, %v1046
    %v1048 = vpop.f32.mrb[0].mxu0
    %1049 = vmatprep.mubr.f32.mxu0 0.0
    %1050 = vmatmul.mubr.f32.gmra.mrb[0].mxu0 %v366
    %v1051 = vpop.f32.mrb[0].mxu0
    %v1052 = vadd.f32 %v212, %v1051
    %v1053 = vpop.f32.mrb[0].mxu0
    %1054 = vmatprep.mubr.f32.mxu0 0.0
    %1055 = vmatmul.mubr.f32.gmra.mrb[0].mxu0 %v369
    %v1056 = vpop.f32.mrb[0].mxu0
    %v1057 = vadd.f32 %v212, %v1056
    %v1058 = vpop.f32.mrb[0].mxu0
    %1059 = vmatprep.mubr.f32.mxu0 0.0
    %1060 = vmatmul.mubr.f32.gmra.mrb[0].mxu0 %v372
    %v1061 = vpop.f32.mrb[0].mxu0
    %v1062 = vadd.f32 %v212, %v1061
    %v1063 = vpop.f32.mrb[0].mxu0
    %1064 = vmatprep.mubr.f32.mxu0 0.0
    %1065 = vmatmul.mubr.f32.gmra.mrb[0].mxu0 %v375
    %v1066 = vpop.f32.mrb[0].mxu0
    %v1067 = vadd.f32 %v212, %v1066
    %v1068 = vpop.f32.mrb[0].mxu0
    %1069 = vmatprep.mubr.f32.mxu0 0.0
    %1070 = vmatmul.mubr.f32.gmra.mrb[0].mxu0 %v378
    %v1071 = vpop.f32.mrb[0].mxu0
    %v1072 = vadd.f32 %v212, %v1071
    %v1073 = vpop.f32.mrb[0].mxu0
    %1074 = vmatprep.mubr.f32.mxu0 0.0
    %1075 = vmatmul.mubr.f32.gmra.mrb[0].mxu0 %v381
    %v1076 = vpop.f32.mrb[0].mxu0
    %v1077 = vadd.f32 %v212, %v1076
    %v1078 = vpop.f32.mrb[0].mxu0
    %1079 = vmatprep.mubr.f32.mxu0 0.0
    %1080 = vmatmul.mubr.f32.gmra.mrb[0].mxu0 %v384
    %v1081 = vpop.f32.mrb[0].mxu0
    %v1082 = vadd.f32 %v212, %v1081
    %v1083 = vpop.f32.mrb[0].mxu0
    %1084 = vmatprep.mubr.f32.mxu0 0.0
    %1085 = vmatmul.mubr.f32.gmra.mrb[0].mxu0 %v387
    %v1086 = vpop.f32.mrb[0].mxu0
    %v1087 = vadd.f32 %v212, %v1086
    %v1088 = vpop.f32.mrb[0].mxu0
    %1089 = vmatprep.mubr.f32.mxu0 0.0
    %1090 = vmatmul.mubr.f32.gmra.mrb[0].mxu0 %v390
    %v1091 = vpop.f32.mrb[0].mxu0
    %v1092 = vadd.f32 %v212, %v1091
    %v1093 = vpop.f32.mrb[0].mxu0
    %1094 = vmatprep.mubr.f32.mxu0 0.0
    %1095 = vmatmul.mubr.f32.gmra.mrb[0].mxu0 %v393
    %v1096 = vpop.f32.mrb[0].mxu0
    %v1097 = vadd.f32 %v212, %v1096
    %v1098 = vpop.f32.mrb[0].mxu0
    %1099 = vmatprep.mubr.f32.mxu0 0.0
    %1100 = vmatmul.mubr.f32.gmra.mrb[0].mxu0 %v396
    %v1101 = vpop.f32.mrb[0].mxu0
    %v1102 = vadd.f32 %v212, %v1101
    %v1103 = vpop.f32.mrb[0].mxu0
    %1104 = vmatprep.mubr.f32.mxu0 0.0
    %1105 = vmatmul.mubr.f32.gmra.mrb[0].mxu0 %v399
    %v1106 = vpop.f32.mrb[0].mxu0
    %v1107 = vadd.f32 %v212, %v1106
    %v1108 = vpop.f32.mrb[0].mxu0
    %1109 = vmatprep.mubr.f32.mxu0 0.0
    %1110 = vmatmul.mubr.f32.gmra.mrb[0].mxu0 %v402
    %v1111 = vpop.f32.mrb[0].mxu0
    %v1112 = vadd.f32 %v212, %v1111
    %v1113 = vpop.f32.mrb[0].mxu0
    %1114 = vmatprep.mubr.f32.mxu0 0.0
    %1115 = vmatmul.mubr.f32.gmra.mrb[0].mxu0 %v405
    %v1116 = vpop.f32.mrb[0].mxu0
    %v1117 = vadd.f32 %v212, %v1116
    %v1118 = vpop.f32.mrb[0].mxu0
    %1119 = vmatprep.mubr.f32.mxu0 0.0
    %1120 = vmatmul.mubr.f32.gmra.mrb[0].mxu0 %v408
    %v1121 = vpop.f32.mrb[0].mxu0
    %v1122 = vadd.f32 %v212, %v1121
    %v1123 = vpop.f32.mrb[0].mxu0
    %1124 = vmatprep.mubr.f32.mxu0 0.0
    %1125 = vmatmul.mubr.f32.gmra.mrb[0].mxu0 %v411
    %v1126 = vpop.f32.mrb[0].mxu0
    %v1127 = vadd.f32 %v212, %v1126
    %v1128 = vpop.f32.mrb[0].mxu0
    %1129 = vmatprep.mubr.f32.mxu0 0.0
    %1130 = vmatmul.mubr.f32.gmra.mrb[0].mxu0 %v414
    %v1131 = vpop.f32.mrb[0].mxu0
    %v1132 = vadd.f32 %v212, %v1131
    %v1133 = vpop.f32.mrb[0].mxu0
    %1134 = vmatprep.mubr.f32.mxu0 0.0
    %1135 = vmatmul.mubr.f32.gmra.mrb[0].mxu0 %v417
    %v1136 = vpop.f32.mrb[0].mxu0
    %v1137 = vadd.f32 %v212, %v1136
    %v1138 = vpop.f32.mrb[0].mxu0
    %1139 = vmatprep.mubr.f32.mxu0 0.0
    %1140 = vmatmul.mubr.f32.gmra.mrb[0].mxu0 %v420
    %v1141 = vpop.f32.mrb[0].mxu0
    %v1142 = vadd.f32 %v212, %v1141
    %v1143 = vpop.f32.mrb[0].mxu0
    %1144 = vmatprep.mubr.f32.mxu0 0.0
    %1145 = vmatmul.mubr.f32.gmra.mrb[0].mxu0 %v423
    %v1146 = vpop.f32.mrb[0].mxu0
    %v1147 = vadd.f32 %v212, %v1146
    %v1148 = vpop.f32.mrb[0].mxu0
    %1149 = vmatprep.mubr.f32.mxu0 0.0
    %1150 = vmatmul.mubr.f32.gmra.mrb[0].mxu0 %v426
    %v1151 = vpop.f32.mrb[0].mxu0
    %v1152 = vadd.f32 %v212, %v1151
    %v1153 = vpop.f32.mrb[0].mxu0
    %1154 = vmatprep.mubr.f32.mxu0 0.0
    %1155 = vmatmul.mubr.f32.gmra.mrb[0].mxu0 %v429
    %v1156 = vpop.f32.mrb[0].mxu0
    %v1157 = vadd.f32 %v212, %v1156
    %v1158 = vpop.f32.mrb[0].mxu0
    %1159 = vmatprep.mubr.f32.mxu0 0.0
    %1160 = vmatmul.mubr.f32.gmra.mrb[0].mxu0 %v432
    %v1161 = vpop.f32.mrb[0].mxu0
    %v1162 = vadd.f32 %v212, %v1161
    %v1163 = vpop.f32.mrb[0].mxu0
    %1164 = vmatprep.mubr.f32.mxu0 0.0
    %1165 = vmatmul.mubr.f32.gmra.mrb[0].mxu0 %v435
    %v1166 = vpop.f32.mrb[0].mxu0
    %v1167 = vadd.f32 %v212, %v1166
    %v1168 = vpop.f32.mrb[0].mxu0
    %1169 = vmatprep.mubr.f32.mxu0 0.0
    %1170 = vmatmul.mubr.f32.gmra.mrb[0].mxu0 %v438
    %v1171 = vpop.f32.mrb[0].mxu0
    %v1172 = vadd.f32 %v212, %v1171
    %v1173 = vpop.f32.mrb[0].mxu0
    %1174 = vmatprep.mubr.f32.mxu0 0.0
    %1175 = vmatmul.mubr.f32.gmra.mrb[0].mxu0 %v441
    %v1176 = vpop.f32.mrb[0].mxu0
    %v1177 = vadd.f32 %v212, %v1176
    %v1178 = vpop.f32.mrb[0].mxu0
    %1179 = vmatprep.mubr.f32.mxu0 0.0
    %1180 = vmatmul.mubr.f32.gmra.mrb[0].mxu0 %v444
    %v1181 = vpop.f32.mrb[0].mxu0
    %v1182 = vadd.f32 %v212, %v1181
    %v1183 = vpop.f32.mrb[0].mxu0
    %1184 = vmatprep.mubr.f32.mxu0 0.0
    %1185 = vmatmul.mubr.f32.gmra.mrb[0].mxu0 %v447
    %v1186 = vpop.f32.mrb[0].mxu0
    %v1187 = vadd.f32 %v212, %v1186
    %v1188 = vpop.f32.mrb[0].mxu0
    %1189 = vmatprep.mubr.f32.mxu0 0.0
    %1190 = vmatmul.mubr.f32.gmra.mrb[0].mxu0 %v450
    %v1191 = vpop.f32.mrb[0].mxu0
    %v1192 = vadd.f32 %v212, %v1191
    %v1193 = vpop.f32.mrb[0].mxu0
    %1194 = vmatprep.mubr.f32.mxu0 0.0
    %1195 = vmatmul.mubr.f32.gmra.mrb[0].mxu0 %v453
    %v1196 = vpop.f32.mrb[0].mxu0
    %v1197 = vadd.f32 %v212, %v1196
    %v1198 = vpop.f32.mrb[0].mxu0
    %1199 = vmatprep.mubr.f32.mxu0 0.0
    %1200 = vmatmul.mubr.f32.gmra.mrb[0].mxu0 %v456
    %v1201 = vpop.f32.mrb[0].mxu0
    %v1202 = vadd.f32 %v212, %v1201
    %v1203 = vpop.f32.mrb[0].mxu0
    %1204 = vmatprep.mubr.f32.mxu0 0.0
    %1205 = vmatmul.mubr.f32.gmra.mrb[0].mxu0 %v459
    %v1206 = vpop.f32.mrb[0].mxu0
    %v1207 = vadd.f32 %v212, %v1206
    %v1208 = vpop.f32.mrb[0].mxu0
    %1209 = vmatprep.mubr.f32.mxu0 0.0
    %1210 = vmatmul.mubr.f32.gmra.mrb[0].mxu0 %v462
    %v1211 = vpop.f32.mrb[0].mxu0
    %v1212 = vadd.f32 %v212, %v1211
    %v1213 = vpop.f32.mrb[0].mxu0
    %1214 = vmatprep.mubr.f32.mxu0 0.0
    %1215 = vmatmul.mubr.f32.gmra.mrb[0].mxu0 %v465
    %v1216 = vpop.f32.mrb[0].mxu0
    %v1217 = vadd.f32 %v212, %v1216
    %v1218 = vpop.f32.mrb[0].mxu0
    %1219 = vmatprep.mubr.f32.mxu0 0.0
    %1220 = vmatmul.mubr.f32.gmra.mrb[0].mxu0 %v468
    %v1221 = vpop.f32.mrb[0].mxu0
    %v1222 = vadd.f32 %v212, %v1221
    %v1223 = vpop.f32.mrb[0].mxu0
    %1224 = vmatprep.mubr.f32.mxu0 0.0
    %1225 = vmatmul.mubr.f32.gmra.mrb[0].mxu0 %v471
    %v1226 = vpop.f32.mrb[0].mxu0
    %v1227 = vadd.f32 %v212, %v1226
    %v1228 = vpop.f32.mrb[0].mxu0
    %1229 = vmatprep.mubr.f32.mxu0 0.0
    %1230 = vmatmul.mubr.f32.gmra.mrb[0].mxu0 %v474
    %v1231 = vpop.f32.mrb[0].mxu0
    %v1232 = vadd.f32 %v212, %v1231
    %v1233 = vpop.f32.mrb[0].mxu0
    %1234 = vmatprep.mubr.f32.mxu0 0.0
    %1235 = vmatmul.mubr.f32.gmra.mrb[0].mxu0 %v477
    %v1236 = vpop.f32.mrb[0].mxu0
    %v1237 = vadd.f32 %v212, %v1236
    %v1238 = vpop.f32.mrb[0].mxu0
    %1239 = vmatprep.mubr.f32.mxu0 0.0
    %1240 = vmatmul.mubr.f32.gmra.mrb[0].mxu0 %v480
    %v1241 = vpop.f32.mrb[0].mxu0
    %v1242 = vadd.f32 %v212, %v1241
    %v1243 = vpop.f32.mrb[0].mxu0
    %1244 = vmatprep.mubr.f32.mxu0 0.0
    %1245 = vmatmul.mubr.f32.gmra.mrb[0].mxu0 %v483
    %v1246 = vpop.f32.mrb[0].mxu0
    %v1247 = vadd.f32 %v212, %v1246
    %v1248 = vpop.f32.mrb[0].mxu0
    %1249 = vmatprep.mubr.f32.mxu0 0.0
    %1250 = vmatmul.mubr.f32.gmra.mrb[0].mxu0 %v486
    %v1251 = vpop.f32.mrb[0].mxu0
    %v1252 = vadd.f32 %v212, %v1251
    %v1253 = vpop.f32.mrb[0].mxu0
    %1254 = vmatprep.mubr.f32.mxu0 0.0
    %1255 = vmatmul.mubr.f32.gmra.mrb[0].mxu0 %v489
    %v1256 = vpop.f32.mrb[0].mxu0
    %v1257 = vadd.f32 %v212, %v1256
    %v1258 = vpop.f32.mrb[0].mxu0
    %1259 = vmatprep.mubr.f32.mxu0 0.0
    %1260 = vmatmul.mubr.f32.gmra.mrb[0].mxu0 %v492
    %v1261 = vpop.f32.mrb[0].mxu0
    %v1262 = vadd.f32 %v212, %v1261
    %v1263 = vpop.f32.mrb[0].mxu0
    %1264 = vmatprep.mubr.f32.mxu0 0.0
    %1265 = vmatmul.mubr.f32.gmra.mrb[0].mxu0 %v495
    %v1266 = vpop.f32.mrb[0].mxu0
    %v1267 = vadd.f32 %v212, %v1266
    %v1268 = vpop.f32.mrb[0].mxu0
    %1269 = vmatprep.mubr.f32.mxu0 0.0
    %1270 = vmatmul.mubr.f32.gmra.mrb[0].mxu0 %v498
    %v1271 = vpop.f32.mrb[0].mxu0
    %v1272 = vadd.f32 %v212, %v1271
    %v1273 = vpop.f32.mrb[0].mxu0
    %1274 = vmatprep.mubr.f32.mxu0 0.0
    %1275 = vmatmul.mubr.f32.gmra.mrb[0].mxu0 %v501
    %v1276 = vpop.f32.mrb[0].mxu0
    %v1277 = vadd.f32 %v212, %v1276
    %v1278 = vpop.f32.mrb[0].mxu0
    %1279 = vmatprep.mubr.f32.mxu0 0.0
    %1280 = vmatmul.mubr.f32.gmra.mrb[0].mxu0 %v504
    %v1281 = vpop.f32.mrb[0].mxu0
    %v1282 = vadd.f32 %v212, %v1281
    %v1283 = vpop.f32.mrb[0].mxu0
    %1284 = vmatprep.mubr.f32.mxu0 0.0
    %1285 = vmatmul.mubr.f32.gmra.mrb[0].mxu0 %v507
    %v1286 = vpop.f32.mrb[0].mxu0
    %v1287 = vadd.f32 %v212, %v1286
    %v1288 = vpop.f32.mrb[0].mxu0
    %1289 = vmatprep.mubr.f32.mxu0 0.0
    %1290 = vmatmul.mubr.f32.gmra.mrb[0].mxu0 %v510
    %v1291 = vpop.f32.mrb[0].mxu0
    %v1292 = vadd.f32 %v212, %v1291
    %v1293 = vpop.f32.mrb[0].mxu0
    %1294 = vmatprep.mubr.f32.mxu0 0.0
    %1295 = vmatmul.mubr.f32.gmra.mrb[0].mxu0 %v513
    %v1296 = vpop.f32.mrb[0].mxu0
    %v1297 = vadd.f32 %v212, %v1296
    %v1298 = vpop.f32.mrb[0].mxu0
    %1299 = vmatprep.mubr.f32.mxu0 0.0
    %1300 = vmatmul.mubr.f32.gmra.mrb[0].mxu0 %v516
    %v1301 = vpop.f32.mrb[0].mxu0
    %v1302 = vadd.f32 %v212, %v1301
    %v1303 = vpop.f32.mrb[0].mxu0
    %1304 = vmatprep.mubr.f32.mxu0 0.0
    %1305 = vmatmul.mubr.f32.gmra.mrb[0].mxu0 %v519
    %v1306 = vpop.f32.mrb[0].mxu0
    %v1307 = vadd.f32 %v212, %v1306
    %v1308 = vpop.f32.mrb[0].mxu0
    %1309 = vmatprep.mubr.f32.mxu0 0.0
    %1310 = vmatmul.mubr.f32.gmra.mrb[0].mxu0 %v522
    %v1311 = vpop.f32.mrb[0].mxu0
    %v1312 = vadd.f32 %v212, %v1311
    %v1313 = vpop.f32.mrb[0].mxu0
    %1314 = vmatprep.mubr.f32.mxu0 0.0
    %1315 = vmatmul.mubr.f32.gmra.mrb[0].mxu0 %v525
    %v1316 = vpop.f32.mrb[0].mxu0
    %v1317 = vadd.f32 %v212, %v1316
    %v1318 = vpop.f32.mrb[0].mxu0
    %1319 = vmatprep.mubr.f32.mxu0 0.0
    %1320 = vmatmul.mubr.f32.gmra.mrb[0].mxu0 %v528
    %v1321 = vpop.f32.mrb[0].mxu0
    %v1322 = vadd.f32 %v212, %v1321
    %v1323 = vpop.f32.mrb[0].mxu0
    %1324 = vmatprep.mubr.f32.mxu0 0.0
    %1325 = vmatmul.mubr.f32.gmra.mrb[0].mxu0 %v531
    %v1326 = vpop.f32.mrb[0].mxu0
    %v1327 = vadd.f32 %v212, %v1326
    %v1328 = vpop.f32.mrb[0].mxu0
    %1329 = vmatprep.mubr.f32.mxu0 0.0
    %1330 = vmatmul.mubr.f32.gmra.mrb[0].mxu0 %v534
    %v1331 = vpop.f32.mrb[0].mxu0
    %v1332 = vadd.f32 %v212, %v1331
    %v1333 = vpop.f32.mrb[0].mxu0
    %1334 = vmatprep.mubr.f32.mxu0 0.0
    %1335 = vmatmul.mubr.f32.gmra.mrb[0].mxu0 %v537
    %v1336 = vpop.f32.mrb[0].mxu0
    %v1337 = vadd.f32 %v212, %v1336
    %v1338 = vpop.f32.mrb[0].mxu0
    %1339 = vmatprep.mubr.f32.mxu0 0.0
    %1340 = vmatmul.mubr.f32.gmra.mrb[0].mxu0 %v540
    %v1341 = vpop.f32.mrb[0].mxu0
    %v1342 = vadd.f32 %v212, %v1341
    %v1343 = vpop.f32.mrb[0].mxu0
    %1344 = vmatprep.mubr.f32.mxu0 0.0
    %1345 = vmatmul.mubr.f32.gmra.mrb[0].mxu0 %v543
    %v1346 = vpop.f32.mrb[0].mxu0
    %v1347 = vadd.f32 %v212, %v1346
    %v1348 = vpop.f32.mrb[0].mxu0
    %1349 = vmatprep.mubr.f32.mxu0 0.0
    %1350 = vmatmul.mubr.f32.gmra.mrb[0].mxu0 %v546
    %v1351 = vpop.f32.mrb[0].mxu0
    %v1352 = vadd.f32 %v212, %v1351
    %v1353 = vpop.f32.mrb[0].mxu0
    %1354 = vmatprep.mubr.f32.mxu0 0.0
    %1355 = vmatmul.mubr.f32.gmra.mrb[0].mxu0 %v549
    %v1356 = vpop.f32.mrb[0].mxu0
    %v1357 = vadd.f32 %v212, %v1356
    %v1358 = vpop.f32.mrb[0].mxu0
    %1359 = vmatprep.mubr.f32.mxu0 0.0
    %1360 = vmatmul.mubr.f32.gmra.mrb[0].mxu0 %v552
    %v1361 = vpop.f32.mrb[0].mxu0
    %v1362 = vadd.f32 %v212, %v1361
    %v1363 = vpop.f32.mrb[0].mxu0
    %1364 = vmatprep.mubr.f32.mxu0 0.0
    %1365 = vmatmul.mubr.f32.gmra.mrb[0].mxu0 %v555
    %v1366 = vpop.f32.mrb[0].mxu0
    %v1367 = vadd.f32 %v212, %v1366
    %v1368 = vpop.f32.mrb[0].mxu0
    %1369 = vmatprep.mubr.f32.mxu0 0.0
    %1370 = vmatmul.mubr.f32.gmra.mrb[0].mxu0 %v558
    %v1371 = vpop.f32.mrb[0].mxu0
    %v1372 = vadd.f32 %v212, %v1371
    %v1373 = vpop.f32.mrb[0].mxu0
    %1374 = vmatprep.mubr.f32.mxu0 0.0
    %1375 = vmatmul.mubr.f32.gmra.mrb[0].mxu0 %v561
    %v1376 = vpop.f32.mrb[0].mxu0
    %v1377 = vadd.f32 %v212, %v1376
    %v1378 = vpop.f32.mrb[0].mxu0
    %1379 = vmatprep.mubr.f32.mxu0 0.0
    %1380 = vmatmul.mubr.f32.gmra.mrb[0].mxu0 %v564
    %v1381 = vpop.f32.mrb[0].mxu0
    %v1382 = vadd.f32 %v212, %v1381
    %v1383 = vpop.f32.mrb[0].mxu0
    %1384 = vmatprep.mubr.f32.mxu0 0.0
    %1385 = vmatmul.mubr.f32.gmra.mrb[0].mxu0 %v567
    %v1386 = vpop.f32.mrb[0].mxu0
    %v1387 = vadd.f32 %v212, %v1386
    %v1388 = vpop.f32.mrb[0].mxu0
    %1389 = vmatprep.mubr.f32.mxu0 0.0
    %1390 = vmatmul.mubr.f32.gmra.mrb[0].mxu0 %v570
    %v1391 = vpop.f32.mrb[0].mxu0
    %v1392 = vadd.f32 %v212, %v1391
    %v1393 = vpop.f32.mrb[0].mxu0
    %1394 = vmatprep.mubr.f32.mxu0 0.0
    %1395 = vmatmul.mubr.f32.gmra.mrb[0].mxu0 %v573
    %v1396 = vpop.f32.mrb[0].mxu0
    %v1397 = vadd.f32 %v212, %v1396
    %v1398 = vpop.f32.mrb[0].mxu0
    %1399 = vmatprep.mubr.f32.mxu0 0.0
    %1400 = vmatmul.mubr.f32.gmra.mrb[0].mxu0 %v576
    %v1401 = vpop.f32.mrb[0].mxu0
    %v1402 = vadd.f32 %v212, %v1401
    %v1403 = vpop.f32.mrb[0].mxu0
    %1404 = vmatprep.mubr.f32.mxu0 0.0
    %1405 = vmatmul.mubr.f32.gmra.mrb[0].mxu0 %v579
    %v1406 = vpop.f32.mrb[0].mxu0
    %v1407 = vadd.f32 %v212, %v1406
    %v1408 = vpop.f32.mrb[0].mxu0
    %1409 = vmatprep.mubr.f32.mxu0 0.0
    %1410 = vmatmul.mubr.f32.gmra.mrb[0].mxu0 %v582
    %v1411 = vpop.f32.mrb[0].mxu0
    %v1412 = vadd.f32 %v212, %v1411
    %v1413 = vpop.f32.mrb[0].mxu0
    %1414 = vmatprep.mubr.f32.mxu0 0.0
    %1415 = vmatmul.mubr.f32.gmra.mrb[0].mxu0 %v585
    %v1416 = vpop.f32.mrb[0].mxu0
    %v1417 = vadd.f32 %v212, %v1416
    %v1418 = vpop.f32.mrb[0].mxu0
    %1419 = vmatprep.mubr.f32.mxu0 0.0
    %1420 = vmatmul.mubr.f32.gmra.mrb[0].mxu0 %v588
    %v1421 = vpop.f32.mrb[0].mxu0
    %v1422 = vadd.f32 %v212, %v1421
    %v1423 = vpop.f32.mrb[0].mxu0
    %1424 = vmatprep.mubr.f32.mxu0 0.0
    %1425 = vmatmul.mubr.f32.gmra.mrb[0].mxu0 %v591
    %v1426 = vpop.f32.mrb[0].mxu0
    %v1427 = vadd.f32 %v212, %v1426
    %v1428 = vpop.f32.mrb[0].mxu0
    %1429 = vmatprep.mubr.f32.mxu0 0.0
    %1430 = vmatmul.mubr.f32.gmra.mrb[0].mxu0 %v594
    %v1431 = vpop.f32.mrb[0].mxu0
    %v1432 = vadd.f32 %v212, %v1431
    %v1433 = vpop.f32.mrb[0].mxu0
    %1434 = vmatprep.mubr.f32.mxu0 0.0
    %1435 = vmatmul.mubr.f32.gmra.mrb[0].mxu0 %v597
    %v1436 = vpop.f32.mrb[0].mxu0
    %v1437 = vadd.f32 %v212, %v1436
    %v1438 = vpop.f32.mrb[0].mxu0
    %1439 = vmatprep.mubr.f32.mxu0 0.0
    %1440 = vmatmul.mubr.f32.gmra.mrb[0].mxu0 %v600
    %v1441 = vpop.f32.mrb[0].mxu0
    %v1442 = vadd.f32 %v212, %v1441
    %v1443 = vpop.f32.mrb[0].mxu0
    %1444 = vmatprep.mubr.f32.mxu0 0.0
    %1445 = vmatmul.mubr.f32.gmra.mrb[0].mxu0 %v603
    %v1446 = vpop.f32.mrb[0].mxu0
    %v1447 = vadd.f32 %v212, %v1446
    %v1448 = vpop.f32.mrb[0].mxu0
    %1449 = vmatprep.mubr.f32.mxu0 0.0
    %1450 = vmatmul.mubr.f32.gmra.mrb[0].mxu0 %v606
    %v1451 = vpop.f32.mrb[0].mxu0
    %v1452 = vadd.f32 %v212, %v1451
    %v1453 = vpop.f32.mrb[0].mxu0
    %1454 = vmatprep.mubr.f32.mxu0 0.0
    %1455 = vmatmul.mubr.f32.gmra.mrb[0].mxu0 %v609
    %v1456 = vpop.f32.mrb[0].mxu0
    %v1457 = vadd.f32 %v212, %v1456
    %v1458 = vpop.f32.mrb[0].mxu0
    %1459 = vmatprep.mubr.f32.mxu0 0.0
    %1460 = vmatmul.mubr.f32.gmra.mrb[0].mxu0 %v612
    %v1461 = vpop.f32.mrb[0].mxu0
    %v1462 = vadd.f32 %v212, %v1461
    %v1463 = vpop.f32.mrb[0].mxu0
    %1464 = vmatprep.mubr.f32.mxu0 0.0
    %1465 = vmatmul.mubr.f32.gmra.mrb[0].mxu0 %v615
    %v1466 = vpop.f32.mrb[0].mxu0
    %v1467 = vadd.f32 %v212, %v1466
    %v1468 = vpop.f32.mrb[0].mxu0
    %1469 = vmatprep.mubr.f32.mxu0 0.0
    %1470 = vmatmul.mubr.f32.gmra.mrb[0].mxu0 %v618
    %v1471 = vpop.f32.mrb[0].mxu0
    %v1472 = vadd.f32 %v212, %v1471
    %v1473 = vpop.f32.mrb[0].mxu0
    %1474 = vmatprep.mubr.f32.mxu0 0.0
    %1475 = vmatmul.mubr.f32.gmra.mrb[0].mxu0 %v621
    %v1476 = vpop.f32.mrb[0].mxu0
    %v1477 = vadd.f32 %v212, %v1476
    %v1478 = vpop.f32.mrb[0].mxu0
    %1479 = vmatprep.mubr.f32.mxu0 0.0
    %1480 = vmatmul.mubr.f32.gmra.mrb[0].mxu0 %v624
    %v1481 = vpop.f32.mrb[0].mxu0
    %v1482 = vadd.f32 %v212, %v1481
    %v1483 = vpop.f32.mrb[0].mxu0
    %1484 = vmatprep.mubr.f32.mxu0 0.0
    %1485 = vmatmul.mubr.f32.gmra.mrb[0].mxu0 %v627
    %v1486 = vpop.f32.mrb[0].mxu0
    %v1487 = vadd.f32 %v212, %v1486
    %v1488 = vpop.f32.mrb[0].mxu0
    %1489 = vmatprep.mubr.f32.mxu0 0.0
    %1490 = vmatmul.mubr.f32.gmra.mrb[0].mxu0 %v630
    %v1491 = vpop.f32.mrb[0].mxu0
    %v1492 = vadd.f32 %v212, %v1491
    %v1493 = vpop.f32.mrb[0].mxu0
    %1494 = vmatprep.mubr.f32.mxu0 0.0
    %1495 = vmatmul.mubr.f32.gmra.mrb[0].mxu0 %v633
    %v1496 = vpop.f32.mrb[0].mxu0
    %v1497 = vadd.f32 %v212, %v1496
    %v1498 = vpop.f32.mrb[0].mxu0
    %1499 = vmatprep.mubr.f32.mxu0 0.0
    %1500 = vmatmul.mubr.f32.gmra.mrb[0].mxu0 %v636
    %v1501 = vpop.f32.mrb[0].mxu0
    %v1502 = vadd.f32 %v212, %v1501
    %v1503 = vpop.f32.mrb[0].mxu0
    %1504 = vmatprep.mubr.f32.mxu0 0.0
    %1505 = vmatmul.mubr.f32.gmra.mrb[0].mxu0 %v639
    %v1506 = vpop.f32.mrb[0].mxu0
    %v1507 = vadd.f32 %v212, %v1506
    %v1508 = vpop.f32.mrb[0].mxu0
    %1509 = vmatprep.mubr.f32.mxu0 0.0
    %1510 = vmatmul.mubr.f32.gmra.mrb[0].mxu0 %v642
    %v1511 = vpop.f32.mrb[0].mxu0
    %v1512 = vadd.f32 %v212, %v1511
    %v1513 = vpop.f32.mrb[0].mxu0
    %1514 = vmatprep.mubr.f32.mxu0 0.0
    %1515 = vmatmul.mubr.f32.gmra.mrb[0].mxu0 %v645
    %v1516 = vpop.f32.mrb[0].mxu0
    %v1517 = vadd.f32 %v212, %v1516
    %v1518 = vpop.f32.mrb[0].mxu0
    %1519 = vmatprep.mubr.f32.mxu0 0.0
    %1520 = vmatmul.mubr.f32.gmra.mrb[0].mxu0 %v648
    %v1521 = vpop.f32.mrb[0].mxu0
    %v1522 = vadd.f32 %v212, %v1521
    %v1523 = vpop.f32.mrb[0].mxu0
    %1524 = vmatprep.mubr.f32.mxu0 0.0
    %1525 = vmatmul.mubr.f32.gmra.mrb[0].mxu0 %v651
    %v1526 = vpop.f32.mrb[0].mxu0
    %v1527 = vadd.f32 %v212, %v1526
    %v1528 = vpop.f32.mrb[0].mxu0
    %1529 = vmatprep.mubr.f32.mxu0 0.0
    %1530 = vmatmul.mubr.f32.gmra.mrb[0].mxu0 %v654
    %v1531 = vpop.f32.mrb[0].mxu0
    %v1532 = vadd.f32 %v212, %v1531
    %v1533 = vpop.f32.mrb[0].mxu0
    %1534 = vmatprep.mubr.f32.mxu0 0.0
    %1535 = vmatmul.mubr.f32.gmra.mrb[0].mxu0 %v657
    %v1536 = vpop.f32.mrb[0].mxu0
    %v1537 = vadd.f32 %v212, %v1536
    %v1538 = vpop.f32.mrb[0].mxu0
    %1539 = vmatprep.mubr.f32.mxu0 0.0
    %1540 = vmatmul.mubr.f32.gmra.mrb[0].mxu0 %v660
    %v1541 = vpop.f32.mrb[0].mxu0
    %v1542 = vadd.f32 %v212, %v1541
    %v1543 = vpop.f32.mrb[0].mxu0
    %1544 = vmatprep.mubr.f32.mxu0 0.0
    %1545 = vmatmul.mubr.f32.gmra.mrb[0].mxu0 %v663
    %v1546 = vpop.f32.mrb[0].mxu0
    %v1547 = vadd.f32 %v212, %v1546
    %v1548 = vpop.f32.mrb[0].mxu0
    %1549 = vmatprep.mubr.f32.mxu0 0.0
    %1550 = vmatmul.mubr.f32.gmra.mrb[0].mxu0 %v666
    %v1551 = vpop.f32.mrb[0].mxu0
    %v1552 = vadd.f32 %v212, %v1551
    %v1553 = vpop.f32.mrb[0].mxu0
    %1554 = vmatprep.mubr.f32.mxu0 0.0
    %1555 = vmatmul.mubr.f32.gmra.mrb[0].mxu0 %v669
    %v1556 = vpop.f32.mrb[0].mxu0
    %v1557 = vadd.f32 %v212, %v1556
    %v1558 = vpop.f32.mrb[0].mxu0
    %1559 = vmatprep.mubr.f32.mxu0 0.0
    %1560 = vmatmul.mubr.f32.gmra.mrb[0].mxu0 %v672
    %v1561 = vpop.f32.mrb[0].mxu0
    %v1562 = vadd.f32 %v212, %v1561
    %v1563 = vpop.f32.mrb[0].mxu0
    %1564 = vmatprep.mubr.f32.mxu0 0.0
    %1565 = vmatmul.mubr.f32.gmra.mrb[0].mxu0 %v675
    %v1566 = vpop.f32.mrb[0].mxu0
    %v1567 = vadd.f32 %v212, %v1566
    %v1568 = vpop.f32.mrb[0].mxu0
    %1569 = vmatprep.mubr.f32.mxu0 0.0
    %1570 = vmatmul.mubr.f32.gmra.mrb[0].mxu0 %v678
    %v1571 = vpop.f32.mrb[0].mxu0
    %v1572 = vadd.f32 %v212, %v1571
    %v1573 = vpop.f32.mrb[0].mxu0
    %1574 = vmatprep.mubr.f32.mxu0 0.0
    %1575 = vmatmul.mubr.f32.gmra.mrb[0].mxu0 %v681
    %v1576 = vpop.f32.mrb[0].mxu0
    %v1577 = vadd.f32 %v212, %v1576
    %v1578 = vpop.f32.mrb[0].mxu0
    %1579 = vmatprep.mubr.f32.mxu0 0.0
    %1580 = vmatmul.mubr.f32.gmra.mrb[0].mxu0 %v684
    %v1581 = vpop.f32.mrb[0].mxu0
    %v1582 = vadd.f32 %v212, %v1581
    %v1583 = vpop.f32.mrb[0].mxu0
    %1584 = vmatprep.mubr.f32.mxu0 0.0
    %1585 = vmatmul.mubr.f32.gmra.mrb[0].mxu0 %v687
    %v1586 = vpop.f32.mrb[0].mxu0
    %v1587 = vadd.f32 %v212, %v1586
    %v1588 = vpop.f32.mrb[0].mxu0
    %1589 = vmatprep.mubr.f32.mxu0 0.0
    %1590 = vmatmul.mubr.f32.gmra.mrb[0].mxu0 %v690
    %v1591 = vpop.f32.mrb[0].mxu0
    %v1592 = vadd.f32 %v212, %v1591
    %v1593 = vpop.f32.mrb[0].mxu0
    %1594 = vmatprep.mubr.f32.mxu0 0.0
    %1595 = vmatmul.mubr.f32.gmra.mrb[0].mxu0 %v693
    %v1596 = vpop.f32.mrb[0].mxu0
    %v1597 = vadd.f32 %v212, %v1596
    %v1598 = vpop.f32.mrb[0].mxu0
    %1599 = vmatprep.mubr.f32.mxu0 0.0
    %1600 = vmatmul.mubr.f32.gmra.mrb[0].mxu0 %v696
    %v1601 = vpop.f32.mrb[0].mxu0
    %v1602 = vadd.f32 %v212, %v1601
    %v1603 = vpop.f32.mrb[0].mxu0
    %1604 = vmatprep.mubr.f32.mxu0 0.0
    %1605 = vmatmul.mubr.f32.gmra.mrb[0].mxu0 %v699
    %v1606 = vpop.f32.mrb[0].mxu0
    %v1607 = vadd.f32 %v212, %v1606
    %v1608 = vpop.f32.mrb[0].mxu0
    %1609 = vmatprep.mubr.f32.mxu0 0.0
    %1610 = vmatmul.mubr.f32.gmra.mrb[0].mxu0 %v702
    %v1611 = vpop.f32.mrb[0].mxu0
    %v1612 = vadd.f32 %v212, %v1611
    %v1613 = vpop.f32.mrb[0].mxu0
    %1614 = vmatprep.mubr.f32.mxu0 0.0
    %1615 = vmatmul.mubr.f32.gmra.mrb[0].mxu0 %v705
    %v1616 = vpop.f32.mrb[0].mxu0
    %v1617 = vadd.f32 %v212, %v1616
    %v1618 = vpop.f32.mrb[0].mxu0
    %1619 = vmatprep.mubr.f32.mxu0 0.0
    %1620 = vmatmul.mubr.f32.gmra.mrb[0].mxu0 %v708
    %v1621 = vpop.f32.mrb[0].mxu0
    %v1622 = vadd.f32 %v212, %v1621
    %v1623 = vpop.f32.mrb[0].mxu0
    %1624 = vmatprep.mubr.f32.mxu0 0.0
    %1625 = vmatmul.mubr.f32.gmra.mrb[0].mxu0 %v711
    %v1626 = vpop.f32.mrb[0].mxu0
    %v1627 = vadd.f32 %v212, %v1626
    %v1628 = vpop.f32.mrb[0].mxu0
    %1629 = vmatprep.mubr.f32.mxu0 0.0
    %1630 = vmatmul.mubr.f32.gmra.mrb[0].mxu0 %v714
    %v1631 = vpop.f32.mrb[0].mxu0
    %v1632 = vadd.f32 %v212, %v1631
    %v1633 = vpop.f32.mrb[0].mxu0
    %1634 = vmatprep.mubr.f32.mxu0 0.0
    %1635 = vmatmul.mubr.f32.gmra.mrb[0].mxu0 %v717
    %v1636 = vpop.f32.mrb[0].mxu0
    %v1637 = vadd.f32 %v212, %v1636
    %v1638 = vpop.f32.mrb[0].mxu0
    %1639 = vmatprep.mubr.f32.mxu0 0.0
    %1640 = vmatmul.mubr.f32.gmra.mrb[0].mxu0 %v720
    %v1641 = vpop.f32.mrb[0].mxu0
    %v1642 = vadd.f32 %v212, %v1641
    %v1643 = vpop.f32.mrb[0].mxu0
    %1644 = vmatprep.mubr.f32.mxu0 0.0
    %1645 = vmatmul.mubr.f32.gmra.mrb[0].mxu0 %v723
    %v1646 = vpop.f32.mrb[0].mxu0
    %v1647 = vadd.f32 %v212, %v1646
    %v1648 = vpop.f32.mrb[0].mxu0
    %1649 = vmatprep.mubr.f32.mxu0 0.0
    %1650 = vmatmul.mubr.f32.gmra.mrb[0].mxu0 %v726
    %v1651 = vpop.f32.mrb[0].mxu0
    %v1652 = vadd.f32 %v212, %v1651
    %v1653 = vpop.f32.mrb[0].mxu0
    %1654 = vmatprep.mubr.f32.mxu0 0.0
    %1655 = vmatmul.mubr.f32.gmra.mrb[0].mxu0 %v729
    %v1656 = vpop.f32.mrb[0].mxu0
    %v1657 = vadd.f32 %v212, %v1656
    %v1658 = vpop.f32.mrb[0].mxu0
    %1659 = vdwg.mxu0
    %1660 = vst [vmem:[#allocation2] sm:$0xff] %v802
    %1661 = vst [vmem:[#allocation2 + $0x8] sm:$0xff] %v807
    %1662 = vst [vmem:[#allocation2 + $0x10] sm:$0xff] %v812
    %1663 = vst [vmem:[#allocation2 + $0x18] sm:$0xff] %v817
    %1664 = vst [vmem:[#allocation2 + $0x20] sm:$0xff] %v822
    %1665 = vst [vmem:[#allocation2 + $0x28] sm:$0xff] %v827
    %1666 = vst [vmem:[#allocation2 + $0x30] sm:$0xff] %v832
    %1667 = vst [vmem:[#allocation2 + $0x38] sm:$0xff] %v837
    %1668 = vst [vmem:[#allocation2 + $0x40] sm:$0xff] %v842
    %1669 = vst [vmem:[#allocation2 + $0x48] sm:$0xff] %v847
    %1670 = vst [vmem:[#allocation2 + $0x50] sm:$0xff] %v852
    %1671 = vst [vmem:[#allocation2 + $0x58] sm:$0xff] %v857
    %1672 = vst [vmem:[#allocation2 + $0x60] sm:$0xff] %v862
    %1673 = vst [vmem:[#allocation2 + $0x68] sm:$0xff] %v867
    %1674 = vst [vmem:[#allocation2 + $0x70] sm:$0xff] %v872
    %1675 = vst [vmem:[#allocation2 + $0x78] sm:$0xff] %v877
    %1676 = vst [vmem:[#allocation2 + $0x80] sm:$0xff] %v882
    %1677 = vst [vmem:[#allocation2 + $0x88] sm:$0xff] %v887
    %1678 = vst [vmem:[#allocation2 + $0x90] sm:$0xff] %v892
    %1679 = vst [vmem:[#allocation2 + $0x98] sm:$0xff] %v897
    %1680 = vst [vmem:[#allocation2 + $0xa0] sm:$0xff] %v902
    %1681 = vst [vmem:[#allocation2 + $0xa8] sm:$0xff] %v907
    %1682 = vst [vmem:[#allocation2 + $0xb0] sm:$0xff] %v912
    %1683 = vst [vmem:[#allocation2 + $0xb8] sm:$0xff] %v917
    %1684 = vst [vmem:[#allocation2 + $0xc0] sm:$0xff] %v922
    %1685 = vst [vmem:[#allocation2 + $0xc8] sm:$0xff] %v927
    %1686 = vst [vmem:[#allocation2 + $0xd0] sm:$0xff] %v932
    %1687 = vst [vmem:[#allocation2 + $0xd8] sm:$0xff] %v937
    %1688 = vst [vmem:[#allocation2 + $0xe0] sm:$0xff] %v942
    %1689 = vst [vmem:[#allocation2 + $0xe8] sm:$0xff] %v947
    %1690 = vst [vmem:[#allocation2 + $0xf0] sm:$0xff] %v952
    %1691 = vst [vmem:[#allocation2 + $0xf8] sm:$0xff] %v957
    %1692 = vst [vmem:[#allocation2 + $0x100] sm:$0xff] %v962
    %1693 = vst [vmem:[#allocation2 + $0x108] sm:$0xff] %v967
    %1694 = vst [vmem:[#allocation2 + $0x110] sm:$0xff] %v972
    %1695 = vst [vmem:[#allocation2 + $0x118] sm:$0xff] %v977
    %1696 = vst [vmem:[#allocation2 + $0x120] sm:$0xff] %v982
    %1697 = vst [vmem:[#allocation2 + $0x128] sm:$0xff] %v987
    %1698 = vst [vmem:[#allocation2 + $0x130] sm:$0xff] %v992
    %1699 = vst [vmem:[#allocation2 + $0x138] sm:$0xff] %v997
    %1700 = vst [vmem:[#allocation2 + $0x140] sm:$0xff] %v1002
    %1701 = vst [vmem:[#allocation2 + $0x148] sm:$0xff] %v1007
    %1702 = vst [vmem:[#allocation2 + $0x150] sm:$0xff] %v1012
    %1703 = vst [vmem:[#allocation2 + $0x158] sm:$0xff] %v1017
    %1704 = vst [vmem:[#allocation2 + $0x160] sm:$0xff] %v1022
    %1705 = vst [vmem:[#allocation2 + $0x168] sm:$0xff] %v1027
    %1706 = vst [vmem:[#allocation2 + $0x170] sm:$0xff] %v1032
    %1707 = vst [vmem:[#allocation2 + $0x178] sm:$0xff] %v1037
    %1708 = vst [vmem:[#allocation2 + $0x180] sm:$0xff] %v1042
    %1709 = vst [vmem:[#allocation2 + $0x188] sm:$0xff] %v1047
    %1710 = vst [vmem:[#allocation2 + $0x190] sm:$0xff] %v1052
    %1711 = vst [vmem:[#allocation2 + $0x198] sm:$0xff] %v1057
    %1712 = vst [vmem:[#allocation2 + $0x1a0] sm:$0xff] %v1062
    %1713 = vst [vmem:[#allocation2 + $0x1a8] sm:$0xff] %v1067
    %1714 = vst [vmem:[#allocation2 + $0x1b0] sm:$0xff] %v1072
    %1715 = vst [vmem:[#allocation2 + $0x1b8] sm:$0xff] %v1077
    %1716 = vst [vmem:[#allocation2 + $0x1c0] sm:$0xff] %v1082
    %1717 = vst [vmem:[#allocation2 + $0x1c8] sm:$0xff] %v1087
    %1718 = vst [vmem:[#allocation2 + $0x1d0] sm:$0xff] %v1092
    %1719 = vst [vmem:[#allocation2 + $0x1d8] sm:$0xff] %v1097
    %1720 = vst [vmem:[#allocation2 + $0x1e0] sm:$0xff] %v1102
    %1721 = vst [vmem:[#allocation2 + $0x1e8] sm:$0xff] %v1107
    %1722 = vst [vmem:[#allocation2 + $0x1f0] sm:$0xff] %v1112
    %1723 = vst [vmem:[#allocation2 + $0x1f8] sm:$0xff] %v1117
    %1724 = vst [vmem:[#allocation2 + $0x200] sm:$0xff] %v1122
    %1725 = vst [vmem:[#allocation2 + $0x208] sm:$0xff] %v1127
    %1726 = vst [vmem:[#allocation2 + $0x210] sm:$0xff] %v1132
    %1727 = vst [vmem:[#allocation2 + $0x218] sm:$0xff] %v1137
    %1728 = vst [vmem:[#allocation2 + $0x220] sm:$0xff] %v1142
    %1729 = vst [vmem:[#allocation2 + $0x228] sm:$0xff] %v1147
    %1730 = vst [vmem:[#allocation2 + $0x230] sm:$0xff] %v1152
    %1731 = vst [vmem:[#allocation2 + $0x238] sm:$0xff] %v1157
    %1732 = vst [vmem:[#allocation2 + $0x240] sm:$0xff] %v1162
    %1733 = vst [vmem:[#allocation2 + $0x248] sm:$0xff] %v1167
    %1734 = vst [vmem:[#allocation2 + $0x250] sm:$0xff] %v1172
    %1735 = vst [vmem:[#allocation2 + $0x258] sm:$0xff] %v1177
    %1736 = vst [vmem:[#allocation2 + $0x260] sm:$0xff] %v1182
    %1737 = vst [vmem:[#allocation2 + $0x268] sm:$0xff] %v1187
    %1738 = vst [vmem:[#allocation2 + $0x270] sm:$0xff] %v1192
    %1739 = vst [vmem:[#allocation2 + $0x278] sm:$0xff] %v1197
    %1740 = vst [vmem:[#allocation2 + $0x280] sm:$0xff] %v1202
    %1741 = vst [vmem:[#allocation2 + $0x288] sm:$0xff] %v1207
    %1742 = vst [vmem:[#allocation2 + $0x290] sm:$0xff] %v1212
    %1743 = vst [vmem:[#allocation2 + $0x298] sm:$0xff] %v1217
    %1744 = vst [vmem:[#allocation2 + $0x2a0] sm:$0xff] %v1222
    %1745 = vst [vmem:[#allocation2 + $0x2a8] sm:$0xff] %v1227
    %1746 = vst [vmem:[#allocation2 + $0x2b0] sm:$0xff] %v1232
    %1747 = vst [vmem:[#allocation2 + $0x2b8] sm:$0xff] %v1237
    %1748 = vst [vmem:[#allocation2 + $0x2c0] sm:$0xff] %v1242
    %1749 = vst [vmem:[#allocation2 + $0x2c8] sm:$0xff] %v1247
    %1750 = vst [vmem:[#allocation2 + $0x2d0] sm:$0xff] %v1252
    %1751 = vst [vmem:[#allocation2 + $0x2d8] sm:$0xff] %v1257
    %1752 = vst [vmem:[#allocation2 + $0x2e0] sm:$0xff] %v1262
    %1753 = vst [vmem:[#allocation2 + $0x2e8] sm:$0xff] %v1267
    %1754 = vst [vmem:[#allocation2 + $0x2f0] sm:$0xff] %v1272
    %1755 = vst [vmem:[#allocation2 + $0x2f8] sm:$0xff] %v1277
    %1756 = vst [vmem:[#allocation2 + $0x300] sm:$0xff] %v1282
    %1757 = vst [vmem:[#allocation2 + $0x308] sm:$0xff] %v1287
    %1758 = vst [vmem:[#allocation2 + $0x310] sm:$0xff] %v1292
    %1759 = vst [vmem:[#allocation2 + $0x318] sm:$0xff] %v1297
    %1760 = vst [vmem:[#allocation2 + $0x320] sm:$0xff] %v1302
    %1761 = vst [vmem:[#allocation2 + $0x328] sm:$0xff] %v1307
    %1762 = vst [vmem:[#allocation2 + $0x330] sm:$0xff] %v1312
    %1763 = vst [vmem:[#allocation2 + $0x338] sm:$0xff] %v1317
    %1764 = vst [vmem:[#allocation2 + $0x340] sm:$0xff] %v1322
    %1765 = vst [vmem:[#allocation2 + $0x348] sm:$0xff] %v1327
    %1766 = vst [vmem:[#allocation2 + $0x350] sm:$0xff] %v1332
    %1767 = vst [vmem:[#allocation2 + $0x358] sm:$0xff] %v1337
    %1768 = vst [vmem:[#allocation2 + $0x360] sm:$0xff] %v1342
    %1769 = vst [vmem:[#allocation2 + $0x368] sm:$0xff] %v1347
    %1770 = vst [vmem:[#allocation2 + $0x370] sm:$0xff] %v1352
    %1771 = vst [vmem:[#allocation2 + $0x378] sm:$0xff] %v1357
    %1772 = vst [vmem:[#allocation2 + $0x380] sm:$0xff] %v1362
    %1773 = vst [vmem:[#allocation2 + $0x388] sm:$0xff] %v1367
    %1774 = vst [vmem:[#allocation2 + $0x390] sm:$0xff] %v1372
    %1775 = vst [vmem:[#allocation2 + $0x398] sm:$0xff] %v1377
    %1776 = vst [vmem:[#allocation2 + $0x3a0] sm:$0xff] %v1382
    %1777 = vst [vmem:[#allocation2 + $0x3a8] sm:$0xff] %v1387
    %1778 = vst [vmem:[#allocation2 + $0x3b0] sm:$0xff] %v1392
    %1779 = vst [vmem:[#allocation2 + $0x3b8] sm:$0xff] %v1397
    %1780 = vst [vmem:[#allocation2 + $0x3c0] sm:$0xff] %v1402
    %1781 = vst [vmem:[#allocation2 + $0x3c8] sm:$0xff] %v1407
    %1782 = vst [vmem:[#allocation2 + $0x3d0] sm:$0xff] %v1412
    %1783 = vst [vmem:[#allocation2 + $0x3d8] sm:$0xff] %v1417
    %1784 = vst [vmem:[#allocation2 + $0x3e0] sm:$0xff] %v1422
    %1785 = vst [vmem:[#allocation2 + $0x3e8] sm:$0xff] %v1427
    %1786 = vst [vmem:[#allocation2 + $0x3f0] sm:$0xff] %v1432
    %1787 = vst [vmem:[#allocation2 + $0x3f8] sm:$0xff] %v1437
    %1788 = vst [vmem:[#allocation2 + $0x400] sm:$0xff] %v1442
    %1789 = vst [vmem:[#allocation2 + $0x408] sm:$0xff] %v1447
    %1790 = vst [vmem:[#allocation2 + $0x410] sm:$0xff] %v1452
    %1791 = vst [vmem:[#allocation2 + $0x418] sm:$0xff] %v1457
    %1792 = vst [vmem:[#allocation2 + $0x420] sm:$0xff] %v1462
    %1793 = vst [vmem:[#allocation2 + $0x428] sm:$0xff] %v1467
    %1794 = vst [vmem:[#allocation2 + $0x430] sm:$0xff] %v1472
    %1795 = vst [vmem:[#allocation2 + $0x438] sm:$0xff] %v1477
    %1796 = vst [vmem:[#allocation2 + $0x440] sm:$0xff] %v1482
    %1797 = vst [vmem:[#allocation2 + $0x448] sm:$0xff] %v1487
    %1798 = vst [vmem:[#allocation2 + $0x450] sm:$0xff] %v1492
    %1799 = vst [vmem:[#allocation2 + $0x458] sm:$0xff] %v1497
    %1800 = vst [vmem:[#allocation2 + $0x460] sm:$0xff] %v1502
    %1801 = vst [vmem:[#allocation2 + $0x468] sm:$0xff] %v1507
    %1802 = vst [vmem:[#allocation2 + $0x470] sm:$0xff] %v1512
    %1803 = vst [vmem:[#allocation2 + $0x478] sm:$0xff] %v1517
    %1804 = vst [vmem:[#allocation2 + $0x480] sm:$0xff] %v1522
    %1805 = vst [vmem:[#allocation2 + $0x488] sm:$0xff] %v1527
    %1806 = vst [vmem:[#allocation2 + $0x490] sm:$0xff] %v1532
    %1807 = vst [vmem:[#allocation2 + $0x498] sm:$0xff] %v1537
    %1808 = vst [vmem:[#allocation2 + $0x4a0] sm:$0xff] %v1542
    %1809 = vst [vmem:[#allocation2 + $0x4a8] sm:$0xff] %v1547
    %1810 = vst [vmem:[#allocation2 + $0x4b0] sm:$0xff] %v1552
    %1811 = vst [vmem:[#allocation2 + $0x4b8] sm:$0xff] %v1557
    %1812 = vst [vmem:[#allocation2 + $0x4c0] sm:$0xff] %v1562
    %1813 = vst [vmem:[#allocation2 + $0x4c8] sm:$0xff] %v1567
    %1814 = vst [vmem:[#allocation2 + $0x4d0] sm:$0xff] %v1572
    %1815 = vst [vmem:[#allocation2 + $0x4d8] sm:$0xff] %v1577
    %1816 = vst [vmem:[#allocation2 + $0x4e0] sm:$0xff] %v1582
    %1817 = vst [vmem:[#allocation2 + $0x4e8] sm:$0xff] %v1587
    %1818 = vst [vmem:[#allocation2 + $0x4f0] sm:$0xff] %v1592
    %1819 = vst [vmem:[#allocation2 + $0x4f8] sm:$0xff] %v1597
    %1820 = vst [vmem:[#allocation2 + $0x500] sm:$0xff] %v1602
    %1821 = vst [vmem:[#allocation2 + $0x508] sm:$0xff] %v1607
    %1822 = vst [vmem:[#allocation2 + $0x510] sm:$0xff] %v1612
    %1823 = vst [vmem:[#allocation2 + $0x518] sm:$0xff] %v1617
    %1824 = vst [vmem:[#allocation2 + $0x520] sm:$0xff] %v1622
    %1825 = vst [vmem:[#allocation2 + $0x528] sm:$0xff] %v1627
    %1826 = vst [vmem:[#allocation2 + $0x530] sm:$0xff] %v1632
    %1827 = vst [vmem:[#allocation2 + $0x538] sm:$0xff] %v1637
    %1828 = vst [vmem:[#allocation2 + $0x540] sm:$0xff] %v1642
    %1829 = vst [vmem:[#allocation2 + $0x548] sm:$0xff] %v1647
    %1830 = vst [vmem:[#allocation2 + $0x550] sm:$0xff] %v1652
    %1831 = vst [vmem:[#allocation2 + $0x558] sm:$0xff] %v1657
    %v1832 = vld [vmem:[%s3] sm:$0xf]
    %v1833 = vld [vmem:[%s3 + $0x4] sm:$0xf]
    %v1834 = vld [vmem:[%s3 + $0x8] sm:$0xf]
    %v1835 = vld [vmem:[%s3 + $0xc] sm:$0xf]
    %v1836 = vld [vmem:[%s0] sm:$0x3]
    loop: start=0, step=1, limit=43
    $region30: #{lstm_forward.1} parent=1 // loop_pre_header
      _
    $region31: #{lstm_forward.1} parent=1 // loop_header
      %s1838 = sphi 0, %s1842
      %p1839 = scmp.ge.s32.totalorder %s1838, 43
      %v1843 = vphi 0.0, %v3194
      %v1844 = vphi 0.0, %v3188
      %v1845 = vphi 0.0, %v3202
    $region32: #{lstm_forward.1} parent=1 // loop_header_branch
      %1841 = sbr.rel (%p1839) target = $region36
    $region33: #{lstm_forward.1} parent=1 // loop_body
      %s1846 = smul.u32 %s1838, 16
      %s1847 = smul.u32 %s1846, 2
      %s1848 = scalar_lea.vmem [#allocation2], %s1847
      %v1849 = vld [vmem:[%s1848] sm:$0x3]
      %v1850 = vpack.c.bf16 %v1843, %v1843
      %1852 = vrot.lane.b32.xlu0 %v1850, 64
      %v1853 = vpop.permute.xlu0 %1852
      %v1858 = vunpack.c.l.b16 %v1832
      %v1859 = vunpack.c.l.b16 %v1833
      %v1860 = vunpack.c.l.b16 %v1834
      %v1861 = vunpack.c.l.b16 %v1835
      %v1862 = vpack.c.b16 %v1859, %v1858
      %v1863 = vpack.c.b16 %v1861, %v1860
      %vm1866 = vcmask 261120
      %v1868 = vsel %vm1866, %v1853, 0
      %1870 = vmatprep.subr.bf16.mxu0 0
      %1871 = vmatpush1.bf16.msra.mxu0 %v1862
      %1872 = vmatprep.subr.bf16.mxu0 0
      %1873 = vmatpush1.bf16.msra.mxu0 %v1863
      %1874 = vmatprep.subr.bf16.mxu0 0
      %1875 = vmatpush1.bf16.msra.mxu0 0
      %1876 = vmatprep.subr.bf16.mxu0 0
      %1877 = vmatpush1.bf16.msra.mxu0 0
      %1878 = vmatprep.subr.bf16.mxu0 0
      %1879 = vmatpush1.bf16.msra.mxu0 0
      %1880 = vmatprep.subr.bf16.mxu0 0
      %1881 = vmatpush1.bf16.msra.mxu0 0
      %1882 = vmatprep.subr.bf16.mxu0 0
      %1883 = vmatpush1.bf16.msra.mxu0 0
      %1884 = vmatprep.subr.bf16.mxu0 0
      %1885 = vmatpush1.bf16.msra.mxu0 0
      %1886 = vmatprep.subr.bf16.mxu0 0
      %1887 = vmatpush1.bf16.msra.mxu0 0
      %1888 = vmatprep.subr.bf16.mxu0 0
      %1889 = vmatpush1.bf16.msra.mxu0 0
      %1890 = vmatprep.subr.bf16.mxu0 0
      %1891 = vmatpush1.bf16.msra.mxu0 0
      %1892 = vmatprep.subr.bf16.mxu0 0
      %1893 = vmatpush1.bf16.msra.mxu0 0
      %1894 = vmatprep.subr.bf16.mxu0 0
      %1895 = vmatpush1.bf16.msra.mxu0 0
      %1896 = vmatprep.subr.bf16.mxu0 0
      %1897 = vmatpush1.bf16.msra.mxu0 0
      %1898 = vmatprep.subr.bf16.mxu0 0
      %1899 = vmatpush1.bf16.msra.mxu0 0
      %1900 = vmatprep.subr.bf16.mxu0 0
      %1901 = vmatpush1.bf16.msra.mxu0 0
      %1902 = vmatprep.mubr.bf16.mxu0 0
      %1903 = vmatmul.mubr.bf16.gmra.mrb[0].mxu0 %v1868
      %v1904 = vpop.f32.mrb[0].mxu0
      %v1905 = vadd.f32 0.0, %v1904
      %v1906 = vpop.f32.mrb[0].mxu0
      %v1907 = vpop.f32.mrb[0].mxu0
      %v1908 = vpop.f32.mrb[0].mxu0
      %1909 = vdwg.mxu0
      %v1910 = vadd.f32 %v1849, %v1905
      %v1911 = vxor.u32 %v1910, 2147483648
      %v1912 = vmul.f32 %v1911, 1.442695
      %v1913 = vpow.pop %v1912
      %v1914 = vadd.f32 %v1913, 1.0
      %v1915 = vrcp.pop %v1914
      %v1916 = vmul.f32 1.0, %v1915
      %v1917 = vtanh.pop %v1910
      %v1918 = vmul.f32 %v1916, %v1844
      %1920 = vrot.lane.b32.xlu0 %v1917, 32
      %v1921 = vpop.permute.xlu0 %1920
      %v1923 = vmul.f32 %v1916, %v1921
      %1925 = vrot.lane.b32.xlu0 %v1923, 32
      %v1926 = vpop.permute.xlu0 %1925
      %v1928 = vadd.f32 %v1918, %v1926
      %v1929 = vtanh.pop %v1928
      %1931 = vrot.lane.b32.xlu0 %v1929, 32
      %v1932 = vpop.permute.xlu0 %1931
      %v1934 = vmul.f32 %v1916, %v1932
      %v1935 = vstv %s1846
      %vm1936 = vcmp.eq.s32.totalorder %v1836, %v1935
      %v1937 = vsel %vm1936, 1, 0
      %1938 = vset.pattern.permute.xlu0 0
      %1939 = vperm.xlu0 %1938, %v1937
      %v1940 = vpop.permute.xlu0 %1939
      %vm1941 = vcmp.eq.s32.totalorder %v1940, 1
      %v1942 = vsel %vm1941, %v1934, %v1845
      %s1943 = sadd.s32 %s1846, 1
      %s1944 = smul.u32 %s1943, 2
      %s1945 = scalar_lea.vmem [#allocation2], %s1944
      %v1946 = vld [vmem:[%s1945] sm:$0x3]
      %v1947 = vpack.c.bf16 %v1934, %v1934
      %1949 = vrot.lane.b32.xlu0 %v1947, 64
      %v1950 = vpop.permute.xlu0 %1949
      %v1952 = vsel %vm1866, %v1950, 0
      %1954 = vmatprep.subr.bf16.mxu0 0
      %1955 = vmatpush1.bf16.msra.mxu0 %v1862
      %1956 = vmatprep.subr.bf16.mxu0 0
      %1957 = vmatpush1.bf16.msra.mxu0 %v1863
      %1958 = vmatprep.subr.bf16.mxu0 0
      %1959 = vmatpush1.bf16.msra.mxu0 0
      %1960 = vmatprep.subr.bf16.mxu0 0
      %1961 = vmatpush1.bf16.msra.mxu0 0
      %1962 = vmatprep.subr.bf16.mxu0 0
      %1963 = vmatpush1.bf16.msra.mxu0 0
      %1964 = vmatprep.subr.bf16.mxu0 0
      %1965 = vmatpush1.bf16.msra.mxu0 0
      %1966 = vmatprep.subr.bf16.mxu0 0
      %1967 = vmatpush1.bf16.msra.mxu0 0
      %1968 = vmatprep.subr.bf16.mxu0 0
      %1969 = vmatpush1.bf16.msra.mxu0 0
      %1970 = vmatprep.subr.bf16.mxu0 0
      %1971 = vmatpush1.bf16.msra.mxu0 0
      %1972 = vmatprep.subr.bf16.mxu0 0
      %1973 = vmatpush1.bf16.msra.mxu0 0
      %1974 = vmatprep.subr.bf16.mxu0 0
      %1975 = vmatpush1.bf16.msra.mxu0 0
      %1976 = vmatprep.subr.bf16.mxu0 0
      %1977 = vmatpush1.bf16.msra.mxu0 0
      %1978 = vmatprep.subr.bf16.mxu0 0
      %1979 = vmatpush1.bf16.msra.mxu0 0
      %1980 = vmatprep.subr.bf16.mxu0 0
      %1981 = vmatpush1.bf16.msra.mxu0 0
      %1982 = vmatprep.subr.bf16.mxu0 0
      %1983 = vmatpush1.bf16.msra.mxu0 0
      %1984 = vmatprep.subr.bf16.mxu0 0
      %1985 = vmatpush1.bf16.msra.mxu0 0
      %1986 = vmatprep.mubr.bf16.mxu0 0
      %1987 = vmatmul.mubr.bf16.gmra.mrb[0].mxu0 %v1952
      %v1988 = vpop.f32.mrb[0].mxu0
      %v1989 = vadd.f32 0.0, %v1988
      %v1990 = vpop.f32.mrb[0].mxu0
      %v1991 = vpop.f32.mrb[0].mxu0
      %v1992 = vpop.f32.mrb[0].mxu0
      %1993 = vdwg.mxu0
      %v1994 = vadd.f32 %v1946, %v1989
      %v1995 = vxor.u32 %v1994, 2147483648
      %v1996 = vmul.f32 %v1995, 1.442695
      %v1997 = vpow.pop %v1996
      %v1998 = vadd.f32 %v1997, 1.0
      %v1999 = vrcp.pop %v1998
      %v2000 = vmul.f32 1.0, %v1999
      %v2001 = vtanh.pop %v1994
      %v2002 = vmul.f32 %v2000, %v1928
      %2004 = vrot.lane.b32.xlu0 %v2001, 32
      %v2005 = vpop.permute.xlu0 %2004
      %v2007 = vmul.f32 %v2000, %v2005
      %2009 = vrot.lane.b32.xlu0 %v2007, 32
      %v2010 = vpop.permute.xlu0 %2009
      %v2012 = vadd.f32 %v2002, %v2010
      %v2013 = vtanh.pop %v2012
      %2015 = vrot.lane.b32.xlu0 %v2013, 32
      %v2016 = vpop.permute.xlu0 %2015
      %v2018 = vmul.f32 %v2000, %v2016
      %v2019 = vstv %s1943
      %vm2020 = vcmp.eq.s32.totalorder %v1836, %v2019
      %v2021 = vsel %vm2020, 1, 0
      %2022 = vset.pattern.permute.xlu0 0
      %2023 = vperm.xlu0 %2022, %v2021
      %v2024 = vpop.permute.xlu0 %2023
      %vm2025 = vcmp.eq.s32.totalorder %v2024, 1
      %v2026 = vsel %vm2025, %v2018, %v1942
      %s2027 = sadd.s32 %s1846, 2
      %s2028 = smul.u32 %s2027, 2
      %s2029 = scalar_lea.vmem [#allocation2], %s2028
      %v2030 = vld [vmem:[%s2029] sm:$0x3]
      %v2031 = vpack.c.bf16 %v2018, %v2018
      %2033 = vrot.lane.b32.xlu0 %v2031, 64
      %v2034 = vpop.permute.xlu0 %2033
      %v2036 = vsel %vm1866, %v2034, 0
      %2038 = vmatprep.subr.bf16.mxu0 0
      %2039 = vmatpush1.bf16.msra.mxu0 %v1862
      %2040 = vmatprep.subr.bf16.mxu0 0
      %2041 = vmatpush1.bf16.msra.mxu0 %v1863
      %2042 = vmatprep.subr.bf16.mxu0 0
      %2043 = vmatpush1.bf16.msra.mxu0 0
      %2044 = vmatprep.subr.bf16.mxu0 0
      %2045 = vmatpush1.bf16.msra.mxu0 0
      %2046 = vmatprep.subr.bf16.mxu0 0
      %2047 = vmatpush1.bf16.msra.mxu0 0
      %2048 = vmatprep.subr.bf16.mxu0 0
      %2049 = vmatpush1.bf16.msra.mxu0 0
      %2050 = vmatprep.subr.bf16.mxu0 0
      %2051 = vmatpush1.bf16.msra.mxu0 0
      %2052 = vmatprep.subr.bf16.mxu0 0
      %2053 = vmatpush1.bf16.msra.mxu0 0
      %2054 = vmatprep.subr.bf16.mxu0 0
      %2055 = vmatpush1.bf16.msra.mxu0 0
      %2056 = vmatprep.subr.bf16.mxu0 0
      %2057 = vmatpush1.bf16.msra.mxu0 0
      %2058 = vmatprep.subr.bf16.mxu0 0
      %2059 = vmatpush1.bf16.msra.mxu0 0
      %2060 = vmatprep.subr.bf16.mxu0 0
      %2061 = vmatpush1.bf16.msra.mxu0 0
      %2062 = vmatprep.subr.bf16.mxu0 0
      %2063 = vmatpush1.bf16.msra.mxu0 0
      %2064 = vmatprep.subr.bf16.mxu0 0
      %2065 = vmatpush1.bf16.msra.mxu0 0
      %2066 = vmatprep.subr.bf16.mxu0 0
      %2067 = vmatpush1.bf16.msra.mxu0 0
      %2068 = vmatprep.subr.bf16.mxu0 0
      %2069 = vmatpush1.bf16.msra.mxu0 0
      %2070 = vmatprep.mubr.bf16.mxu0 0
      %2071 = vmatmul.mubr.bf16.gmra.mrb[0].mxu0 %v2036
      %v2072 = vpop.f32.mrb[0].mxu0
      %v2073 = vadd.f32 0.0, %v2072
      %v2074 = vpop.f32.mrb[0].mxu0
      %v2075 = vpop.f32.mrb[0].mxu0
      %v2076 = vpop.f32.mrb[0].mxu0
      %2077 = vdwg.mxu0
      %v2078 = vadd.f32 %v2030, %v2073
      %v2079 = vxor.u32 %v2078, 2147483648
      %v2080 = vmul.f32 %v2079, 1.442695
      %v2081 = vpow.pop %v2080
      %v2082 = vadd.f32 %v2081, 1.0
      %v2083 = vrcp.pop %v2082
      %v2084 = vmul.f32 1.0, %v2083
      %v2085 = vtanh.pop %v2078
      %v2086 = vmul.f32 %v2084, %v2012
      %2088 = vrot.lane.b32.xlu0 %v2085, 32
      %v2089 = vpop.permute.xlu0 %2088
      %v2091 = vmul.f32 %v2084, %v2089
      %2093 = vrot.lane.b32.xlu0 %v2091, 32
      %v2094 = vpop.permute.xlu0 %2093
      %v2096 = vadd.f32 %v2086, %v2094
      %v2097 = vtanh.pop %v2096
      %2099 = vrot.lane.b32.xlu0 %v2097, 32
      %v2100 = vpop.permute.xlu0 %2099
      %v2102 = vmul.f32 %v2084, %v2100
      %v2103 = vstv %s2027
      %vm2104 = vcmp.eq.s32.totalorder %v1836, %v2103
      %v2105 = vsel %vm2104, 1, 0
      %2106 = vset.pattern.permute.xlu0 0
      %2107 = vperm.xlu0 %2106, %v2105
      %v2108 = vpop.permute.xlu0 %2107
      %vm2109 = vcmp.eq.s32.totalorder %v2108, 1
      %v2110 = vsel %vm2109, %v2102, %v2026
      %s2111 = sadd.s32 %s1846, 3
      %s2112 = smul.u32 %s2111, 2
      %s2113 = scalar_lea.vmem [#allocation2], %s2112
      %v2114 = vld [vmem:[%s2113] sm:$0x3]
      %v2115 = vpack.c.bf16 %v2102, %v2102
      %2117 = vrot.lane.b32.xlu0 %v2115, 64
      %v2118 = vpop.permute.xlu0 %2117
      %v2120 = vsel %vm1866, %v2118, 0
      %2122 = vmatprep.subr.bf16.mxu0 0
      %2123 = vmatpush1.bf16.msra.mxu0 %v1862
      %2124 = vmatprep.subr.bf16.mxu0 0
      %2125 = vmatpush1.bf16.msra.mxu0 %v1863
      %2126 = vmatprep.subr.bf16.mxu0 0
      %2127 = vmatpush1.bf16.msra.mxu0 0
      %2128 = vmatprep.subr.bf16.mxu0 0
      %2129 = vmatpush1.bf16.msra.mxu0 0
      %2130 = vmatprep.subr.bf16.mxu0 0
      %2131 = vmatpush1.bf16.msra.mxu0 0
      %2132 = vmatprep.subr.bf16.mxu0 0
      %2133 = vmatpush1.bf16.msra.mxu0 0
      %2134 = vmatprep.subr.bf16.mxu0 0
      %2135 = vmatpush1.bf16.msra.mxu0 0
      %2136 = vmatprep.subr.bf16.mxu0 0
      %2137 = vmatpush1.bf16.msra.mxu0 0
      %2138 = vmatprep.subr.bf16.mxu0 0
      %2139 = vmatpush1.bf16.msra.mxu0 0
      %2140 = vmatprep.subr.bf16.mxu0 0
      %2141 = vmatpush1.bf16.msra.mxu0 0
      %2142 = vmatprep.subr.bf16.mxu0 0
      %2143 = vmatpush1.bf16.msra.mxu0 0
      %2144 = vmatprep.subr.bf16.mxu0 0
      %2145 = vmatpush1.bf16.msra.mxu0 0
      %2146 = vmatprep.subr.bf16.mxu0 0
      %2147 = vmatpush1.bf16.msra.mxu0 0
      %2148 = vmatprep.subr.bf16.mxu0 0
      %2149 = vmatpush1.bf16.msra.mxu0 0
      %2150 = vmatprep.subr.bf16.mxu0 0
      %2151 = vmatpush1.bf16.msra.mxu0 0
      %2152 = vmatprep.subr.bf16.mxu0 0
      %2153 = vmatpush1.bf16.msra.mxu0 0
      %2154 = vmatprep.mubr.bf16.mxu0 0
      %2155 = vmatmul.mubr.bf16.gmra.mrb[0].mxu0 %v2120
      %v2156 = vpop.f32.mrb[0].mxu0
      %v2157 = vadd.f32 0.0, %v2156
      %v2158 = vpop.f32.mrb[0].mxu0
      %v2159 = vpop.f32.mrb[0].mxu0
      %v2160 = vpop.f32.mrb[0].mxu0
      %2161 = vdwg.mxu0
      %v2162 = vadd.f32 %v2114, %v2157
      %v2163 = vxor.u32 %v2162, 2147483648
      %v2164 = vmul.f32 %v2163, 1.442695
      %v2165 = vpow.pop %v2164
      %v2166 = vadd.f32 %v2165, 1.0
      %v2167 = vrcp.pop %v2166
      %v2168 = vmul.f32 1.0, %v2167
      %v2169 = vtanh.pop %v2162
      %v2170 = vmul.f32 %v2168, %v2096
      %2172 = vrot.lane.b32.xlu0 %v2169, 32
      %v2173 = vpop.permute.xlu0 %2172
      %v2175 = vmul.f32 %v2168, %v2173
      %2177 = vrot.lane.b32.xlu0 %v2175, 32
      %v2178 = vpop.permute.xlu0 %2177
      %v2180 = vadd.f32 %v2170, %v2178
      %v2181 = vtanh.pop %v2180
      %2183 = vrot.lane.b32.xlu0 %v2181, 32
      %v2184 = vpop.permute.xlu0 %2183
      %v2186 = vmul.f32 %v2168, %v2184
      %v2187 = vstv %s2111
      %vm2188 = vcmp.eq.s32.totalorder %v1836, %v2187
      %v2189 = vsel %vm2188, 1, 0
      %2190 = vset.pattern.permute.xlu0 0
      %2191 = vperm.xlu0 %2190, %v2189
      %v2192 = vpop.permute.xlu0 %2191
      %vm2193 = vcmp.eq.s32.totalorder %v2192, 1
      %v2194 = vsel %vm2193, %v2186, %v2110
      %s2195 = sadd.s32 %s1846, 4
      %s2196 = smul.u32 %s2195, 2
      %s2197 = scalar_lea.vmem [#allocation2], %s2196
      %v2198 = vld [vmem:[%s2197] sm:$0x3]
      %v2199 = vpack.c.bf16 %v2186, %v2186
      %2201 = vrot.lane.b32.xlu0 %v2199, 64
      %v2202 = vpop.permute.xlu0 %2201
      %v2204 = vsel %vm1866, %v2202, 0
      %2206 = vmatprep.subr.bf16.mxu0 0
      %2207 = vmatpush1.bf16.msra.mxu0 %v1862
      %2208 = vmatprep.subr.bf16.mxu0 0
      %2209 = vmatpush1.bf16.msra.mxu0 %v1863
      %2210 = vmatprep.subr.bf16.mxu0 0
      %2211 = vmatpush1.bf16.msra.mxu0 0
      %2212 = vmatprep.subr.bf16.mxu0 0
      %2213 = vmatpush1.bf16.msra.mxu0 0
      %2214 = vmatprep.subr.bf16.mxu0 0
      %2215 = vmatpush1.bf16.msra.mxu0 0
      %2216 = vmatprep.subr.bf16.mxu0 0
      %2217 = vmatpush1.bf16.msra.mxu0 0
      %2218 = vmatprep.subr.bf16.mxu0 0
      %2219 = vmatpush1.bf16.msra.mxu0 0
      %2220 = vmatprep.subr.bf16.mxu0 0
      %2221 = vmatpush1.bf16.msra.mxu0 0
      %2222 = vmatprep.subr.bf16.mxu0 0
      %2223 = vmatpush1.bf16.msra.mxu0 0
      %2224 = vmatprep.subr.bf16.mxu0 0
      %2225 = vmatpush1.bf16.msra.mxu0 0
      %2226 = vmatprep.subr.bf16.mxu0 0
      %2227 = vmatpush1.bf16.msra.mxu0 0
      %2228 = vmatprep.subr.bf16.mxu0 0
      %2229 = vmatpush1.bf16.msra.mxu0 0
      %2230 = vmatprep.subr.bf16.mxu0 0
      %2231 = vmatpush1.bf16.msra.mxu0 0
      %2232 = vmatprep.subr.bf16.mxu0 0
      %2233 = vmatpush1.bf16.msra.mxu0 0
      %2234 = vmatprep.subr.bf16.mxu0 0
      %2235 = vmatpush1.bf16.msra.mxu0 0
      %2236 = vmatprep.subr.bf16.mxu0 0
      %2237 = vmatpush1.bf16.msra.mxu0 0
      %2238 = vmatprep.mubr.bf16.mxu0 0
      %2239 = vmatmul.mubr.bf16.gmra.mrb[0].mxu0 %v2204
      %v2240 = vpop.f32.mrb[0].mxu0
      %v2241 = vadd.f32 0.0, %v2240
      %v2242 = vpop.f32.mrb[0].mxu0
      %v2243 = vpop.f32.mrb[0].mxu0
      %v2244 = vpop.f32.mrb[0].mxu0
      %2245 = vdwg.mxu0
      %v2246 = vadd.f32 %v2198, %v2241
      %v2247 = vxor.u32 %v2246, 2147483648
      %v2248 = vmul.f32 %v2247, 1.442695
      %v2249 = vpow.pop %v2248
      %v2250 = vadd.f32 %v2249, 1.0
      %v2251 = vrcp.pop %v2250
      %v2252 = vmul.f32 1.0, %v2251
      %v2253 = vtanh.pop %v2246
      %v2254 = vmul.f32 %v2252, %v2180
      %2256 = vrot.lane.b32.xlu0 %v2253, 32
      %v2257 = vpop.permute.xlu0 %2256
      %v2259 = vmul.f32 %v2252, %v2257
      %2261 = vrot.lane.b32.xlu0 %v2259, 32
      %v2262 = vpop.permute.xlu0 %2261
      %v2264 = vadd.f32 %v2254, %v2262
      %v2265 = vtanh.pop %v2264
      %2267 = vrot.lane.b32.xlu0 %v2265, 32
      %v2268 = vpop.permute.xlu0 %2267
      %v2270 = vmul.f32 %v2252, %v2268
      %v2271 = vstv %s2195
      %vm2272 = vcmp.eq.s32.totalorder %v1836, %v2271
      %v2273 = vsel %vm2272, 1, 0
      %2274 = vset.pattern.permute.xlu0 0
      %2275 = vperm.xlu0 %2274, %v2273
      %v2276 = vpop.permute.xlu0 %2275
      %vm2277 = vcmp.eq.s32.totalorder %v2276, 1
      %v2278 = vsel %vm2277, %v2270, %v2194
      %s2279 = sadd.s32 %s1846, 5
      %s2280 = smul.u32 %s2279, 2
      %s2281 = scalar_lea.vmem [#allocation2], %s2280
      %v2282 = vld [vmem:[%s2281] sm:$0x3]
      %v2283 = vpack.c.bf16 %v2270, %v2270
      %2285 = vrot.lane.b32.xlu0 %v2283, 64
      %v2286 = vpop.permute.xlu0 %2285
      %v2288 = vsel %vm1866, %v2286, 0
      %2290 = vmatprep.subr.bf16.mxu0 0
      %2291 = vmatpush1.bf16.msra.mxu0 %v1862
      %2292 = vmatprep.subr.bf16.mxu0 0
      %2293 = vmatpush1.bf16.msra.mxu0 %v1863
      %2294 = vmatprep.subr.bf16.mxu0 0
      %2295 = vmatpush1.bf16.msra.mxu0 0
      %2296 = vmatprep.subr.bf16.mxu0 0
      %2297 = vmatpush1.bf16.msra.mxu0 0
      %2298 = vmatprep.subr.bf16.mxu0 0
      %2299 = vmatpush1.bf16.msra.mxu0 0
      %2300 = vmatprep.subr.bf16.mxu0 0
      %2301 = vmatpush1.bf16.msra.mxu0 0
      %2302 = vmatprep.subr.bf16.mxu0 0
      %2303 = vmatpush1.bf16.msra.mxu0 0
      %2304 = vmatprep.subr.bf16.mxu0 0
      %2305 = vmatpush1.bf16.msra.mxu0 0
      %2306 = vmatprep.subr.bf16.mxu0 0
      %2307 = vmatpush1.bf16.msra.mxu0 0
      %2308 = vmatprep.subr.bf16.mxu0 0
      %2309 = vmatpush1.bf16.msra.mxu0 0
      %2310 = vmatprep.subr.bf16.mxu0 0
      %2311 = vmatpush1.bf16.msra.mxu0 0
      %2312 = vmatprep.subr.bf16.mxu0 0
      %2313 = vmatpush1.bf16.msra.mxu0 0
      %2314 = vmatprep.subr.bf16.mxu0 0
      %2315 = vmatpush1.bf16.msra.mxu0 0
      %2316 = vmatprep.subr.bf16.mxu0 0
      %2317 = vmatpush1.bf16.msra.mxu0 0
      %2318 = vmatprep.subr.bf16.mxu0 0
      %2319 = vmatpush1.bf16.msra.mxu0 0
      %2320 = vmatprep.subr.bf16.mxu0 0
      %2321 = vmatpush1.bf16.msra.mxu0 0
      %2322 = vmatprep.mubr.bf16.mxu0 0
      %2323 = vmatmul.mubr.bf16.gmra.mrb[0].mxu0 %v2288
      %v2324 = vpop.f32.mrb[0].mxu0
      %v2325 = vadd.f32 0.0, %v2324
      %v2326 = vpop.f32.mrb[0].mxu0
      %v2327 = vpop.f32.mrb[0].mxu0
      %v2328 = vpop.f32.mrb[0].mxu0
      %2329 = vdwg.mxu0
      %v2330 = vadd.f32 %v2282, %v2325
      %v2331 = vxor.u32 %v2330, 2147483648
      %v2332 = vmul.f32 %v2331, 1.442695
      %v2333 = vpow.pop %v2332
      %v2334 = vadd.f32 %v2333, 1.0
      %v2335 = vrcp.pop %v2334
      %v2336 = vmul.f32 1.0, %v2335
      %v2337 = vtanh.pop %v2330
      %v2338 = vmul.f32 %v2336, %v2264
      %2340 = vrot.lane.b32.xlu0 %v2337, 32
      %v2341 = vpop.permute.xlu0 %2340
      %v2343 = vmul.f32 %v2336, %v2341
      %2345 = vrot.lane.b32.xlu0 %v2343, 32
      %v2346 = vpop.permute.xlu0 %2345
      %v2348 = vadd.f32 %v2338, %v2346
      %v2349 = vtanh.pop %v2348
      %2351 = vrot.lane.b32.xlu0 %v2349, 32
      %v2352 = vpop.permute.xlu0 %2351
      %v2354 = vmul.f32 %v2336, %v2352
      %v2355 = vstv %s2279
      %vm2356 = vcmp.eq.s32.totalorder %v1836, %v2355
      %v2357 = vsel %vm2356, 1, 0
      %2358 = vset.pattern.permute.xlu0 0
      %2359 = vperm.xlu0 %2358, %v2357
      %v2360 = vpop.permute.xlu0 %2359
      %vm2361 = vcmp.eq.s32.totalorder %v2360, 1
      %v2362 = vsel %vm2361, %v2354, %v2278
      %s2363 = sadd.s32 %s1846, 6
      %s2364 = smul.u32 %s2363, 2
      %s2365 = scalar_lea.vmem [#allocation2], %s2364
      %v2366 = vld [vmem:[%s2365] sm:$0x3]
      %v2367 = vpack.c.bf16 %v2354, %v2354
      %2369 = vrot.lane.b32.xlu0 %v2367, 64
      %v2370 = vpop.permute.xlu0 %2369
      %v2372 = vsel %vm1866, %v2370, 0
      %2374 = vmatprep.subr.bf16.mxu0 0
      %2375 = vmatpush1.bf16.msra.mxu0 %v1862
      %2376 = vmatprep.subr.bf16.mxu0 0
      %2377 = vmatpush1.bf16.msra.mxu0 %v1863
      %2378 = vmatprep.subr.bf16.mxu0 0
      %2379 = vmatpush1.bf16.msra.mxu0 0
      %2380 = vmatprep.subr.bf16.mxu0 0
      %2381 = vmatpush1.bf16.msra.mxu0 0
      %2382 = vmatprep.subr.bf16.mxu0 0
      %2383 = vmatpush1.bf16.msra.mxu0 0
      %2384 = vmatprep.subr.bf16.mxu0 0
      %2385 = vmatpush1.bf16.msra.mxu0 0
      %2386 = vmatprep.subr.bf16.mxu0 0
      %2387 = vmatpush1.bf16.msra.mxu0 0
      %2388 = vmatprep.subr.bf16.mxu0 0
      %2389 = vmatpush1.bf16.msra.mxu0 0
      %2390 = vmatprep.subr.bf16.mxu0 0
      %2391 = vmatpush1.bf16.msra.mxu0 0
      %2392 = vmatprep.subr.bf16.mxu0 0
      %2393 = vmatpush1.bf16.msra.mxu0 0
      %2394 = vmatprep.subr.bf16.mxu0 0
      %2395 = vmatpush1.bf16.msra.mxu0 0
      %2396 = vmatprep.subr.bf16.mxu0 0
      %2397 = vmatpush1.bf16.msra.mxu0 0
      %2398 = vmatprep.subr.bf16.mxu0 0
      %2399 = vmatpush1.bf16.msra.mxu0 0
      %2400 = vmatprep.subr.bf16.mxu0 0
      %2401 = vmatpush1.bf16.msra.mxu0 0
      %2402 = vmatprep.subr.bf16.mxu0 0
      %2403 = vmatpush1.bf16.msra.mxu0 0
      %2404 = vmatprep.subr.bf16.mxu0 0
      %2405 = vmatpush1.bf16.msra.mxu0 0
      %2406 = vmatprep.mubr.bf16.mxu0 0
      %2407 = vmatmul.mubr.bf16.gmra.mrb[0].mxu0 %v2372
      %v2408 = vpop.f32.mrb[0].mxu0
      %v2409 = vadd.f32 0.0, %v2408
      %v2410 = vpop.f32.mrb[0].mxu0
      %v2411 = vpop.f32.mrb[0].mxu0
      %v2412 = vpop.f32.mrb[0].mxu0
      %2413 = vdwg.mxu0
      %v2414 = vadd.f32 %v2366, %v2409
      %v2415 = vxor.u32 %v2414, 2147483648
      %v2416 = vmul.f32 %v2415, 1.442695
      %v2417 = vpow.pop %v2416
      %v2418 = vadd.f32 %v2417, 1.0
      %v2419 = vrcp.pop %v2418
      %v2420 = vmul.f32 1.0, %v2419
      %v2421 = vtanh.pop %v2414
      %v2422 = vmul.f32 %v2420, %v2348
      %2424 = vrot.lane.b32.xlu0 %v2421, 32
      %v2425 = vpop.permute.xlu0 %2424
      %v2427 = vmul.f32 %v2420, %v2425
      %2429 = vrot.lane.b32.xlu0 %v2427, 32
      %v2430 = vpop.permute.xlu0 %2429
      %v2432 = vadd.f32 %v2422, %v2430
      %v2433 = vtanh.pop %v2432
      %2435 = vrot.lane.b32.xlu0 %v2433, 32
      %v2436 = vpop.permute.xlu0 %2435
      %v2438 = vmul.f32 %v2420, %v2436
      %v2439 = vstv %s2363
      %vm2440 = vcmp.eq.s32.totalorder %v1836, %v2439
      %v2441 = vsel %vm2440, 1, 0
      %2442 = vset.pattern.permute.xlu0 0
      %2443 = vperm.xlu0 %2442, %v2441
      %v2444 = vpop.permute.xlu0 %2443
      %vm2445 = vcmp.eq.s32.totalorder %v2444, 1
      %v2446 = vsel %vm2445, %v2438, %v2362
      %s2447 = sadd.s32 %s1846, 7
      %s2448 = smul.u32 %s2447, 2
      %s2449 = scalar_lea.vmem [#allocation2], %s2448
      %v2450 = vld [vmem:[%s2449] sm:$0x3]
      %v2451 = vpack.c.bf16 %v2438, %v2438
      %2453 = vrot.lane.b32.xlu0 %v2451, 64
      %v2454 = vpop.permute.xlu0 %2453
      %v2456 = vsel %vm1866, %v2454, 0
      %2458 = vmatprep.subr.bf16.mxu0 0
      %2459 = vmatpush1.bf16.msra.mxu0 %v1862
      %2460 = vmatprep.subr.bf16.mxu0 0
      %2461 = vmatpush1.bf16.msra.mxu0 %v1863
      %2462 = vmatprep.subr.bf16.mxu0 0
      %2463 = vmatpush1.bf16.msra.mxu0 0
      %2464 = vmatprep.subr.bf16.mxu0 0
      %2465 = vmatpush1.bf16.msra.mxu0 0
      %2466 = vmatprep.subr.bf16.mxu0 0
      %2467 = vmatpush1.bf16.msra.mxu0 0
      %2468 = vmatprep.subr.bf16.mxu0 0
      %2469 = vmatpush1.bf16.msra.mxu0 0
      %2470 = vmatprep.subr.bf16.mxu0 0
      %2471 = vmatpush1.bf16.msra.mxu0 0
      %2472 = vmatprep.subr.bf16.mxu0 0
      %2473 = vmatpush1.bf16.msra.mxu0 0
      %2474 = vmatprep.subr.bf16.mxu0 0
      %2475 = vmatpush1.bf16.msra.mxu0 0
      %2476 = vmatprep.subr.bf16.mxu0 0
      %2477 = vmatpush1.bf16.msra.mxu0 0
      %2478 = vmatprep.subr.bf16.mxu0 0
      %2479 = vmatpush1.bf16.msra.mxu0 0
      %2480 = vmatprep.subr.bf16.mxu0 0
      %2481 = vmatpush1.bf16.msra.mxu0 0
      %2482 = vmatprep.subr.bf16.mxu0 0
      %2483 = vmatpush1.bf16.msra.mxu0 0
      %2484 = vmatprep.subr.bf16.mxu0 0
      %2485 = vmatpush1.bf16.msra.mxu0 0
      %2486 = vmatprep.subr.bf16.mxu0 0
      %2487 = vmatpush1.bf16.msra.mxu0 0
      %2488 = vmatprep.subr.bf16.mxu0 0
      %2489 = vmatpush1.bf16.msra.mxu0 0
      %2490 = vmatprep.mubr.bf16.mxu0 0
      %2491 = vmatmul.mubr.bf16.gmra.mrb[0].mxu0 %v2456
      %v2492 = vpop.f32.mrb[0].mxu0
      %v2493 = vadd.f32 0.0, %v2492
      %v2494 = vpop.f32.mrb[0].mxu0
      %v2495 = vpop.f32.mrb[0].mxu0
      %v2496 = vpop.f32.mrb[0].mxu0
      %2497 = vdwg.mxu0
      %v2498 = vadd.f32 %v2450, %v2493
      %v2499 = vxor.u32 %v2498, 2147483648
      %v2500 = vmul.f32 %v2499, 1.442695
      %v2501 = vpow.pop %v2500
      %v2502 = vadd.f32 %v2501, 1.0
      %v2503 = vrcp.pop %v2502
      %v2504 = vmul.f32 1.0, %v2503
      %v2505 = vtanh.pop %v2498
      %v2506 = vmul.f32 %v2504, %v2432
      %2508 = vrot.lane.b32.xlu0 %v2505, 32
      %v2509 = vpop.permute.xlu0 %2508
      %v2511 = vmul.f32 %v2504, %v2509
      %2513 = vrot.lane.b32.xlu0 %v2511, 32
      %v2514 = vpop.permute.xlu0 %2513
      %v2516 = vadd.f32 %v2506, %v2514
      %v2517 = vtanh.pop %v2516
      %2519 = vrot.lane.b32.xlu0 %v2517, 32
      %v2520 = vpop.permute.xlu0 %2519
      %v2522 = vmul.f32 %v2504, %v2520
      %v2523 = vstv %s2447
      %vm2524 = vcmp.eq.s32.totalorder %v1836, %v2523
      %v2525 = vsel %vm2524, 1, 0
      %2526 = vset.pattern.permute.xlu0 0
      %2527 = vperm.xlu0 %2526, %v2525
      %v2528 = vpop.permute.xlu0 %2527
      %vm2529 = vcmp.eq.s32.totalorder %v2528, 1
      %v2530 = vsel %vm2529, %v2522, %v2446
      %s2531 = sadd.s32 %s1846, 8
      %s2532 = smul.u32 %s2531, 2
      %s2533 = scalar_lea.vmem [#allocation2], %s2532
      %v2534 = vld [vmem:[%s2533] sm:$0x3]
      %v2535 = vpack.c.bf16 %v2522, %v2522
      %2537 = vrot.lane.b32.xlu0 %v2535, 64
      %v2538 = vpop.permute.xlu0 %2537
      %v2540 = vsel %vm1866, %v2538, 0
      %2542 = vmatprep.subr.bf16.mxu0 0
      %2543 = vmatpush1.bf16.msra.mxu0 %v1862
      %2544 = vmatprep.subr.bf16.mxu0 0
      %2545 = vmatpush1.bf16.msra.mxu0 %v1863
      %2546 = vmatprep.subr.bf16.mxu0 0
      %2547 = vmatpush1.bf16.msra.mxu0 0
      %2548 = vmatprep.subr.bf16.mxu0 0
      %2549 = vmatpush1.bf16.msra.mxu0 0
      %2550 = vmatprep.subr.bf16.mxu0 0
      %2551 = vmatpush1.bf16.msra.mxu0 0
      %2552 = vmatprep.subr.bf16.mxu0 0
      %2553 = vmatpush1.bf16.msra.mxu0 0
      %2554 = vmatprep.subr.bf16.mxu0 0
      %2555 = vmatpush1.bf16.msra.mxu0 0
      %2556 = vmatprep.subr.bf16.mxu0 0
      %2557 = vmatpush1.bf16.msra.mxu0 0
      %2558 = vmatprep.subr.bf16.mxu0 0
      %2559 = vmatpush1.bf16.msra.mxu0 0
      %2560 = vmatprep.subr.bf16.mxu0 0
      %2561 = vmatpush1.bf16.msra.mxu0 0
      %2562 = vmatprep.subr.bf16.mxu0 0
      %2563 = vmatpush1.bf16.msra.mxu0 0
      %2564 = vmatprep.subr.bf16.mxu0 0
      %2565 = vmatpush1.bf16.msra.mxu0 0
      %2566 = vmatprep.subr.bf16.mxu0 0
      %2567 = vmatpush1.bf16.msra.mxu0 0
      %2568 = vmatprep.subr.bf16.mxu0 0
      %2569 = vmatpush1.bf16.msra.mxu0 0
      %2570 = vmatprep.subr.bf16.mxu0 0
      %2571 = vmatpush1.bf16.msra.mxu0 0
      %2572 = vmatprep.subr.bf16.mxu0 0
      %2573 = vmatpush1.bf16.msra.mxu0 0
      %2574 = vmatprep.mubr.bf16.mxu0 0
      %2575 = vmatmul.mubr.bf16.gmra.mrb[0].mxu0 %v2540
      %v2576 = vpop.f32.mrb[0].mxu0
      %v2577 = vadd.f32 0.0, %v2576
      %v2578 = vpop.f32.mrb[0].mxu0
      %v2579 = vpop.f32.mrb[0].mxu0
      %v2580 = vpop.f32.mrb[0].mxu0
      %2581 = vdwg.mxu0
      %v2582 = vadd.f32 %v2534, %v2577
      %v2583 = vxor.u32 %v2582, 2147483648
      %v2584 = vmul.f32 %v2583, 1.442695
      %v2585 = vpow.pop %v2584
      %v2586 = vadd.f32 %v2585, 1.0
      %v2587 = vrcp.pop %v2586
      %v2588 = vmul.f32 1.0, %v2587
      %v2589 = vtanh.pop %v2582
      %v2590 = vmul.f32 %v2588, %v2516
      %2592 = vrot.lane.b32.xlu0 %v2589, 32
      %v2593 = vpop.permute.xlu0 %2592
      %v2595 = vmul.f32 %v2588, %v2593
      %2597 = vrot.lane.b32.xlu0 %v2595, 32
      %v2598 = vpop.permute.xlu0 %2597
      %v2600 = vadd.f32 %v2590, %v2598
      %v2601 = vtanh.pop %v2600
      %2603 = vrot.lane.b32.xlu0 %v2601, 32
      %v2604 = vpop.permute.xlu0 %2603
      %v2606 = vmul.f32 %v2588, %v2604
      %v2607 = vstv %s2531
      %vm2608 = vcmp.eq.s32.totalorder %v1836, %v2607
      %v2609 = vsel %vm2608, 1, 0
      %2610 = vset.pattern.permute.xlu0 0
      %2611 = vperm.xlu0 %2610, %v2609
      %v2612 = vpop.permute.xlu0 %2611
      %vm2613 = vcmp.eq.s32.totalorder %v2612, 1
      %v2614 = vsel %vm2613, %v2606, %v2530
      %s2615 = sadd.s32 %s1846, 9
      %s2616 = smul.u32 %s2615, 2
      %s2617 = scalar_lea.vmem [#allocation2], %s2616
      %v2618 = vld [vmem:[%s2617] sm:$0x3]
      %v2619 = vpack.c.bf16 %v2606, %v2606
      %2621 = vrot.lane.b32.xlu0 %v2619, 64
      %v2622 = vpop.permute.xlu0 %2621
      %v2624 = vsel %vm1866, %v2622, 0
      %2626 = vmatprep.subr.bf16.mxu0 0
      %2627 = vmatpush1.bf16.msra.mxu0 %v1862
      %2628 = vmatprep.subr.bf16.mxu0 0
      %2629 = vmatpush1.bf16.msra.mxu0 %v1863
      %2630 = vmatprep.subr.bf16.mxu0 0
      %2631 = vmatpush1.bf16.msra.mxu0 0
      %2632 = vmatprep.subr.bf16.mxu0 0
      %2633 = vmatpush1.bf16.msra.mxu0 0
      %2634 = vmatprep.subr.bf16.mxu0 0
      %2635 = vmatpush1.bf16.msra.mxu0 0
      %2636 = vmatprep.subr.bf16.mxu0 0
      %2637 = vmatpush1.bf16.msra.mxu0 0
      %2638 = vmatprep.subr.bf16.mxu0 0
      %2639 = vmatpush1.bf16.msra.mxu0 0
      %2640 = vmatprep.subr.bf16.mxu0 0
      %2641 = vmatpush1.bf16.msra.mxu0 0
      %2642 = vmatprep.subr.bf16.mxu0 0
      %2643 = vmatpush1.bf16.msra.mxu0 0
      %2644 = vmatprep.subr.bf16.mxu0 0
      %2645 = vmatpush1.bf16.msra.mxu0 0
      %2646 = vmatprep.subr.bf16.mxu0 0
      %2647 = vmatpush1.bf16.msra.mxu0 0
      %2648 = vmatprep.subr.bf16.mxu0 0
      %2649 = vmatpush1.bf16.msra.mxu0 0
      %2650 = vmatprep.subr.bf16.mxu0 0
      %2651 = vmatpush1.bf16.msra.mxu0 0
      %2652 = vmatprep.subr.bf16.mxu0 0
      %2653 = vmatpush1.bf16.msra.mxu0 0
      %2654 = vmatprep.subr.bf16.mxu0 0
      %2655 = vmatpush1.bf16.msra.mxu0 0
      %2656 = vmatprep.subr.bf16.mxu0 0
      %2657 = vmatpush1.bf16.msra.mxu0 0
      %2658 = vmatprep.mubr.bf16.mxu0 0
      %2659 = vmatmul.mubr.bf16.gmra.mrb[0].mxu0 %v2624
      %v2660 = vpop.f32.mrb[0].mxu0
      %v2661 = vadd.f32 0.0, %v2660
      %v2662 = vpop.f32.mrb[0].mxu0
      %v2663 = vpop.f32.mrb[0].mxu0
      %v2664 = vpop.f32.mrb[0].mxu0
      %2665 = vdwg.mxu0
      %v2666 = vadd.f32 %v2618, %v2661
      %v2667 = vxor.u32 %v2666, 2147483648
      %v2668 = vmul.f32 %v2667, 1.442695
      %v2669 = vpow.pop %v2668
      %v2670 = vadd.f32 %v2669, 1.0
      %v2671 = vrcp.pop %v2670
      %v2672 = vmul.f32 1.0, %v2671
      %v2673 = vtanh.pop %v2666
      %v2674 = vmul.f32 %v2672, %v2600
      %2676 = vrot.lane.b32.xlu0 %v2673, 32
      %v2677 = vpop.permute.xlu0 %2676
      %v2679 = vmul.f32 %v2672, %v2677
      %2681 = vrot.lane.b32.xlu0 %v2679, 32
      %v2682 = vpop.permute.xlu0 %2681
      %v2684 = vadd.f32 %v2674, %v2682
      %v2685 = vtanh.pop %v2684
      %2687 = vrot.lane.b32.xlu0 %v2685, 32
      %v2688 = vpop.permute.xlu0 %2687
      %v2690 = vmul.f32 %v2672, %v2688
      %v2691 = vstv %s2615
      %vm2692 = vcmp.eq.s32.totalorder %v1836, %v2691
      %v2693 = vsel %vm2692, 1, 0
      %2694 = vset.pattern.permute.xlu0 0
      %2695 = vperm.xlu0 %2694, %v2693
      %v2696 = vpop.permute.xlu0 %2695
      %vm2697 = vcmp.eq.s32.totalorder %v2696, 1
      %v2698 = vsel %vm2697, %v2690, %v2614
      %s2699 = sadd.s32 %s1846, 10
      %s2700 = smul.u32 %s2699, 2
      %s2701 = scalar_lea.vmem [#allocation2], %s2700
      %v2702 = vld [vmem:[%s2701] sm:$0x3]
      %v2703 = vpack.c.bf16 %v2690, %v2690
      %2705 = vrot.lane.b32.xlu0 %v2703, 64
      %v2706 = vpop.permute.xlu0 %2705
      %v2708 = vsel %vm1866, %v2706, 0
      %2710 = vmatprep.subr.bf16.mxu0 0
      %2711 = vmatpush1.bf16.msra.mxu0 %v1862
      %2712 = vmatprep.subr.bf16.mxu0 0
      %2713 = vmatpush1.bf16.msra.mxu0 %v1863
      %2714 = vmatprep.subr.bf16.mxu0 0
      %2715 = vmatpush1.bf16.msra.mxu0 0
      %2716 = vmatprep.subr.bf16.mxu0 0
      %2717 = vmatpush1.bf16.msra.mxu0 0
      %2718 = vmatprep.subr.bf16.mxu0 0
      %2719 = vmatpush1.bf16.msra.mxu0 0
      %2720 = vmatprep.subr.bf16.mxu0 0
      %2721 = vmatpush1.bf16.msra.mxu0 0
      %2722 = vmatprep.subr.bf16.mxu0 0
      %2723 = vmatpush1.bf16.msra.mxu0 0
      %2724 = vmatprep.subr.bf16.mxu0 0
      %2725 = vmatpush1.bf16.msra.mxu0 0
      %2726 = vmatprep.subr.bf16.mxu0 0
      %2727 = vmatpush1.bf16.msra.mxu0 0
      %2728 = vmatprep.subr.bf16.mxu0 0
      %2729 = vmatpush1.bf16.msra.mxu0 0
      %2730 = vmatprep.subr.bf16.mxu0 0
      %2731 = vmatpush1.bf16.msra.mxu0 0
      %2732 = vmatprep.subr.bf16.mxu0 0
      %2733 = vmatpush1.bf16.msra.mxu0 0
      %2734 = vmatprep.subr.bf16.mxu0 0
      %2735 = vmatpush1.bf16.msra.mxu0 0
      %2736 = vmatprep.subr.bf16.mxu0 0
      %2737 = vmatpush1.bf16.msra.mxu0 0
      %2738 = vmatprep.subr.bf16.mxu0 0
      %2739 = vmatpush1.bf16.msra.mxu0 0
      %2740 = vmatprep.subr.bf16.mxu0 0
      %2741 = vmatpush1.bf16.msra.mxu0 0
      %2742 = vmatprep.mubr.bf16.mxu0 0
      %2743 = vmatmul.mubr.bf16.gmra.mrb[0].mxu0 %v2708
      %v2744 = vpop.f32.mrb[0].mxu0
      %v2745 = vadd.f32 0.0, %v2744
      %v2746 = vpop.f32.mrb[0].mxu0
      %v2747 = vpop.f32.mrb[0].mxu0
      %v2748 = vpop.f32.mrb[0].mxu0
      %2749 = vdwg.mxu0
      %v2750 = vadd.f32 %v2702, %v2745
      %v2751 = vxor.u32 %v2750, 2147483648
      %v2752 = vmul.f32 %v2751, 1.442695
      %v2753 = vpow.pop %v2752
      %v2754 = vadd.f32 %v2753, 1.0
      %v2755 = vrcp.pop %v2754
      %v2756 = vmul.f32 1.0, %v2755
      %v2757 = vtanh.pop %v2750
      %v2758 = vmul.f32 %v2756, %v2684
      %2760 = vrot.lane.b32.xlu0 %v2757, 32
      %v2761 = vpop.permute.xlu0 %2760
      %v2763 = vmul.f32 %v2756, %v2761
      %2765 = vrot.lane.b32.xlu0 %v2763, 32
      %v2766 = vpop.permute.xlu0 %2765
      %v2768 = vadd.f32 %v2758, %v2766
      %v2769 = vtanh.pop %v2768
      %2771 = vrot.lane.b32.xlu0 %v2769, 32
      %v2772 = vpop.permute.xlu0 %2771
      %v2774 = vmul.f32 %v2756, %v2772
      %v2775 = vstv %s2699
      %vm2776 = vcmp.eq.s32.totalorder %v1836, %v2775
      %v2777 = vsel %vm2776, 1, 0
      %2778 = vset.pattern.permute.xlu0 0
      %2779 = vperm.xlu0 %2778, %v2777
      %v2780 = vpop.permute.xlu0 %2779
      %vm2781 = vcmp.eq.s32.totalorder %v2780, 1
      %v2782 = vsel %vm2781, %v2774, %v2698
      %s2783 = sadd.s32 %s1846, 11
      %s2784 = smul.u32 %s2783, 2
      %s2785 = scalar_lea.vmem [#allocation2], %s2784
      %v2786 = vld [vmem:[%s2785] sm:$0x3]
      %v2787 = vpack.c.bf16 %v2774, %v2774
      %2789 = vrot.lane.b32.xlu0 %v2787, 64
      %v2790 = vpop.permute.xlu0 %2789
      %v2792 = vsel %vm1866, %v2790, 0
      %2794 = vmatprep.subr.bf16.mxu0 0
      %2795 = vmatpush1.bf16.msra.mxu0 %v1862
      %2796 = vmatprep.subr.bf16.mxu0 0
      %2797 = vmatpush1.bf16.msra.mxu0 %v1863
      %2798 = vmatprep.subr.bf16.mxu0 0
      %2799 = vmatpush1.bf16.msra.mxu0 0
      %2800 = vmatprep.subr.bf16.mxu0 0
      %2801 = vmatpush1.bf16.msra.mxu0 0
      %2802 = vmatprep.subr.bf16.mxu0 0
      %2803 = vmatpush1.bf16.msra.mxu0 0
      %2804 = vmatprep.subr.bf16.mxu0 0
      %2805 = vmatpush1.bf16.msra.mxu0 0
      %2806 = vmatprep.subr.bf16.mxu0 0
      %2807 = vmatpush1.bf16.msra.mxu0 0
      %2808 = vmatprep.subr.bf16.mxu0 0
      %2809 = vmatpush1.bf16.msra.mxu0 0
      %2810 = vmatprep.subr.bf16.mxu0 0
      %2811 = vmatpush1.bf16.msra.mxu0 0
      %2812 = vmatprep.subr.bf16.mxu0 0
      %2813 = vmatpush1.bf16.msra.mxu0 0
      %2814 = vmatprep.subr.bf16.mxu0 0
      %2815 = vmatpush1.bf16.msra.mxu0 0
      %2816 = vmatprep.subr.bf16.mxu0 0
      %2817 = vmatpush1.bf16.msra.mxu0 0
      %2818 = vmatprep.subr.bf16.mxu0 0
      %2819 = vmatpush1.bf16.msra.mxu0 0
      %2820 = vmatprep.subr.bf16.mxu0 0
      %2821 = vmatpush1.bf16.msra.mxu0 0
      %2822 = vmatprep.subr.bf16.mxu0 0
      %2823 = vmatpush1.bf16.msra.mxu0 0
      %2824 = vmatprep.subr.bf16.mxu0 0
      %2825 = vmatpush1.bf16.msra.mxu0 0
      %2826 = vmatprep.mubr.bf16.mxu0 0
      %2827 = vmatmul.mubr.bf16.gmra.mrb[0].mxu0 %v2792
      %v2828 = vpop.f32.mrb[0].mxu0
      %v2829 = vadd.f32 0.0, %v2828
      %v2830 = vpop.f32.mrb[0].mxu0
      %v2831 = vpop.f32.mrb[0].mxu0
      %v2832 = vpop.f32.mrb[0].mxu0
      %2833 = vdwg.mxu0
      %v2834 = vadd.f32 %v2786, %v2829
      %v2835 = vxor.u32 %v2834, 2147483648
      %v2836 = vmul.f32 %v2835, 1.442695
      %v2837 = vpow.pop %v2836
      %v2838 = vadd.f32 %v2837, 1.0
      %v2839 = vrcp.pop %v2838
      %v2840 = vmul.f32 1.0, %v2839
      %v2841 = vtanh.pop %v2834
      %v2842 = vmul.f32 %v2840, %v2768
      %2844 = vrot.lane.b32.xlu0 %v2841, 32
      %v2845 = vpop.permute.xlu0 %2844
      %v2847 = vmul.f32 %v2840, %v2845
      %2849 = vrot.lane.b32.xlu0 %v2847, 32
      %v2850 = vpop.permute.xlu0 %2849
      %v2852 = vadd.f32 %v2842, %v2850
      %v2853 = vtanh.pop %v2852
      %2855 = vrot.lane.b32.xlu0 %v2853, 32
      %v2856 = vpop.permute.xlu0 %2855
      %v2858 = vmul.f32 %v2840, %v2856
      %v2859 = vstv %s2783
      %vm2860 = vcmp.eq.s32.totalorder %v1836, %v2859
      %v2861 = vsel %vm2860, 1, 0
      %2862 = vset.pattern.permute.xlu0 0
      %2863 = vperm.xlu0 %2862, %v2861
      %v2864 = vpop.permute.xlu0 %2863
      %vm2865 = vcmp.eq.s32.totalorder %v2864, 1
      %v2866 = vsel %vm2865, %v2858, %v2782
      %s2867 = sadd.s32 %s1846, 12
      %s2868 = smul.u32 %s2867, 2
      %s2869 = scalar_lea.vmem [#allocation2], %s2868
      %v2870 = vld [vmem:[%s2869] sm:$0x3]
      %v2871 = vpack.c.bf16 %v2858, %v2858
      %2873 = vrot.lane.b32.xlu0 %v2871, 64
      %v2874 = vpop.permute.xlu0 %2873
      %v2876 = vsel %vm1866, %v2874, 0
      %2878 = vmatprep.subr.bf16.mxu0 0
      %2879 = vmatpush1.bf16.msra.mxu0 %v1862
      %2880 = vmatprep.subr.bf16.mxu0 0
      %2881 = vmatpush1.bf16.msra.mxu0 %v1863
      %2882 = vmatprep.subr.bf16.mxu0 0
      %2883 = vmatpush1.bf16.msra.mxu0 0
      %2884 = vmatprep.subr.bf16.mxu0 0
      %2885 = vmatpush1.bf16.msra.mxu0 0
      %2886 = vmatprep.subr.bf16.mxu0 0
      %2887 = vmatpush1.bf16.msra.mxu0 0
      %2888 = vmatprep.subr.bf16.mxu0 0
      %2889 = vmatpush1.bf16.msra.mxu0 0
      %2890 = vmatprep.subr.bf16.mxu0 0
      %2891 = vmatpush1.bf16.msra.mxu0 0
      %2892 = vmatprep.subr.bf16.mxu0 0
      %2893 = vmatpush1.bf16.msra.mxu0 0
      %2894 = vmatprep.subr.bf16.mxu0 0
      %2895 = vmatpush1.bf16.msra.mxu0 0
      %2896 = vmatprep.subr.bf16.mxu0 0
      %2897 = vmatpush1.bf16.msra.mxu0 0
      %2898 = vmatprep.subr.bf16.mxu0 0
      %2899 = vmatpush1.bf16.msra.mxu0 0
      %2900 = vmatprep.subr.bf16.mxu0 0
      %2901 = vmatpush1.bf16.msra.mxu0 0
      %2902 = vmatprep.subr.bf16.mxu0 0
      %2903 = vmatpush1.bf16.msra.mxu0 0
      %2904 = vmatprep.subr.bf16.mxu0 0
      %2905 = vmatpush1.bf16.msra.mxu0 0
      %2906 = vmatprep.subr.bf16.mxu0 0
      %2907 = vmatpush1.bf16.msra.mxu0 0
      %2908 = vmatprep.subr.bf16.mxu0 0
      %2909 = vmatpush1.bf16.msra.mxu0 0
      %2910 = vmatprep.mubr.bf16.mxu0 0
      %2911 = vmatmul.mubr.bf16.gmra.mrb[0].mxu0 %v2876
      %v2912 = vpop.f32.mrb[0].mxu0
      %v2913 = vadd.f32 0.0, %v2912
      %v2914 = vpop.f32.mrb[0].mxu0
      %v2915 = vpop.f32.mrb[0].mxu0
      %v2916 = vpop.f32.mrb[0].mxu0
      %2917 = vdwg.mxu0
      %v2918 = vadd.f32 %v2870, %v2913
      %v2919 = vxor.u32 %v2918, 2147483648
      %v2920 = vmul.f32 %v2919, 1.442695
      %v2921 = vpow.pop %v2920
      %v2922 = vadd.f32 %v2921, 1.0
      %v2923 = vrcp.pop %v2922
      %v2924 = vmul.f32 1.0, %v2923
      %v2925 = vtanh.pop %v2918
      %v2926 = vmul.f32 %v2924, %v2852
      %2928 = vrot.lane.b32.xlu0 %v2925, 32
      %v2929 = vpop.permute.xlu0 %2928
      %v2931 = vmul.f32 %v2924, %v2929
      %2933 = vrot.lane.b32.xlu0 %v2931, 32
      %v2934 = vpop.permute.xlu0 %2933
      %v2936 = vadd.f32 %v2926, %v2934
      %v2937 = vtanh.pop %v2936
      %2939 = vrot.lane.b32.xlu0 %v2937, 32
      %v2940 = vpop.permute.xlu0 %2939
      %v2942 = vmul.f32 %v2924, %v2940
      %v2943 = vstv %s2867
      %vm2944 = vcmp.eq.s32.totalorder %v1836, %v2943
      %v2945 = vsel %vm2944, 1, 0
      %2946 = vset.pattern.permute.xlu0 0
      %2947 = vperm.xlu0 %2946, %v2945
      %v2948 = vpop.permute.xlu0 %2947
      %vm2949 = vcmp.eq.s32.totalorder %v2948, 1
      %v2950 = vsel %vm2949, %v2942, %v2866
      %s2951 = sadd.s32 %s1846, 13
      %s2952 = smul.u32 %s2951, 2
      %s2953 = scalar_lea.vmem [#allocation2], %s2952
      %v2954 = vld [vmem:[%s2953] sm:$0x3]
      %v2955 = vpack.c.bf16 %v2942, %v2942
      %2957 = vrot.lane.b32.xlu0 %v2955, 64
      %v2958 = vpop.permute.xlu0 %2957
      %v2960 = vsel %vm1866, %v2958, 0
      %2962 = vmatprep.subr.bf16.mxu0 0
      %2963 = vmatpush1.bf16.msra.mxu0 %v1862
      %2964 = vmatprep.subr.bf16.mxu0 0
      %2965 = vmatpush1.bf16.msra.mxu0 %v1863
      %2966 = vmatprep.subr.bf16.mxu0 0
      %2967 = vmatpush1.bf16.msra.mxu0 0
      %2968 = vmatprep.subr.bf16.mxu0 0
      %2969 = vmatpush1.bf16.msra.mxu0 0
      %2970 = vmatprep.subr.bf16.mxu0 0
      %2971 = vmatpush1.bf16.msra.mxu0 0
      %2972 = vmatprep.subr.bf16.mxu0 0
      %2973 = vmatpush1.bf16.msra.mxu0 0
      %2974 = vmatprep.subr.bf16.mxu0 0
      %2975 = vmatpush1.bf16.msra.mxu0 0
      %2976 = vmatprep.subr.bf16.mxu0 0
      %2977 = vmatpush1.bf16.msra.mxu0 0
      %2978 = vmatprep.subr.bf16.mxu0 0
      %2979 = vmatpush1.bf16.msra.mxu0 0
      %2980 = vmatprep.subr.bf16.mxu0 0
      %2981 = vmatpush1.bf16.msra.mxu0 0
      %2982 = vmatprep.subr.bf16.mxu0 0
      %2983 = vmatpush1.bf16.msra.mxu0 0
      %2984 = vmatprep.subr.bf16.mxu0 0
      %2985 = vmatpush1.bf16.msra.mxu0 0
      %2986 = vmatprep.subr.bf16.mxu0 0
      %2987 = vmatpush1.bf16.msra.mxu0 0
      %2988 = vmatprep.subr.bf16.mxu0 0
      %2989 = vmatpush1.bf16.msra.mxu0 0
      %2990 = vmatprep.subr.bf16.mxu0 0
      %2991 = vmatpush1.bf16.msra.mxu0 0
      %2992 = vmatprep.subr.bf16.mxu0 0
      %2993 = vmatpush1.bf16.msra.mxu0 0
      %2994 = vmatprep.mubr.bf16.mxu0 0
      %2995 = vmatmul.mubr.bf16.gmra.mrb[0].mxu0 %v2960
      %v2996 = vpop.f32.mrb[0].mxu0
      %v2997 = vadd.f32 0.0, %v2996
      %v2998 = vpop.f32.mrb[0].mxu0
      %v2999 = vpop.f32.mrb[0].mxu0
      %v3000 = vpop.f32.mrb[0].mxu0
      %3001 = vdwg.mxu0
      %v3002 = vadd.f32 %v2954, %v2997
      %v3003 = vxor.u32 %v3002, 2147483648
      %v3004 = vmul.f32 %v3003, 1.442695
      %v3005 = vpow.pop %v3004
      %v3006 = vadd.f32 %v3005, 1.0
      %v3007 = vrcp.pop %v3006
      %v3008 = vmul.f32 1.0, %v3007
      %v3009 = vtanh.pop %v3002
      %v3010 = vmul.f32 %v3008, %v2936
      %3012 = vrot.lane.b32.xlu0 %v3009, 32
      %v3013 = vpop.permute.xlu0 %3012
      %v3015 = vmul.f32 %v3008, %v3013
      %3017 = vrot.lane.b32.xlu0 %v3015, 32
      %v3018 = vpop.permute.xlu0 %3017
      %v3020 = vadd.f32 %v3010, %v3018
      %v3021 = vtanh.pop %v3020
      %3023 = vrot.lane.b32.xlu0 %v3021, 32
      %v3024 = vpop.permute.xlu0 %3023
      %v3026 = vmul.f32 %v3008, %v3024
      %v3027 = vstv %s2951
      %vm3028 = vcmp.eq.s32.totalorder %v1836, %v3027
      %v3029 = vsel %vm3028, 1, 0
      %3030 = vset.pattern.permute.xlu0 0
      %3031 = vperm.xlu0 %3030, %v3029
      %v3032 = vpop.permute.xlu0 %3031
      %vm3033 = vcmp.eq.s32.totalorder %v3032, 1
      %v3034 = vsel %vm3033, %v3026, %v2950
      %s3035 = sadd.s32 %s1846, 14
      %s3036 = smul.u32 %s3035, 2
      %s3037 = scalar_lea.vmem [#allocation2], %s3036
      %v3038 = vld [vmem:[%s3037] sm:$0x3]
      %v3039 = vpack.c.bf16 %v3026, %v3026
      %3041 = vrot.lane.b32.xlu0 %v3039, 64
      %v3042 = vpop.permute.xlu0 %3041
      %v3044 = vsel %vm1866, %v3042, 0
      %3046 = vmatprep.subr.bf16.mxu0 0
      %3047 = vmatpush1.bf16.msra.mxu0 %v1862
      %3048 = vmatprep.subr.bf16.mxu0 0
      %3049 = vmatpush1.bf16.msra.mxu0 %v1863
      %3050 = vmatprep.subr.bf16.mxu0 0
      %3051 = vmatpush1.bf16.msra.mxu0 0
      %3052 = vmatprep.subr.bf16.mxu0 0
      %3053 = vmatpush1.bf16.msra.mxu0 0
      %3054 = vmatprep.subr.bf16.mxu0 0
      %3055 = vmatpush1.bf16.msra.mxu0 0
      %3056 = vmatprep.subr.bf16.mxu0 0
      %3057 = vmatpush1.bf16.msra.mxu0 0
      %3058 = vmatprep.subr.bf16.mxu0 0
      %3059 = vmatpush1.bf16.msra.mxu0 0
      %3060 = vmatprep.subr.bf16.mxu0 0
      %3061 = vmatpush1.bf16.msra.mxu0 0
      %3062 = vmatprep.subr.bf16.mxu0 0
      %3063 = vmatpush1.bf16.msra.mxu0 0
      %3064 = vmatprep.subr.bf16.mxu0 0
      %3065 = vmatpush1.bf16.msra.mxu0 0
      %3066 = vmatprep.subr.bf16.mxu0 0
      %3067 = vmatpush1.bf16.msra.mxu0 0
      %3068 = vmatprep.subr.bf16.mxu0 0
      %3069 = vmatpush1.bf16.msra.mxu0 0
      %3070 = vmatprep.subr.bf16.mxu0 0
      %3071 = vmatpush1.bf16.msra.mxu0 0
      %3072 = vmatprep.subr.bf16.mxu0 0
      %3073 = vmatpush1.bf16.msra.mxu0 0
      %3074 = vmatprep.subr.bf16.mxu0 0
      %3075 = vmatpush1.bf16.msra.mxu0 0
      %3076 = vmatprep.subr.bf16.mxu0 0
      %3077 = vmatpush1.bf16.msra.mxu0 0
      %3078 = vmatprep.mubr.bf16.mxu0 0
      %3079 = vmatmul.mubr.bf16.gmra.mrb[0].mxu0 %v3044
      %v3080 = vpop.f32.mrb[0].mxu0
      %v3081 = vadd.f32 0.0, %v3080
      %v3082 = vpop.f32.mrb[0].mxu0
      %v3083 = vpop.f32.mrb[0].mxu0
      %v3084 = vpop.f32.mrb[0].mxu0
      %3085 = vdwg.mxu0
      %v3086 = vadd.f32 %v3038, %v3081
      %v3087 = vxor.u32 %v3086, 2147483648
      %v3088 = vmul.f32 %v3087, 1.442695
      %v3089 = vpow.pop %v3088
      %v3090 = vadd.f32 %v3089, 1.0
      %v3091 = vrcp.pop %v3090
      %v3092 = vmul.f32 1.0, %v3091
      %v3093 = vtanh.pop %v3086
      %v3094 = vmul.f32 %v3092, %v3020
      %3096 = vrot.lane.b32.xlu0 %v3093, 32
      %v3097 = vpop.permute.xlu0 %3096
      %v3099 = vmul.f32 %v3092, %v3097
      %3101 = vrot.lane.b32.xlu0 %v3099, 32
      %v3102 = vpop.permute.xlu0 %3101
      %v3104 = vadd.f32 %v3094, %v3102
      %v3105 = vtanh.pop %v3104
      %3107 = vrot.lane.b32.xlu0 %v3105, 32
      %v3108 = vpop.permute.xlu0 %3107
      %v3110 = vmul.f32 %v3092, %v3108
      %v3111 = vstv %s3035
      %vm3112 = vcmp.eq.s32.totalorder %v1836, %v3111
      %v3113 = vsel %vm3112, 1, 0
      %3114 = vset.pattern.permute.xlu0 0
      %3115 = vperm.xlu0 %3114, %v3113
      %v3116 = vpop.permute.xlu0 %3115
      %vm3117 = vcmp.eq.s32.totalorder %v3116, 1
      %v3118 = vsel %vm3117, %v3110, %v3034
      %s3119 = sadd.s32 %s1846, 15
      %s3120 = smul.u32 %s3119, 2
      %s3121 = scalar_lea.vmem [#allocation2], %s3120
      %v3122 = vld [vmem:[%s3121] sm:$0x3]
      %v3123 = vpack.c.bf16 %v3110, %v3110
      %3125 = vrot.lane.b32.xlu0 %v3123, 64
      %v3126 = vpop.permute.xlu0 %3125
      %v3128 = vsel %vm1866, %v3126, 0
      %3130 = vmatprep.subr.bf16.mxu0 0
      %3131 = vmatpush1.bf16.msra.mxu0 %v1862
      %3132 = vmatprep.subr.bf16.mxu0 0
      %3133 = vmatpush1.bf16.msra.mxu0 %v1863
      %3134 = vmatprep.subr.bf16.mxu0 0
      %3135 = vmatpush1.bf16.msra.mxu0 0
      %3136 = vmatprep.subr.bf16.mxu0 0
      %3137 = vmatpush1.bf16.msra.mxu0 0
      %3138 = vmatprep.subr.bf16.mxu0 0
      %3139 = vmatpush1.bf16.msra.mxu0 0
      %3140 = vmatprep.subr.bf16.mxu0 0
      %3141 = vmatpush1.bf16.msra.mxu0 0
      %3142 = vmatprep.subr.bf16.mxu0 0
      %3143 = vmatpush1.bf16.msra.mxu0 0
      %3144 = vmatprep.subr.bf16.mxu0 0
      %3145 = vmatpush1.bf16.msra.mxu0 0
      %3146 = vmatprep.subr.bf16.mxu0 0
      %3147 = vmatpush1.bf16.msra.mxu0 0
      %3148 = vmatprep.subr.bf16.mxu0 0
      %3149 = vmatpush1.bf16.msra.mxu0 0
      %3150 = vmatprep.subr.bf16.mxu0 0
      %3151 = vmatpush1.bf16.msra.mxu0 0
      %3152 = vmatprep.subr.bf16.mxu0 0
      %3153 = vmatpush1.bf16.msra.mxu0 0
      %3154 = vmatprep.subr.bf16.mxu0 0
      %3155 = vmatpush1.bf16.msra.mxu0 0
      %3156 = vmatprep.subr.bf16.mxu0 0
      %3157 = vmatpush1.bf16.msra.mxu0 0
      %3158 = vmatprep.subr.bf16.mxu0 0
      %3159 = vmatpush1.bf16.msra.mxu0 0
      %3160 = vmatprep.subr.bf16.mxu0 0
      %3161 = vmatpush1.bf16.msra.mxu0 0
      %3162 = vmatprep.mubr.bf16.mxu0 0
      %3163 = vmatmul.mubr.bf16.gmra.mrb[0].mxu0 %v3128
      %v3164 = vpop.f32.mrb[0].mxu0
      %v3165 = vadd.f32 0.0, %v3164
      %v3166 = vpop.f32.mrb[0].mxu0
      %v3167 = vpop.f32.mrb[0].mxu0
      %v3168 = vpop.f32.mrb[0].mxu0
      %3169 = vdwg.mxu0
      %v3170 = vadd.f32 %v3122, %v3165
      %v3171 = vxor.u32 %v3170, 2147483648
      %v3172 = vmul.f32 %v3171, 1.442695
      %v3173 = vpow.pop %v3172
      %v3174 = vadd.f32 %v3173, 1.0
      %v3175 = vrcp.pop %v3174
      %v3176 = vmul.f32 1.0, %v3175
      %v3177 = vtanh.pop %v3170
      %v3178 = vmul.f32 %v3176, %v3104
      %3180 = vrot.lane.b32.xlu0 %v3177, 32
      %v3181 = vpop.permute.xlu0 %3180
      %v3183 = vmul.f32 %v3176, %v3181
      %3185 = vrot.lane.b32.xlu0 %v3183, 32
      %v3186 = vpop.permute.xlu0 %3185
      %v3188 = vadd.f32 %v3178, %v3186
      %v3189 = vtanh.pop %v3188
      %3191 = vrot.lane.b32.xlu0 %v3189, 32
      %v3192 = vpop.permute.xlu0 %3191
      %v3194 = vmul.f32 %v3176, %v3192
      %v3195 = vstv %s3119
      %vm3196 = vcmp.eq.s32.totalorder %v1836, %v3195
      %v3197 = vsel %vm3196, 1, 0
      %3198 = vset.pattern.permute.xlu0 0
      %3199 = vperm.xlu0 %3198, %v3197
      %v3200 = vpop.permute.xlu0 %3199
      %vm3201 = vcmp.eq.s32.totalorder %v3200, 1
      %v3202 = vsel %vm3201, %v3194, %v3118
    $region34: #{lstm_forward.1} parent=1 // loop_footer
      %s1842 = sadd.s32 1, %s1838
    $region35: #{lstm_forward.1} parent=1 // loop_footer_branch
      %1837 = sbr.rel target = $region31
    $region36: #{lstm_forward.1} parent=1 // loop_exit
      _
    %v3203 = vld [vmem:[%s5] sm:$0xff]
    %v3204 = vld [vmem:[%s5 + $0x8] sm:$0xff]
    %v3205 = vld [vmem:[%s5 + $0x10] sm:$0xff]
    %v3206 = vld [vmem:[%s5 + $0x18] sm:$0xff]
    %v3207 = vld [vmem:[%s6] sm:$0x1]
    %v3209 = vlaneseq
    %v3210 = vshrl.u32 %v3209, 7
    %v3211 = vsub.s32 0, %v3210
    %v3212 = vrot.slane %v3207, %v3211
    %3215 = vrot.lane.b32.xlu0 %v1845, 64
    %v3216 = vpop.permute.xlu0 %3215
    %vm3217 = vcmask 261120
    %v3218 = vsel %vm3217, %v3216, 0
    %3220 = vmatprep.subr.mxu0 0.0
    %3221 = vmatpush1.msra.mxu0 %v3203
    %3222 = vmatprep.subr.mxu0 0.0
    %3223 = vmatpush1.msra.mxu0 %v3204
    %3224 = vmatprep.subr.mxu0 0.0
    %3225 = vmatpush1.msra.mxu0 %v3205
    %3226 = vmatprep.subr.mxu0 0.0
    %3227 = vmatpush1.msra.mxu0 %v3206
    %3228 = vmatprep.subr.mxu0 0.0
    %3229 = vmatpush1.msra.mxu0 0.0
    %3230 = vmatprep.subr.mxu0 0.0
    %3231 = vmatpush1.msra.mxu0 0.0
    %3232 = vmatprep.subr.mxu0 0.0
    %3233 = vmatpush1.msra.mxu0 0.0
    %3234 = vmatprep.subr.mxu0 0.0
    %3235 = vmatpush1.msra.mxu0 0.0
    %3236 = vmatprep.subr.mxu0 0.0
    %3237 = vmatpush1.msra.mxu0 0.0
    %3238 = vmatprep.subr.mxu0 0.0
    %3239 = vmatpush1.msra.mxu0 0.0
    %3240 = vmatprep.subr.mxu0 0.0
    %3241 = vmatpush1.msra.mxu0 0.0
    %3242 = vmatprep.subr.mxu0 0.0
    %3243 = vmatpush1.msra.mxu0 0.0
    %3244 = vmatprep.subr.mxu0 0.0
    %3245 = vmatpush1.msra.mxu0 0.0
    %3246 = vmatprep.subr.mxu0 0.0
    %3247 = vmatpush1.msra.mxu0 0.0
    %3248 = vmatprep.subr.mxu0 0.0
    %3249 = vmatpush1.msra.mxu0 0.0
    %3250 = vmatprep.subr.mxu0 0.0
    %3251 = vmatpush1.msra.mxu0 0.0
    %3252 = vmatprep.subr.mxu0 0.0
    %3253 = vmatpush1.msra.mxu0 0.0
    %3254 = vmatprep.subr.mxu0 0.0
    %3255 = vmatpush1.msra.mxu0 0.0
    %3256 = vmatprep.subr.mxu0 0.0
    %3257 = vmatpush1.msra.mxu0 0.0
    %3258 = vmatprep.subr.mxu0 0.0
    %3259 = vmatpush1.msra.mxu0 0.0
    %3260 = vmatprep.subr.mxu0 0.0
    %3261 = vmatpush1.msra.mxu0 0.0
    %3262 = vmatprep.subr.mxu0 0.0
    %3263 = vmatpush1.msra.mxu0 0.0
    %3264 = vmatprep.subr.mxu0 0.0
    %3265 = vmatpush1.msra.mxu0 0.0
    %3266 = vmatprep.subr.mxu0 0.0
    %3267 = vmatpush1.msra.mxu0 0.0
    %3268 = vmatprep.subr.mxu0 0.0
    %3269 = vmatpush1.msra.mxu0 0.0
    %3270 = vmatprep.subr.mxu0 0.0
    %3271 = vmatpush1.msra.mxu0 0.0
    %3272 = vmatprep.subr.mxu0 0.0
    %3273 = vmatpush1.msra.mxu0 0.0
    %3274 = vmatprep.subr.mxu0 0.0
    %3275 = vmatpush1.msra.mxu0 0.0
    %3276 = vmatprep.subr.mxu0 0.0
    %3277 = vmatpush1.msra.mxu0 0.0
    %3278 = vmatprep.subr.mxu0 0.0
    %3279 = vmatpush1.msra.mxu0 0.0
    %3280 = vmatprep.subr.mxu0 0.0
    %3281 = vmatpush1.msra.mxu0 0.0
    %3282 = vmatprep.subr.mxu0 0.0
    %3283 = vmatpush1.msra.mxu0 0.0
    %3284 = vmatprep.mubr.f32.mxu0 0.0
    %3285 = vmatmul.mubr.f32.gmra.mrb[0].mxu0 %v3218
    %v3286 = vpop.f32.mrb[0].mxu0
    %v3287 = vadd.f32 %v3212, %v3286
    %v3288 = vpop.f32.mrb[0].mxu0
    %3289 = vdwg.mxu0
    %vm3290 = vcmask 9216
    %v3291 = vsel %vm3290, %v3287, -inf
    %3292 = vmax.xlane.f32.xlu0 %v3291
    %v3293 = vpop.xlane.xlu0 %3292
    %v3294 = vsub.f32 %v3287, %v3293
    %v3295 = vmul.f32 %v3294, 1.442695
    %v3296 = vpow.pop %v3295
    %v3297 = vsel %vm3290, %v3296, 0.0
    %3298 = vadd.xlane.f32.xlu0 %v3297
    %v3299 = vpop.xlane.xlu0 %3298
    %v3300 = vrcp.pop %v3299
    %v3301 = vmul.f32 %v3296, %v3300
    %3302 = vst.msk [vmem:[#allocation3] sm:$0x3] %vm3290, %v3301
    // Predicated region
    $region37: #{lstm_forward.1} parent=1 // pred_check
      _
    $region38: #{lstm_forward.1} parent=1 // pred_check_branch
      %3304 = sbr.rel (0) target = $region40
    $region39: #{lstm_forward.1} parent=1 // pred_region
      %s3306 = ssub.s32 32, 32
      %3307 = vsyncadd [#allocation4], %s3306
      %s3309 = sshll.u32 [#allocation3], 4
      %s3310 = int_to_ptr.vmem [resolvable:$true] %s3309
      %3312 = dma.vmem_to_hbm [thread:$0]  %s3310, 32, %s7, [#allocation4]
    $region40: #{lstm_forward.1} parent=1 // pred_fallthru
      _
    // Predicated region
    $region41: #{lstm_forward.1} parent=1 // pred_check
      _
    $region42: #{lstm_forward.1} parent=1 // pred_check_branch
      %3314 = sbr.rel (0) target = $region44
    $region43: #{lstm_forward.1} parent=1 // pred_region
      %3315 = dma.done [#allocation4], 32
    $region44: #{lstm_forward.1} parent=1 // pred_fallthru
      _
    %3316 = vsyncpa [#allocation4], 1

</llo_original>
